<compile_context>
chip_gen: v7x
topology: tpu7x:2x2x1
jax: 0.10.0
libtpu: 0.0.40
codegen_flags: <defaults>
</compile_context>

<pallas_src>
import functools

import jax
import jax.numpy as jnp
from jax import lax
from jax.experimental import pallas as pl
from jax.experimental.pallas import tpu as pltpu


# ----------------------------------------------------------------------------
# Pallas kernel: one grid step = one forward time-chunk + mirrored bwd chunk.
# ----------------------------------------------------------------------------
def encoder_bigru_kernel(xf_ref, xb_ref,                     # (CT, BP, H) bf16 chunks
                         wih_f_ref, wih_b_ref,               # (H, 3H) bf16
                         whh_ref,                            # (H, 6H) bf16  = [whh_f | whh_b]
                         bgi_f_ref, bgi_b_ref,               # (1, 3H) f32   (b_ih + [b_hr|b_hz|0])
                         bhn_f_ref, bhn_b_ref,               # (1, H)  f32   (b_hn)
                         out_f_ref, out_b_ref,               # (CT, BP, H) f32
                         hid_ref,                            # (2, BP, H) f32, resident
                         gi_f_scr, gi_b_scr,                 # (CT, BP, 3H) f32
                         h_f_scr, h_b_scr,                   # (BP, H) f32 carries across chunks
                         *, CT, BP, H, NC, T):
    f32 = jnp.float32
    bf16 = jnp.bfloat16
    c = pl.program_id(0)

    @pl.when(c == 0)
    def _init():
        h_f_scr[...] = jnp.zeros_like(h_f_scr)
        h_b_scr[...] = jnp.zeros_like(h_b_scr)

    # ---- chunk-level input-side gate pre-activations ------------------------
    # One (CT*BP, H) x (H, 3H) bf16 MXU pass per direction, f32 accumulation,
    # stored time-major (CT, BP, 3H) so the hot loop uses first-axis indexing.
    xf = xf_ref[...].reshape(CT * BP, H)
    xb = xb_ref[...].reshape(CT * BP, H)
    gi_f_scr[...] = (jnp.dot(xf, wih_f_ref[...], preferred_element_type=f32)
                     + bgi_f_ref[...]).reshape(CT, BP, 3 * H)
    gi_b_scr[...] = (jnp.dot(xb, wih_b_ref[...], preferred_element_type=f32)
                     + bgi_b_ref[...]).reshape(CT, BP, 3 * H)

    # n-gate recurrent biases, pre-broadcast once per chunk (not per timestep).
    bhn_f = jnp.broadcast_to(bhn_f_ref[...], (BP, H))
    bhn_b = jnp.broadcast_to(bhn_b_ref[...], (BP, H))

    ragged = (NC * CT) != T   # static: does the last chunk contain padded steps?

    # ---- fused recurrent loop ------------------------------------------------
    # Iteration j advances the forward chain at local time j and the backward
    # chain at local time CT-1-j (its chunk is the time-mirrored one).  Both
    # recurrent matmuls are fused into a single (2*BP, H) x (H, 6H) MXU pass.
    def body(j, carry):
        h_f, h_b = carry
        gi_f = gi_f_scr[j]                 # (BP, 3H)
        gi_b = gi_b_scr[CT - 1 - j]

        h_cat = jnp.concatenate([h_f, h_b], axis=0).astype(bf16)   # (2BP, H)
        gh = jnp.dot(h_cat, whh_ref[...], preferred_element_type=f32)  # (2BP, 6H)
        gh_f = gh[:BP, :3 * H]
        gh_b = gh[BP:, 3 * H:]

        def gates(gi, gh_d, bhn, h):
            # PyTorch GRU cell, gate order [r | z | n].  b_hr/b_hz are already
            # folded into gi; only b_hn must stay inside r*(...).
            r = jax.nn.sigmoid(gi[:, :H] + gh_d[:, :H])
            z = jax.nn.sigmoid(gi[:, H:2 * H] + gh_d[:, H:2 * H])
            n = jnp.tanh(gi[:, 2 * H:] + r * (gh_d[:, 2 * H:] + bhn))
            return (1.0 - z) * n + z * h

        h_f_new = gates(gi_f, gh_f, bhn_f, h_f)
        h_b_new = gates(gi_b, gh_b, bhn_b, h_b)

        if ragged:
            # Mask time-padded steps so the carries stay correct:
            #  * forward skips trailing padded steps (keeps h at last real t),
            #  * backward skips them before its first real step (h stays 0).
            valid_f = (c * CT + j) < T
            valid_b = ((NC - 1 - c) * CT + (CT - 1 - j)) < T
            h_f_new = jnp.where(valid_f, h_f_new, h_f)
            h_b_new = jnp.where(valid_b, h_b_new, h_b)

        out_f_ref[j] = h_f_new
        out_b_ref[CT - 1 - j] = h_b_new
        return (h_f_new, h_b_new)

    unroll = CT if CT <= 8 else 4
    h_f, h_b = lax.fori_loop(0, CT, body, (h_f_scr[...], h_b_scr[...]),
                             unroll=unroll)
    h_f_scr[...] = h_f
    h_b_scr[...] = h_b

    @pl.when(c == pl.num_programs(0) - 1)
    def _finalize():
        hid_ref[0] = h_f
        hid_ref[1] = h_b


# ----------------------------------------------------------------------------
# Wrapper: embedding gather (XLA), padding, pallas_call plumbing, final sum.
# ----------------------------------------------------------------------------
def _vmem_budget_bytes():
    try:
        return int(pltpu.get_tpu_info().vmem_capacity_bytes)
    except Exception:
        return 64 << 20   # conservative: v7x per-TensorCore VMEM


def encoder_rnn_forward(input_seqs, input_lengths, params, *, chunk_t=None):
    """input_seqs: (B, T) int32.  Returns (outputs (T, B, H), hidden (2, B, H))."""
    del input_lengths                      # module never packs; lengths unused
    B, T = input_seqs.shape
    V, H = params["emb"].shape
    f32, bf16 = jnp.float32, jnp.bfloat16

    # bf16 streamed activations need (16, 128) tiles -> pad batch to 16.
    BP = max(16, -(-B // 16) * 16)

    # ---- time chunk: auto-derived from this chip's VMEM capacity ------------
    budget = _vmem_budget_bytes()
    # per-CT VMEM: double-buffered x (bf16) + out (f32) blocks + gi scratch.
    per_ct = 2 * (2 * BP * H * 2 + 2 * BP * H * 4) + 2 * BP * 3 * H * 4
    fixed = 2 * (2 * H * 3 * H * 2 + H * 6 * H * 2) + 16 * BP * H + (2 << 20)
    ct_cap = max(1, (int(0.75 * budget) - fixed) // per_ct)
    CT = int(min(T, ct_cap, chunk_t if chunk_t is not None else ct_cap))
    CT = max(CT, 1)
    NC = -(-T // CT)
    T_pad = NC * CT           # no divisor fallback: pad time + mask in-kernel

    # ---- embedding lookup: plain XLA gather, activations streamed in bf16 ---
    ids_tb = jnp.transpose(input_seqs, (1, 0)).astype(jnp.int32)         # (T, B)
    x = jnp.take(params["emb"].astype(bf16), ids_tb, axis=0)             # (T, B, H)
    x = jnp.pad(x, ((0, T_pad - T), (0, BP - B), (0, 0)))                # (T_pad, BP, H)

    # ---- parameter prep: bf16 weights, fused whh, folded r/z biases ---------
    def fold_gi_bias(bih, bhh):
        return bih + jnp.concatenate([bhh[:, :2 * H], jnp.zeros((1, H), f32)], axis=1)

    wih_f = params["wih_f"].astype(bf16)
    wih_b = params["wih_b"].astype(bf16)
    whh_cat = jnp.concatenate([params["whh_f"], params["whh_b"]], axis=1).astype(bf16)
    bgi_f = fold_gi_bias(params["bih_f"], params["bhh_f"])
    bgi_b = fold_gi_bias(params["bih_b"], params["bhh_b"])
    bhn_f = params["bhh_f"][:, 2 * H:]
    bhn_b = params["bhh_b"][:, 2 * H:]

    kernel = functools.partial(encoder_bigru_kernel, CT=CT, BP=BP, H=H, NC=NC, T=T)

    # VMEM request: only the streamed blocks are double-buffered.
    streamed = 2 * (2 * CT * BP * H * 2 + 2 * CT * BP * H * 4)            # x bf16 + out f32
    weights = 2 * (2 * H * 3 * H * 2 + H * 6 * H * 2 + 2 * 3 * H * 4 + 2 * H * 4)
    scratch = 2 * CT * BP * 3 * H * 4 + 2 * BP * H * 4
    resident = 2 * BP * H * 4                                             # hidden block
    vmem_bytes = min(int(0.9 * budget),
                     streamed + weights + scratch + resident + (8 << 20))

    wih_spec = pl.BlockSpec((H, 3 * H), lambda c: (0, 0))
    whh_spec = pl.BlockSpec((H, 6 * H), lambda c: (0, 0))
    b3_spec = pl.BlockSpec((1, 3 * H), lambda c: (0, 0))
    b1_spec = pl.BlockSpec((1, H), lambda c: (0, 0))
    fwd_chunk = pl.BlockSpec((CT, BP, H), lambda c: (c, 0, 0))
    bwd_chunk = pl.BlockSpec((CT, BP, H), lambda c: (NC - 1 - c, 0, 0))

    out_f, out_b, hid = pl.pallas_call(
        kernel,
        out_shape=(
            jax.ShapeDtypeStruct((T_pad, BP, H), f32),    # forward outputs
            jax.ShapeDtypeStruct((T_pad, BP, H), f32),    # backward outputs
            jax.ShapeDtypeStruct((2, BP, H), f32),        # final hidden
        ),
        grid=(NC,),
        in_specs=[
            fwd_chunk, bwd_chunk,                  # embedded x: fwd / mirrored bwd chunk
            wih_spec, wih_spec, whh_spec,          # input weights (f, b), fused recurrent weight
            b3_spec, b3_spec, b1_spec, b1_spec,    # folded gi biases, n-gate recurrent biases
        ],
        out_specs=(
            fwd_chunk,
            bwd_chunk,
            pl.BlockSpec((2, BP, H), lambda c: (0, 0, 0)),   # hidden stays resident
        ),
        scratch_shapes=[
            pltpu.VMEM((CT, BP, 3 * H), f32),      # gi forward
            pltpu.VMEM((CT, BP, 3 * H), f32),      # gi backward
            pltpu.VMEM((BP, H), f32),              # h forward carry
            pltpu.VMEM((BP, H), f32),              # h backward carry
        ],
        compiler_params=pltpu.CompilerParams(
            dimension_semantics=("arbitrary",),    # recurrence carried across chunks
            vmem_limit_bytes=int(vmem_bytes),
        ),
    )(x, x, wih_f, wih_b, whh_cat, bgi_f, bgi_b, bhn_f, bhn_b)

    # Direction sum (single lane-dense add), drop time + batch padding.
    outputs = (out_f + out_b)[:T, :B, :]
    hidden = hid[:, :B, :]
    return outputs, hidden


# ----------------------------------------------------------------------------
# Pure-JAX reference with the same bf16 streaming/rounding points.
# ----------------------------------------------------------------------------
def encoder_rnn_reference(input_seqs, params):
    B, T = input_seqs.shape
    V, H = params["emb"].shape
    f32, bf16 = jnp.float32, jnp.bfloat16
    x = jnp.take(params["emb"].astype(bf16),
                 jnp.transpose(input_seqs, (1, 0)), axis=0)   # (T, B, H) bf16

    def run_dir(x_seq, wih, whh, bih, bhh):
        wih_bf = wih.astype(bf16)
        whh_bf = whh.astype(bf16)

        def step(h, x_t):
            gi = jnp.dot(x_t, wih_bf, preferred_element_type=f32) + bih
            gh = jnp.dot(h.astype(bf16), whh_bf, preferred_element_type=f32) + bhh
            r = jax.nn.sigmoid(gi[:, :H] + gh[:, :H])
            z = jax.nn.sigmoid(gi[:, H:2 * H] + gh[:, H:2 * H])
            n = jnp.tanh(gi[:, 2 * H:] + r * gh[:, 2 * H:])
            h_new = (1.0 - z) * n + z * h
            return h_new, h_new

        h_last, hs = lax.scan(step, jnp.zeros((B, H), f32), x_seq)
        return hs, h_last

    hs_f, h_f = run_dir(x, params["wih_f"], params["whh_f"],
                        params["bih_f"], params["bhh_f"])
    hs_b_rev, h_b = run_dir(x[::-1], params["wih_b"], params["whh_b"],
                            params["bih_b"], params["bhh_b"])
    return hs_f + hs_b_rev[::-1], jnp.stack([h_f, h_b], axis=0)


# ----------------------------------------------------------------------------
# Deterministic parameter init (shapes from the module's __init__).
# ----------------------------------------------------------------------------
def init_params(key, input_size, hidden_size):
    V, H = input_size, hidden_size
    k = 1.0 / jnp.sqrt(jnp.float32(H))
    keys = jax.random.split(key, 9)
    uni = lambda kk, shape: jax.random.uniform(kk, shape, jnp.float32, -k, k)
    return {
        "emb": jax.random.normal(keys[0], (V, H), jnp.float32),   # nn.Embedding ~ N(0,1)
        # GRU weights stored transposed (H, 3H), gate order [r|z|n]; biases (1, 3H).
        "wih_f": uni(keys[1], (H, 3 * H)), "whh_f": uni(keys[2], (H, 3 * H)),
        "bih_f": uni(keys[3], (1, 3 * H)), "bhh_f": uni(keys[4], (1, 3 * H)),
        "wih_b": uni(keys[5], (H, 3 * H)), "whh_b": uni(keys[6], (H, 3 * H)),
        "bih_b": uni(keys[7], (1, 3 * H)), "bhh_b": uni(keys[8], (1, 3 * H)),
    }


if __name__ == "__main__":
    INPUT_SIZE = 64     # vocab
    HIDDEN = 128        # lane-dense hidden size (multiple of 128)
    B, T = 2, 8

    key = jax.random.PRNGKey(0)
    pkey, ikey = jax.random.split(key)
    params = init_params(pkey, INPUT_SIZE, HIDDEN)

    input_seqs = jax.random.randint(ikey, (B, T), 0, INPUT_SIZE, dtype=jnp.int32)
    input_lengths = jnp.full((B,), T, dtype=jnp.int32)   # unused (no packing in the module)

    ref_out, ref_hid = encoder_rnn_reference(input_seqs, params)

    # Aligned chunking (T % CT == 0) and ragged chunking (exercises the
    # in-kernel time-padding mask that replaced the CT-divisor fallback).
    for ct in (4, 3):
        outputs, hidden = encoder_rnn_forward(input_seqs, input_lengths, params,
                                              chunk_t=ct)
        outputs = jax.block_until_ready(outputs)
        hidden = jax.block_until_ready(hidden)

        assert outputs.shape == (T, B, HIDDEN), outputs.shape
        assert hidden.shape == (2, B, HIDDEN), hidden.shape
        assert jnp.allclose(outputs, ref_out, atol=5e-3, rtol=5e-3), \
            f"outputs mismatch for chunk_t={ct}"
        assert jnp.allclose(hidden, ref_hid, atol=5e-3, rtol=5e-3), \
            f"hidden mismatch for chunk_t={ct}"

    print("KERNEL_OK")
</pallas_src>

<mosaic_0001>
module attributes {stable_mosaic.version = 11 : i64} {
  func.func @encoder_bigru_kernel(%arg0: i32, %arg1: memref<4x16x128xbf16, #tpu.memory_space<vmem>>, %arg2: memref<4x16x128xbf16, #tpu.memory_space<vmem>>, %arg3: memref<128x384xbf16, #tpu.memory_space<vmem>>, %arg4: memref<128x384xbf16, #tpu.memory_space<vmem>>, %arg5: memref<128x768xbf16, #tpu.memory_space<vmem>>, %arg6: memref<1x384xf32, #tpu.memory_space<vmem>>, %arg7: memref<1x384xf32, #tpu.memory_space<vmem>>, %arg8: memref<1x128xf32, #tpu.memory_space<vmem>>, %arg9: memref<1x128xf32, #tpu.memory_space<vmem>>, %arg10: memref<4x16x128xf32, #tpu.memory_space<vmem>>, %arg11: memref<4x16x128xf32, #tpu.memory_space<vmem>>, %arg12: memref<2x16x128xf32, #tpu.memory_space<vmem>>, %arg13: memref<4x16x384xf32, #tpu.memory_space<vmem>>, %arg14: memref<4x16x384xf32, #tpu.memory_space<vmem>>, %arg15: memref<16x128xf32, #tpu.memory_space<vmem>>, %arg16: memref<16x128xf32, #tpu.memory_space<vmem>>) attributes {dimension_semantics = [#tpu.dimension_semantics<arbitrary>], iteration_bounds = array<i64: 2>, scalar_prefetch = 0 : i64, scratch_operands = 4 : i64, tpu.core_type = #tpu.core_type<tc>, window_params = [{transform_indices = @transform_0, window_bounds = array<i64: 4, 16, 128>}, {transform_indices = @transform_1, window_bounds = array<i64: 4, 16, 128>}, {pipeline_mode = #tpu.pipeline_mode<synchronous>, transform_indices = @transform_2, window_bounds = array<i64: 128, 384>}, {pipeline_mode = #tpu.pipeline_mode<synchronous>, transform_indices = @transform_3, window_bounds = array<i64: 128, 384>}, {pipeline_mode = #tpu.pipeline_mode<synchronous>, transform_indices = @transform_4, window_bounds = array<i64: 128, 768>}, {pipeline_mode = #tpu.pipeline_mode<synchronous>, transform_indices = @transform_5, window_bounds = array<i64: 1, 384>}, {pipeline_mode = #tpu.pipeline_mode<synchronous>, transform_indices = @transform_6, window_bounds = array<i64: 1, 384>}, {pipeline_mode = #tpu.pipeline_mode<synchronous>, transform_indices = @transform_7, window_bounds = array<i64: 1, 128>}, {pipeline_mode = #tpu.pipeline_mode<synchronous>, transform_indices = @transform_8, window_bounds = array<i64: 1, 128>}, {transform_indices = @transform_9, window_bounds = array<i64: 4, 16, 128>}, {transform_indices = @transform_10, window_bounds = array<i64: 4, 16, 128>}, {pipeline_mode = #tpu.pipeline_mode<synchronous>, transform_indices = @transform_11, window_bounds = array<i64: 2, 16, 128>}]} {
    %c0_i32 = arith.constant 0 : i32
    %0 = arith.cmpi eq, %arg0, %c0_i32 : i32
    %1 = arith.extui %0 : i1 to i32
    %c0_i32_0 = arith.constant 0 : i32
    %2 = arith.cmpi ne, %1, %c0_i32_0 : i32
    scf.if %2 {
      %cst_112 = arith.constant 0.000000e+00 : f32
      %338 = vector.broadcast %cst_112 : f32 to vector<16x128xf32>
      %c0_113 = arith.constant 0 : index
      %c0_114 = arith.constant 0 : index
      %339 = vector.load %arg15[%c0_113, %c0_114] : memref<16x128xf32, #tpu.memory_space<vmem>>, vector<16x128xf32>
      tpu.vector_store %arg15[%c0_113, %c0_114], %338 {strides = array<i32>} : memref<16x128xf32, #tpu.memory_space<vmem>>, vector<16x128xf32>,
      %cst_115 = arith.constant 0.000000e+00 : f32
      %340 = vector.broadcast %cst_115 : f32 to vector<16x128xf32>
      %c0_116 = arith.constant 0 : index
      %c0_117 = arith.constant 0 : index
      %341 = vector.load %arg16[%c0_116, %c0_117] : memref<16x128xf32, #tpu.memory_space<vmem>>, vector<16x128xf32>
      tpu.vector_store %arg16[%c0_116, %c0_117], %340 {strides = array<i32>} : memref<16x128xf32, #tpu.memory_space<vmem>>, vector<16x128xf32>,
    } else {
    }
    %c0 = arith.constant 0 : index
    %c0_1 = arith.constant 0 : index
    %c0_2 = arith.constant 0 : index
    %3 = vector.load %arg1[%c0, %c0_1, %c0_2] : memref<4x16x128xbf16, #tpu.memory_space<vmem>>, vector<4x16x128xbf16>
    %4 = vector.shape_cast %3 : vector<4x16x128xbf16> to vector<64x128xbf16>
    %c0_3 = arith.constant 0 : index
    %c0_4 = arith.constant 0 : index
    %c0_5 = arith.constant 0 : index
    %5 = vector.load %arg2[%c0_3, %c0_4, %c0_5] : memref<4x16x128xbf16, #tpu.memory_space<vmem>>, vector<4x16x128xbf16>
    %6 = vector.shape_cast %5 : vector<4x16x128xbf16> to vector<64x128xbf16>
    %c0_6 = arith.constant 0 : index
    %c0_7 = arith.constant 0 : index
    %7 = vector.load %arg3[%c0_6, %c0_7] : memref<128x384xbf16, #tpu.memory_space<vmem>>, vector<128x384xbf16>
    %cst = arith.constant dense<0.000000e+00> : vector<64x384xf32>
    %8 = tpu.matmul %4, %7, %cst {dimension_numbers = #tpu.dot_dimension_numbers<[1], [0], [0], [1], [0, 0, 1, 1], [], []>} : vector<64x128xbf16>, vector<128x384xbf16>, vector<64x384xf32> -> vector<64x384xf32>
    %c0_8 = arith.constant 0 : index
    %c0_9 = arith.constant 0 : index
    %9 = vector.load %arg6[%c0_8, %c0_9] : memref<1x384xf32, #tpu.memory_space<vmem>>, vector<1x384xf32>
    %10 = vector.broadcast %9 : vector<1x384xf32> to vector<64x384xf32>
    %11 = arith.addf %8, %10 : vector<64x384xf32>
    %12 = vector.shape_cast %11 : vector<64x384xf32> to vector<4x16x384xf32>
    %c0_10 = arith.constant 0 : index
    %c0_11 = arith.constant 0 : index
    %c0_12 = arith.constant 0 : index
    %13 = vector.load %arg13[%c0_10, %c0_11, %c0_12] : memref<4x16x384xf32, #tpu.memory_space<vmem>>, vector<4x16x384xf32>
    tpu.vector_store %arg13[%c0_10, %c0_11, %c0_12], %12 {strides = array<i32>} : memref<4x16x384xf32, #tpu.memory_space<vmem>>, vector<4x16x384xf32>,
    %c0_13 = arith.constant 0 : index
    %c0_14 = arith.constant 0 : index
    %14 = vector.load %arg4[%c0_13, %c0_14] : memref<128x384xbf16, #tpu.memory_space<vmem>>, vector<128x384xbf16>
    %cst_15 = arith.constant dense<0.000000e+00> : vector<64x384xf32>
    %15 = tpu.matmul %6, %14, %cst_15 {dimension_numbers = #tpu.dot_dimension_numbers<[1], [0], [0], [1], [0, 0, 1, 1], [], []>} : vector<64x128xbf16>, vector<128x384xbf16>, vector<64x384xf32> -> vector<64x384xf32>
    %c0_16 = arith.constant 0 : index
    %c0_17 = arith.constant 0 : index
    %16 = vector.load %arg7[%c0_16, %c0_17] : memref<1x384xf32, #tpu.memory_space<vmem>>, vector<1x384xf32>
    %17 = vector.broadcast %16 : vector<1x384xf32> to vector<64x384xf32>
    %18 = arith.addf %15, %17 : vector<64x384xf32>
    %19 = vector.shape_cast %18 : vector<64x384xf32> to vector<4x16x384xf32>
    %c0_18 = arith.constant 0 : index
    %c0_19 = arith.constant 0 : index
    %c0_20 = arith.constant 0 : index
    %20 = vector.load %arg14[%c0_18, %c0_19, %c0_20] : memref<4x16x384xf32, #tpu.memory_space<vmem>>, vector<4x16x384xf32>
    tpu.vector_store %arg14[%c0_18, %c0_19, %c0_20], %19 {strides = array<i32>} : memref<4x16x384xf32, #tpu.memory_space<vmem>>, vector<4x16x384xf32>,
    %c0_21 = arith.constant 0 : index
    %c0_22 = arith.constant 0 : index
    %21 = vector.load %arg8[%c0_21, %c0_22] : memref<1x128xf32, #tpu.memory_space<vmem>>, vector<1x128xf32>
    %22 = vector.shape_cast %21 : vector<1x128xf32> to vector<1x128xf32>
    %23 = vector.broadcast %22 : vector<1x128xf32> to vector<16x128xf32>
    %c0_23 = arith.constant 0 : index
    %c0_24 = arith.constant 0 : index
    %24 = vector.load %arg9[%c0_23, %c0_24] : memref<1x128xf32, #tpu.memory_space<vmem>>, vector<1x128xf32>
    %25 = vector.shape_cast %24 : vector<1x128xf32> to vector<1x128xf32>
    %26 = vector.broadcast %25 : vector<1x128xf32> to vector<16x128xf32>
    %c0_25 = arith.constant 0 : index
    %c0_26 = arith.constant 0 : index
    %27 = vector.load %arg15[%c0_25, %c0_26] : memref<16x128xf32, #tpu.memory_space<vmem>>, vector<16x128xf32>
    %c0_27 = arith.constant 0 : index
    %c0_28 = arith.constant 0 : index
    %28 = vector.load %arg16[%c0_27, %c0_28] : memref<16x128xf32, #tpu.memory_space<vmem>>, vector<16x128xf32>
    %c0_i32_29 = arith.constant 0 : i32
    %29 = arith.index_cast %c0_i32_29 : i32 to index
    %c0_30 = arith.constant 0 : index
    %c0_31 = arith.constant 0 : index
    %30 = vector.load %arg13[%29, %c0_30, %c0_31] : memref<4x16x384xf32, #tpu.memory_space<vmem>>, vector<1x16x384xf32>
    %31 = vector.shape_cast %30 : vector<1x16x384xf32> to vector<16x384xf32>
    %c3_i32 = arith.constant 3 : i32
    %32 = arith.subi %c3_i32, %c0_i32_29 : i32
    %33 = arith.index_cast %32 : i32 to index
    %c0_32 = arith.constant 0 : index
    %c0_33 = arith.constant 0 : index
    %34 = vector.load %arg14[%33, %c0_32, %c0_33] : memref<4x16x384xf32, #tpu.memory_space<vmem>>, vector<1x16x384xf32>
    %35 = vector.shape_cast %34 : vector<1x16x384xf32> to vector<16x384xf32>
    %36 = tpu.concatenate %27, %28 in 0 : vector<16x128xf32>, vector<16x128xf32> -> vector<32x128xf32>
    %37 = arith.truncf %36 : vector<32x128xf32> to vector<32x128xbf16>
    %c0_34 = arith.constant 0 : index
    %c0_35 = arith.constant 0 : index
    %38 = vector.load %arg5[%c0_34, %c0_35] : memref<128x768xbf16, #tpu.memory_space<vmem>>, vector<128x768xbf16>
    %cst_36 = arith.constant dense<0.000000e+00> : vector<32x768xf32>
    %39 = tpu.matmul %37, %38, %cst_36 {dimension_numbers = #tpu.dot_dimension_numbers<[1], [0], [0], [1], [0, 0, 1, 1], [], []>} : vector<32x128xbf16>, vector<128x768xbf16>, vector<32x768xf32> -> vector<32x768xf32>
    %40 = vector.extract_strided_slice %39 {offsets = [0, 0], sizes = [16, 384], strides = [1, 1]} : vector<32x768xf32> to vector<16x384xf32>
    %41 = vector.extract_strided_slice %39 {offsets = [16, 384], sizes = [16, 384], strides = [1, 1]} : vector<32x768xf32> to vector<16x384xf32>
    %42 = vector.extract_strided_slice %31 {offsets = [0, 0], sizes = [16, 128], strides = [1, 1]} : vector<16x384xf32> to vector<16x128xf32>
    %43 = vector.extract_strided_slice %40 {offsets = [0, 0], sizes = [16, 128], strides = [1, 1]} : vector<16x384xf32> to vector<16x128xf32>
    %44 = arith.addf %42, %43 : vector<16x128xf32>
    %45 = arith.negf %44 : vector<16x128xf32>
    %46 = math.exp %45 : vector<16x128xf32>
    %cst_37 = arith.constant 1.000000e+00 : f32
    %47 = vector.broadcast %cst_37 : f32 to vector<16x128xf32>
    %48 = arith.addf %47, %46 : vector<16x128xf32>
    %49 = arith.divf %47, %48 : vector<16x128xf32>
    %50 = vector.extract_strided_slice %31 {offsets = [0, 128], sizes = [16, 128], strides = [1, 1]} : vector<16x384xf32> to vector<16x128xf32>
    %51 = vector.extract_strided_slice %40 {offsets = [0, 128], sizes = [16, 128], strides = [1, 1]} : vector<16x384xf32> to vector<16x128xf32>
    %52 = arith.addf %50, %51 : vector<16x128xf32>
    %53 = arith.negf %52 : vector<16x128xf32>
    %54 = math.exp %53 : vector<16x128xf32>
    %cst_38 = arith.constant 1.000000e+00 : f32
    %55 = vector.broadcast %cst_38 : f32 to vector<16x128xf32>
    %56 = arith.addf %55, %54 : vector<16x128xf32>
    %57 = arith.divf %55, %56 : vector<16x128xf32>
    %58 = vector.extract_strided_slice %31 {offsets = [0, 256], sizes = [16, 128], strides = [1, 1]} : vector<16x384xf32> to vector<16x128xf32>
    %59 = vector.extract_strided_slice %40 {offsets = [0, 256], sizes = [16, 128], strides = [1, 1]} : vector<16x384xf32> to vector<16x128xf32>
    %60 = arith.addf %59, %23 : vector<16x128xf32>
    %61 = arith.mulf %49, %60 : vector<16x128xf32>
    %62 = arith.addf %58, %61 : vector<16x128xf32>
    %63 = math.tanh %62 : vector<16x128xf32>
    %cst_39 = arith.constant 1.000000e+00 : f32
    %64 = vector.broadcast %cst_39 : f32 to vector<16x128xf32>
    %65 = arith.subf %64, %57 : vector<16x128xf32>
    %66 = arith.mulf %65, %63 : vector<16x128xf32>
    %67 = arith.mulf %57, %27 : vector<16x128xf32>
    %68 = arith.addf %66, %67 : vector<16x128xf32>
    %69 = vector.extract_strided_slice %35 {offsets = [0, 0], sizes = [16, 128], strides = [1, 1]} : vector<16x384xf32> to vector<16x128xf32>
    %70 = vector.extract_strided_slice %41 {offsets = [0, 0], sizes = [16, 128], strides = [1, 1]} : vector<16x384xf32> to vector<16x128xf32>
    %71 = arith.addf %69, %70 : vector<16x128xf32>
    %72 = arith.negf %71 : vector<16x128xf32>
    %73 = math.exp %72 : vector<16x128xf32>
    %cst_40 = arith.constant 1.000000e+00 : f32
    %74 = vector.broadcast %cst_40 : f32 to vector<16x128xf32>
    %75 = arith.addf %74, %73 : vector<16x128xf32>
    %76 = arith.divf %74, %75 : vector<16x128xf32>
    %77 = vector.extract_strided_slice %35 {offsets = [0, 128], sizes = [16, 128], strides = [1, 1]} : vector<16x384xf32> to vector<16x128xf32>
    %78 = vector.extract_strided_slice %41 {offsets = [0, 128], sizes = [16, 128], strides = [1, 1]} : vector<16x384xf32> to vector<16x128xf32>
    %79 = arith.addf %77, %78 : vector<16x128xf32>
    %80 = arith.negf %79 : vector<16x128xf32>
    %81 = math.exp %80 : vector<16x128xf32>
    %cst_41 = arith.constant 1.000000e+00 : f32
    %82 = vector.broadcast %cst_41 : f32 to vector<16x128xf32>
    %83 = arith.addf %82, %81 : vector<16x128xf32>
    %84 = arith.divf %82, %83 : vector<16x128xf32>
    %85 = vector.extract_strided_slice %35 {offsets = [0, 256], sizes = [16, 128], strides = [1, 1]} : vector<16x384xf32> to vector<16x128xf32>
    %86 = vector.extract_strided_slice %41 {offsets = [0, 256], sizes = [16, 128], strides = [1, 1]} : vector<16x384xf32> to vector<16x128xf32>
    %87 = arith.addf %86, %26 : vector<16x128xf32>
    %88 = arith.mulf %76, %87 : vector<16x128xf32>
    %89 = arith.addf %85, %88 : vector<16x128xf32>
    %90 = math.tanh %89 : vector<16x128xf32>
    %cst_42 = arith.constant 1.000000e+00 : f32
    %91 = vector.broadcast %cst_42 : f32 to vector<16x128xf32>
    %92 = arith.subf %91, %84 : vector<16x128xf32>
    %93 = arith.mulf %92, %90 : vector<16x128xf32>
    %94 = arith.mulf %84, %28 : vector<16x128xf32>
    %95 = arith.addf %93, %94 : vector<16x128xf32>
    %96 = arith.index_cast %c0_i32_29 : i32 to index
    %c0_43 = arith.constant 0 : index
    %c0_44 = arith.constant 0 : index
    %97 = vector.load %arg10[%96, %c0_43, %c0_44] : memref<4x16x128xf32, #tpu.memory_space<vmem>>, vector<1x16x128xf32>
    %98 = vector.shape_cast %97 : vector<1x16x128xf32> to vector<16x128xf32>
    %99 = vector.shape_cast %68 : vector<16x128xf32> to vector<1x16x128xf32>
    tpu.vector_store %arg10[%96, %c0_43, %c0_44], %99 {strides = array<i32>} : memref<4x16x128xf32, #tpu.memory_space<vmem>>, vector<1x16x128xf32>,
    %c3_i32_45 = arith.constant 3 : i32
    %100 = arith.subi %c3_i32_45, %c0_i32_29 : i32
    %101 = arith.index_cast %100 : i32 to index
    %c0_46 = arith.constant 0 : index
    %c0_47 = arith.constant 0 : index
    %102 = vector.load %arg11[%101, %c0_46, %c0_47] : memref<4x16x128xf32, #tpu.memory_space<vmem>>, vector<1x16x128xf32>
    %103 = vector.shape_cast %102 : vector<1x16x128xf32> to vector<16x128xf32>
    %104 = vector.shape_cast %95 : vector<16x128xf32> to vector<1x16x128xf32>
    tpu.vector_store %arg11[%101, %c0_46, %c0_47], %104 {strides = array<i32>} : memref<4x16x128xf32, #tpu.memory_space<vmem>>, vector<1x16x128xf32>,
    %c1_i32 = arith.constant 1 : i32
    %105 = arith.index_cast %c1_i32 : i32 to index
    %c0_48 = arith.constant 0 : index
    %c0_49 = arith.constant 0 : index
    %106 = vector.load %arg13[%105, %c0_48, %c0_49] : memref<4x16x384xf32, #tpu.memory_space<vmem>>, vector<1x16x384xf32>
    %107 = vector.shape_cast %106 : vector<1x16x384xf32> to vector<16x384xf32>
    %c3_i32_50 = arith.constant 3 : i32
    %108 = arith.subi %c3_i32_50, %c1_i32 : i32
    %109 = arith.index_cast %108 : i32 to index
    %c0_51 = arith.constant 0 : index
    %c0_52 = arith.constant 0 : index
    %110 = vector.load %arg14[%109, %c0_51, %c0_52] : memref<4x16x384xf32, #tpu.memory_space<vmem>>, vector<1x16x384xf32>
    %111 = vector.shape_cast %110 : vector<1x16x384xf32> to vector<16x384xf32>
    %112 = tpu.concatenate %68, %95 in 0 : vector<16x128xf32>, vector<16x128xf32> -> vector<32x128xf32>
    %113 = arith.truncf %112 : vector<32x128xf32> to vector<32x128xbf16>
    %c0_53 = arith.constant 0 : index
    %c0_54 = arith.constant 0 : index
    %114 = vector.load %arg5[%c0_53, %c0_54] : memref<128x768xbf16, #tpu.memory_space<vmem>>, vector<128x768xbf16>
    %cst_55 = arith.constant dense<0.000000e+00> : vector<32x768xf32>
    %115 = tpu.matmul %113, %114, %cst_55 {dimension_numbers = #tpu.dot_dimension_numbers<[1], [0], [0], [1], [0, 0, 1, 1], [], []>} : vector<32x128xbf16>, vector<128x768xbf16>, vector<32x768xf32> -> vector<32x768xf32>
    %116 = vector.extract_strided_slice %115 {offsets = [0, 0], sizes = [16, 384], strides = [1, 1]} : vector<32x768xf32> to vector<16x384xf32>
    %117 = vector.extract_strided_slice %115 {offsets = [16, 384], sizes = [16, 384], strides = [1, 1]} : vector<32x768xf32> to vector<16x384xf32>
    %118 = vector.extract_strided_slice %107 {offsets = [0, 0], sizes = [16, 128], strides = [1, 1]} : vector<16x384xf32> to vector<16x128xf32>
    %119 = vector.extract_strided_slice %116 {offsets = [0, 0], sizes = [16, 128], strides = [1, 1]} : vector<16x384xf32> to vector<16x128xf32>
    %120 = arith.addf %118, %119 : vector<16x128xf32>
    %121 = arith.negf %120 : vector<16x128xf32>
    %122 = math.exp %121 : vector<16x128xf32>
    %cst_56 = arith.constant 1.000000e+00 : f32
    %123 = vector.broadcast %cst_56 : f32 to vector<16x128xf32>
    %124 = arith.addf %123, %122 : vector<16x128xf32>
    %125 = arith.divf %123, %124 : vector<16x128xf32>
    %126 = vector.extract_strided_slice %107 {offsets = [0, 128], sizes = [16, 128], strides = [1, 1]} : vector<16x384xf32> to vector<16x128xf32>
    %127 = vector.extract_strided_slice %116 {offsets = [0, 128], sizes = [16, 128], strides = [1, 1]} : vector<16x384xf32> to vector<16x128xf32>
    %128 = arith.addf %126, %127 : vector<16x128xf32>
    %129 = arith.negf %128 : vector<16x128xf32>
    %130 = math.exp %129 : vector<16x128xf32>
    %cst_57 = arith.constant 1.000000e+00 : f32
    %131 = vector.broadcast %cst_57 : f32 to vector<16x128xf32>
    %132 = arith.addf %131, %130 : vector<16x128xf32>
    %133 = arith.divf %131, %132 : vector<16x128xf32>
    %134 = vector.extract_strided_slice %107 {offsets = [0, 256], sizes = [16, 128], strides = [1, 1]} : vector<16x384xf32> to vector<16x128xf32>
    %135 = vector.extract_strided_slice %116 {offsets = [0, 256], sizes = [16, 128], strides = [1, 1]} : vector<16x384xf32> to vector<16x128xf32>
    %136 = arith.addf %135, %23 : vector<16x128xf32>
    %137 = arith.mulf %125, %136 : vector<16x128xf32>
    %138 = arith.addf %134, %137 : vector<16x128xf32>
    %139 = math.tanh %138 : vector<16x128xf32>
    %cst_58 = arith.constant 1.000000e+00 : f32
    %140 = vector.broadcast %cst_58 : f32 to vector<16x128xf32>
    %141 = arith.subf %140, %133 : vector<16x128xf32>
    %142 = arith.mulf %141, %139 : vector<16x128xf32>
    %143 = arith.mulf %133, %68 : vector<16x128xf32>
    %144 = arith.addf %142, %143 : vector<16x128xf32>
    %145 = vector.extract_strided_slice %111 {offsets = [0, 0], sizes = [16, 128], strides = [1, 1]} : vector<16x384xf32> to vector<16x128xf32>
    %146 = vector.extract_strided_slice %117 {offsets = [0, 0], sizes = [16, 128], strides = [1, 1]} : vector<16x384xf32> to vector<16x128xf32>
    %147 = arith.addf %145, %146 : vector<16x128xf32>
    %148 = arith.negf %147 : vector<16x128xf32>
    %149 = math.exp %148 : vector<16x128xf32>
    %cst_59 = arith.constant 1.000000e+00 : f32
    %150 = vector.broadcast %cst_59 : f32 to vector<16x128xf32>
    %151 = arith.addf %150, %149 : vector<16x128xf32>
    %152 = arith.divf %150, %151 : vector<16x128xf32>
    %153 = vector.extract_strided_slice %111 {offsets = [0, 128], sizes = [16, 128], strides = [1, 1]} : vector<16x384xf32> to vector<16x128xf32>
    %154 = vector.extract_strided_slice %117 {offsets = [0, 128], sizes = [16, 128], strides = [1, 1]} : vector<16x384xf32> to vector<16x128xf32>
    %155 = arith.addf %153, %154 : vector<16x128xf32>
    %156 = arith.negf %155 : vector<16x128xf32>
    %157 = math.exp %156 : vector<16x128xf32>
    %cst_60 = arith.constant 1.000000e+00 : f32
    %158 = vector.broadcast %cst_60 : f32 to vector<16x128xf32>
    %159 = arith.addf %158, %157 : vector<16x128xf32>
    %160 = arith.divf %158, %159 : vector<16x128xf32>
    %161 = vector.extract_strided_slice %111 {offsets = [0, 256], sizes = [16, 128], strides = [1, 1]} : vector<16x384xf32> to vector<16x128xf32>
    %162 = vector.extract_strided_slice %117 {offsets = [0, 256], sizes = [16, 128], strides = [1, 1]} : vector<16x384xf32> to vector<16x128xf32>
    %163 = arith.addf %162, %26 : vector<16x128xf32>
    %164 = arith.mulf %152, %163 : vector<16x128xf32>
    %165 = arith.addf %161, %164 : vector<16x128xf32>
    %166 = math.tanh %165 : vector<16x128xf32>
    %cst_61 = arith.constant 1.000000e+00 : f32
    %167 = vector.broadcast %cst_61 : f32 to vector<16x128xf32>
    %168 = arith.subf %167, %160 : vector<16x128xf32>
    %169 = arith.mulf %168, %166 : vector<16x128xf32>
    %170 = arith.mulf %160, %95 : vector<16x128xf32>
    %171 = arith.addf %169, %170 : vector<16x128xf32>
    %172 = arith.index_cast %c1_i32 : i32 to index
    %c0_62 = arith.constant 0 : index
    %c0_63 = arith.constant 0 : index
    %173 = vector.load %arg10[%172, %c0_62, %c0_63] : memref<4x16x128xf32, #tpu.memory_space<vmem>>, vector<1x16x128xf32>
    %174 = vector.shape_cast %173 : vector<1x16x128xf32> to vector<16x128xf32>
    %175 = vector.shape_cast %144 : vector<16x128xf32> to vector<1x16x128xf32>
    tpu.vector_store %arg10[%172, %c0_62, %c0_63], %175 {strides = array<i32>} : memref<4x16x128xf32, #tpu.memory_space<vmem>>, vector<1x16x128xf32>,
    %c3_i32_64 = arith.constant 3 : i32
    %176 = arith.subi %c3_i32_64, %c1_i32 : i32
    %177 = arith.index_cast %176 : i32 to index
    %c0_65 = arith.constant 0 : index
    %c0_66 = arith.constant 0 : index
    %178 = vector.load %arg11[%177, %c0_65, %c0_66] : memref<4x16x128xf32, #tpu.memory_space<vmem>>, vector<1x16x128xf32>
    %179 = vector.shape_cast %178 : vector<1x16x128xf32> to vector<16x128xf32>
    %180 = vector.shape_cast %171 : vector<16x128xf32> to vector<1x16x128xf32>
    tpu.vector_store %arg11[%177, %c0_65, %c0_66], %180 {strides = array<i32>} : memref<4x16x128xf32, #tpu.memory_space<vmem>>, vector<1x16x128xf32>,
    %c2_i32 = arith.constant 2 : i32
    %181 = arith.index_cast %c2_i32 : i32 to index
    %c0_67 = arith.constant 0 : index
    %c0_68 = arith.constant 0 : index
    %182 = vector.load %arg13[%181, %c0_67, %c0_68] : memref<4x16x384xf32, #tpu.memory_space<vmem>>, vector<1x16x384xf32>
    %183 = vector.shape_cast %182 : vector<1x16x384xf32> to vector<16x384xf32>
    %c3_i32_69 = arith.constant 3 : i32
    %184 = arith.subi %c3_i32_69, %c2_i32 : i32
    %185 = arith.index_cast %184 : i32 to index
    %c0_70 = arith.constant 0 : index
    %c0_71 = arith.constant 0 : index
    %186 = vector.load %arg14[%185, %c0_70, %c0_71] : memref<4x16x384xf32, #tpu.memory_space<vmem>>, vector<1x16x384xf32>
    %187 = vector.shape_cast %186 : vector<1x16x384xf32> to vector<16x384xf32>
    %188 = tpu.concatenate %144, %171 in 0 : vector<16x128xf32>, vector<16x128xf32> -> vector<32x128xf32>
    %189 = arith.truncf %188 : vector<32x128xf32> to vector<32x128xbf16>
    %c0_72 = arith.constant 0 : index
    %c0_73 = arith.constant 0 : index
    %190 = vector.load %arg5[%c0_72, %c0_73] : memref<128x768xbf16, #tpu.memory_space<vmem>>, vector<128x768xbf16>
    %cst_74 = arith.constant dense<0.000000e+00> : vector<32x768xf32>
    %191 = tpu.matmul %189, %190, %cst_74 {dimension_numbers = #tpu.dot_dimension_numbers<[1], [0], [0], [1], [0, 0, 1, 1], [], []>} : vector<32x128xbf16>, vector<128x768xbf16>, vector<32x768xf32> -> vector<32x768xf32>
    %192 = vector.extract_strided_slice %191 {offsets = [0, 0], sizes = [16, 384], strides = [1, 1]} : vector<32x768xf32> to vector<16x384xf32>
    %193 = vector.extract_strided_slice %191 {offsets = [16, 384], sizes = [16, 384], strides = [1, 1]} : vector<32x768xf32> to vector<16x384xf32>
    %194 = vector.extract_strided_slice %183 {offsets = [0, 0], sizes = [16, 128], strides = [1, 1]} : vector<16x384xf32> to vector<16x128xf32>
    %195 = vector.extract_strided_slice %192 {offsets = [0, 0], sizes = [16, 128], strides = [1, 1]} : vector<16x384xf32> to vector<16x128xf32>
    %196 = arith.addf %194, %195 : vector<16x128xf32>
    %197 = arith.negf %196 : vector<16x128xf32>
    %198 = math.exp %197 : vector<16x128xf32>
    %cst_75 = arith.constant 1.000000e+00 : f32
    %199 = vector.broadcast %cst_75 : f32 to vector<16x128xf32>
    %200 = arith.addf %199, %198 : vector<16x128xf32>
    %201 = arith.divf %199, %200 : vector<16x128xf32>
    %202 = vector.extract_strided_slice %183 {offsets = [0, 128], sizes = [16, 128], strides = [1, 1]} : vector<16x384xf32> to vector<16x128xf32>
    %203 = vector.extract_strided_slice %192 {offsets = [0, 128], sizes = [16, 128], strides = [1, 1]} : vector<16x384xf32> to vector<16x128xf32>
    %204 = arith.addf %202, %203 : vector<16x128xf32>
    %205 = arith.negf %204 : vector<16x128xf32>
    %206 = math.exp %205 : vector<16x128xf32>
    %cst_76 = arith.constant 1.000000e+00 : f32
    %207 = vector.broadcast %cst_76 : f32 to vector<16x128xf32>
    %208 = arith.addf %207, %206 : vector<16x128xf32>
    %209 = arith.divf %207, %208 : vector<16x128xf32>
    %210 = vector.extract_strided_slice %183 {offsets = [0, 256], sizes = [16, 128], strides = [1, 1]} : vector<16x384xf32> to vector<16x128xf32>
    %211 = vector.extract_strided_slice %192 {offsets = [0, 256], sizes = [16, 128], strides = [1, 1]} : vector<16x384xf32> to vector<16x128xf32>
    %212 = arith.addf %211, %23 : vector<16x128xf32>
    %213 = arith.mulf %201, %212 : vector<16x128xf32>
    %214 = arith.addf %210, %213 : vector<16x128xf32>
    %215 = math.tanh %214 : vector<16x128xf32>
    %cst_77 = arith.constant 1.000000e+00 : f32
    %216 = vector.broadcast %cst_77 : f32 to vector<16x128xf32>
    %217 = arith.subf %216, %209 : vector<16x128xf32>
    %218 = arith.mulf %217, %215 : vector<16x128xf32>
    %219 = arith.mulf %209, %144 : vector<16x128xf32>
    %220 = arith.addf %218, %219 : vector<16x128xf32>
    %221 = vector.extract_strided_slice %187 {offsets = [0, 0], sizes = [16, 128], strides = [1, 1]} : vector<16x384xf32> to vector<16x128xf32>
    %222 = vector.extract_strided_slice %193 {offsets = [0, 0], sizes = [16, 128], strides = [1, 1]} : vector<16x384xf32> to vector<16x128xf32>
    %223 = arith.addf %221, %222 : vector<16x128xf32>
    %224 = arith.negf %223 : vector<16x128xf32>
    %225 = math.exp %224 : vector<16x128xf32>
    %cst_78 = arith.constant 1.000000e+00 : f32
    %226 = vector.broadcast %cst_78 : f32 to vector<16x128xf32>
    %227 = arith.addf %226, %225 : vector<16x128xf32>
    %228 = arith.divf %226, %227 : vector<16x128xf32>
    %229 = vector.extract_strided_slice %187 {offsets = [0, 128], sizes = [16, 128], strides = [1, 1]} : vector<16x384xf32> to vector<16x128xf32>
    %230 = vector.extract_strided_slice %193 {offsets = [0, 128], sizes = [16, 128], strides = [1, 1]} : vector<16x384xf32> to vector<16x128xf32>
    %231 = arith.addf %229, %230 : vector<16x128xf32>
    %232 = arith.negf %231 : vector<16x128xf32>
    %233 = math.exp %232 : vector<16x128xf32>
    %cst_79 = arith.constant 1.000000e+00 : f32
    %234 = vector.broadcast %cst_79 : f32 to vector<16x128xf32>
    %235 = arith.addf %234, %233 : vector<16x128xf32>
    %236 = arith.divf %234, %235 : vector<16x128xf32>
    %237 = vector.extract_strided_slice %187 {offsets = [0, 256], sizes = [16, 128], strides = [1, 1]} : vector<16x384xf32> to vector<16x128xf32>
    %238 = vector.extract_strided_slice %193 {offsets = [0, 256], sizes = [16, 128], strides = [1, 1]} : vector<16x384xf32> to vector<16x128xf32>
    %239 = arith.addf %238, %26 : vector<16x128xf32>
    %240 = arith.mulf %228, %239 : vector<16x128xf32>
    %241 = arith.addf %237, %240 : vector<16x128xf32>
    %242 = math.tanh %241 : vector<16x128xf32>
    %cst_80 = arith.constant 1.000000e+00 : f32
    %243 = vector.broadcast %cst_80 : f32 to vector<16x128xf32>
    %244 = arith.subf %243, %236 : vector<16x128xf32>
    %245 = arith.mulf %244, %242 : vector<16x128xf32>
    %246 = arith.mulf %236, %171 : vector<16x128xf32>
    %247 = arith.addf %245, %246 : vector<16x128xf32>
    %248 = arith.index_cast %c2_i32 : i32 to index
    %c0_81 = arith.constant 0 : index
    %c0_82 = arith.constant 0 : index
    %249 = vector.load %arg10[%248, %c0_81, %c0_82] : memref<4x16x128xf32, #tpu.memory_space<vmem>>, vector<1x16x128xf32>
    %250 = vector.shape_cast %249 : vector<1x16x128xf32> to vector<16x128xf32>
    %251 = vector.shape_cast %220 : vector<16x128xf32> to vector<1x16x128xf32>
    tpu.vector_store %arg10[%248, %c0_81, %c0_82], %251 {strides = array<i32>} : memref<4x16x128xf32, #tpu.memory_space<vmem>>, vector<1x16x128xf32>,
    %c3_i32_83 = arith.constant 3 : i32
    %252 = arith.subi %c3_i32_83, %c2_i32 : i32
    %253 = arith.index_cast %252 : i32 to index
    %c0_84 = arith.constant 0 : index
    %c0_85 = arith.constant 0 : index
    %254 = vector.load %arg11[%253, %c0_84, %c0_85] : memref<4x16x128xf32, #tpu.memory_space<vmem>>, vector<1x16x128xf32>
    %255 = vector.shape_cast %254 : vector<1x16x128xf32> to vector<16x128xf32>
    %256 = vector.shape_cast %247 : vector<16x128xf32> to vector<1x16x128xf32>
    tpu.vector_store %arg11[%253, %c0_84, %c0_85], %256 {strides = array<i32>} : memref<4x16x128xf32, #tpu.memory_space<vmem>>, vector<1x16x128xf32>,
    %c3_i32_86 = arith.constant 3 : i32
    %257 = arith.index_cast %c3_i32_86 : i32 to index
    %c0_87 = arith.constant 0 : index
    %c0_88 = arith.constant 0 : index
    %258 = vector.load %arg13[%257, %c0_87, %c0_88] : memref<4x16x384xf32, #tpu.memory_space<vmem>>, vector<1x16x384xf32>
    %259 = vector.shape_cast %258 : vector<1x16x384xf32> to vector<16x384xf32>
    %c3_i32_89 = arith.constant 3 : i32
    %260 = arith.subi %c3_i32_89, %c3_i32_86 : i32
    %261 = arith.index_cast %260 : i32 to index
    %c0_90 = arith.constant 0 : index
    %c0_91 = arith.constant 0 : index
    %262 = vector.load %arg14[%261, %c0_90, %c0_91] : memref<4x16x384xf32, #tpu.memory_space<vmem>>, vector<1x16x384xf32>
    %263 = vector.shape_cast %262 : vector<1x16x384xf32> to vector<16x384xf32>
    %264 = tpu.concatenate %220, %247 in 0 : vector<16x128xf32>, vector<16x128xf32> -> vector<32x128xf32>
    %265 = arith.truncf %264 : vector<32x128xf32> to vector<32x128xbf16>
    %c0_92 = arith.constant 0 : index
    %c0_93 = arith.constant 0 : index
    %266 = vector.load %arg5[%c0_92, %c0_93] : memref<128x768xbf16, #tpu.memory_space<vmem>>, vector<128x768xbf16>
    %cst_94 = arith.constant dense<0.000000e+00> : vector<32x768xf32>
    %267 = tpu.matmul %265, %266, %cst_94 {dimension_numbers = #tpu.dot_dimension_numbers<[1], [0], [0], [1], [0, 0, 1, 1], [], []>} : vector<32x128xbf16>, vector<128x768xbf16>, vector<32x768xf32> -> vector<32x768xf32>
    %268 = vector.extract_strided_slice %267 {offsets = [0, 0], sizes = [16, 384], strides = [1, 1]} : vector<32x768xf32> to vector<16x384xf32>
    %269 = vector.extract_strided_slice %267 {offsets = [16, 384], sizes = [16, 384], strides = [1, 1]} : vector<32x768xf32> to vector<16x384xf32>
    %270 = vector.extract_strided_slice %259 {offsets = [0, 0], sizes = [16, 128], strides = [1, 1]} : vector<16x384xf32> to vector<16x128xf32>
    %271 = vector.extract_strided_slice %268 {offsets = [0, 0], sizes = [16, 128], strides = [1, 1]} : vector<16x384xf32> to vector<16x128xf32>
    %272 = arith.addf %270, %271 : vector<16x128xf32>
    %273 = arith.negf %272 : vector<16x128xf32>
    %274 = math.exp %273 : vector<16x128xf32>
    %cst_95 = arith.constant 1.000000e+00 : f32
    %275 = vector.broadcast %cst_95 : f32 to vector<16x128xf32>
    %276 = arith.addf %275, %274 : vector<16x128xf32>
    %277 = arith.divf %275, %276 : vector<16x128xf32>
    %278 = vector.extract_strided_slice %259 {offsets = [0, 128], sizes = [16, 128], strides = [1, 1]} : vector<16x384xf32> to vector<16x128xf32>
    %279 = vector.extract_strided_slice %268 {offsets = [0, 128], sizes = [16, 128], strides = [1, 1]} : vector<16x384xf32> to vector<16x128xf32>
    %280 = arith.addf %278, %279 : vector<16x128xf32>
    %281 = arith.negf %280 : vector<16x128xf32>
    %282 = math.exp %281 : vector<16x128xf32>
    %cst_96 = arith.constant 1.000000e+00 : f32
    %283 = vector.broadcast %cst_96 : f32 to vector<16x128xf32>
    %284 = arith.addf %283, %282 : vector<16x128xf32>
    %285 = arith.divf %283, %284 : vector<16x128xf32>
    %286 = vector.extract_strided_slice %259 {offsets = [0, 256], sizes = [16, 128], strides = [1, 1]} : vector<16x384xf32> to vector<16x128xf32>
    %287 = vector.extract_strided_slice %268 {offsets = [0, 256], sizes = [16, 128], strides = [1, 1]} : vector<16x384xf32> to vector<16x128xf32>
    %288 = arith.addf %287, %23 : vector<16x128xf32>
    %289 = arith.mulf %277, %288 : vector<16x128xf32>
    %290 = arith.addf %286, %289 : vector<16x128xf32>
    %291 = math.tanh %290 : vector<16x128xf32>
    %cst_97 = arith.constant 1.000000e+00 : f32
    %292 = vector.broadcast %cst_97 : f32 to vector<16x128xf32>
    %293 = arith.subf %292, %285 : vector<16x128xf32>
    %294 = arith.mulf %293, %291 : vector<16x128xf32>
    %295 = arith.mulf %285, %220 : vector<16x128xf32>
    %296 = arith.addf %294, %295 : vector<16x128xf32>
    %297 = vector.extract_strided_slice %263 {offsets = [0, 0], sizes = [16, 128], strides = [1, 1]} : vector<16x384xf32> to vector<16x128xf32>
    %298 = vector.extract_strided_slice %269 {offsets = [0, 0], sizes = [16, 128], strides = [1, 1]} : vector<16x384xf32> to vector<16x128xf32>
    %299 = arith.addf %297, %298 : vector<16x128xf32>
    %300 = arith.negf %299 : vector<16x128xf32>
    %301 = math.exp %300 : vector<16x128xf32>
    %cst_98 = arith.constant 1.000000e+00 : f32
    %302 = vector.broadcast %cst_98 : f32 to vector<16x128xf32>
    %303 = arith.addf %302, %301 : vector<16x128xf32>
    %304 = arith.divf %302, %303 : vector<16x128xf32>
    %305 = vector.extract_strided_slice %263 {offsets = [0, 128], sizes = [16, 128], strides = [1, 1]} : vector<16x384xf32> to vector<16x128xf32>
    %306 = vector.extract_strided_slice %269 {offsets = [0, 128], sizes = [16, 128], strides = [1, 1]} : vector<16x384xf32> to vector<16x128xf32>
    %307 = arith.addf %305, %306 : vector<16x128xf32>
    %308 = arith.negf %307 : vector<16x128xf32>
    %309 = math.exp %308 : vector<16x128xf32>
    %cst_99 = arith.constant 1.000000e+00 : f32
    %310 = vector.broadcast %cst_99 : f32 to vector<16x128xf32>
    %311 = arith.addf %310, %309 : vector<16x128xf32>
    %312 = arith.divf %310, %311 : vector<16x128xf32>
    %313 = vector.extract_strided_slice %263 {offsets = [0, 256], sizes = [16, 128], strides = [1, 1]} : vector<16x384xf32> to vector<16x128xf32>
    %314 = vector.extract_strided_slice %269 {offsets = [0, 256], sizes = [16, 128], strides = [1, 1]} : vector<16x384xf32> to vector<16x128xf32>
    %315 = arith.addf %314, %26 : vector<16x128xf32>
    %316 = arith.mulf %304, %315 : vector<16x128xf32>
    %317 = arith.addf %313, %316 : vector<16x128xf32>
    %318 = math.tanh %317 : vector<16x128xf32>
    %cst_100 = arith.constant 1.000000e+00 : f32
    %319 = vector.broadcast %cst_100 : f32 to vector<16x128xf32>
    %320 = arith.subf %319, %312 : vector<16x128xf32>
    %321 = arith.mulf %320, %318 : vector<16x128xf32>
    %322 = arith.mulf %312, %247 : vector<16x128xf32>
    %323 = arith.addf %321, %322 : vector<16x128xf32>
    %324 = arith.index_cast %c3_i32_86 : i32 to index
    %c0_101 = arith.constant 0 : index
    %c0_102 = arith.constant 0 : index
    %325 = vector.load %arg10[%324, %c0_101, %c0_102] : memref<4x16x128xf32, #tpu.memory_space<vmem>>, vector<1x16x128xf32>
    %326 = vector.shape_cast %325 : vector<1x16x128xf32> to vector<16x128xf32>
    %327 = vector.shape_cast %296 : vector<16x128xf32> to vector<1x16x128xf32>
    tpu.vector_store %arg10[%324, %c0_101, %c0_102], %327 {strides = array<i32>} : memref<4x16x128xf32, #tpu.memory_space<vmem>>, vector<1x16x128xf32>,
    %c3_i32_103 = arith.constant 3 : i32
    %328 = arith.subi %c3_i32_103, %c3_i32_86 : i32
    %329 = arith.index_cast %328 : i32 to index
    %c0_104 = arith.constant 0 : index
    %c0_105 = arith.constant 0 : index
    %330 = vector.load %arg11[%329, %c0_104, %c0_105] : memref<4x16x128xf32, #tpu.memory_space<vmem>>, vector<1x16x128xf32>
    %331 = vector.shape_cast %330 : vector<1x16x128xf32> to vector<16x128xf32>
    %332 = vector.shape_cast %323 : vector<16x128xf32> to vector<1x16x128xf32>
    tpu.vector_store %arg11[%329, %c0_104, %c0_105], %332 {strides = array<i32>} : memref<4x16x128xf32, #tpu.memory_space<vmem>>, vector<1x16x128xf32>,
    %c4_i32 = arith.constant 4 : i32
    %c0_106 = arith.constant 0 : index
    %c0_107 = arith.constant 0 : index
    %333 = vector.load %arg15[%c0_106, %c0_107] : memref<16x128xf32, #tpu.memory_space<vmem>>, vector<16x128xf32>
    tpu.vector_store %arg15[%c0_106, %c0_107], %296 {strides = array<i32>} : memref<16x128xf32, #tpu.memory_space<vmem>>, vector<16x128xf32>,
    %c0_108 = arith.constant 0 : index
    %c0_109 = arith.constant 0 : index
    %334 = vector.load %arg16[%c0_108, %c0_109] : memref<16x128xf32, #tpu.memory_space<vmem>>, vector<16x128xf32>
    tpu.vector_store %arg16[%c0_108, %c0_109], %323 {strides = array<i32>} : memref<16x128xf32, #tpu.memory_space<vmem>>, vector<16x128xf32>,
    %c1_i32_110 = arith.constant 1 : i32
    %335 = arith.cmpi eq, %arg0, %c1_i32_110 : i32
    %336 = arith.extui %335 : i1 to i32
    %c0_i32_111 = arith.constant 0 : i32
    %337 = arith.cmpi ne, %336, %c0_i32_111 : i32
    scf.if %337 {
      %c0_112 = arith.constant 0 : index
      %c0_113 = arith.constant 0 : index
      %c0_114 = arith.constant 0 : index
      %338 = vector.load %arg12[%c0_112, %c0_113, %c0_114] : memref<2x16x128xf32, #tpu.memory_space<vmem>>, vector<1x16x128xf32>
      %339 = vector.shape_cast %338 : vector<1x16x128xf32> to vector<16x128xf32>
      %340 = vector.shape_cast %296 : vector<16x128xf32> to vector<1x16x128xf32>
      tpu.vector_store %arg12[%c0_112, %c0_113, %c0_114], %340 {strides = array<i32>} : memref<2x16x128xf32, #tpu.memory_space<vmem>>, vector<1x16x128xf32>,
      %c1 = arith.constant 1 : index
      %c0_115 = arith.constant 0 : index
      %c0_116 = arith.constant 0 : index
      %341 = vector.load %arg12[%c1, %c0_115, %c0_116] : memref<2x16x128xf32, #tpu.memory_space<vmem>>, vector<1x16x128xf32>
      %342 = vector.shape_cast %341 : vector<1x16x128xf32> to vector<16x128xf32>
      %343 = vector.shape_cast %323 : vector<16x128xf32> to vector<1x16x128xf32>
      tpu.vector_store %arg12[%c1, %c0_115, %c0_116], %343 {strides = array<i32>} : memref<2x16x128xf32, #tpu.memory_space<vmem>>, vector<1x16x128xf32>,
    } else {
    }
    return
  }
  func.func @transform_0(%arg0: i32) -> (i32, i32, i32) {
    %c0_i32 = arith.constant 0 : i32
    %c0_i32_0 = arith.constant 0 : i32
    %c0_i32_1 = arith.constant 0 : i32
    return %arg0, %c0_i32, %c0_i32_0 : i32, i32, i32
  }
  func.func @transform_1(%arg0: i32) -> (i32, i32, i32) {
    %c1_i32 = arith.constant 1 : i32
    %0 = arith.subi %c1_i32, %arg0 : i32
    %c0_i32 = arith.constant 0 : i32
    %c0_i32_0 = arith.constant 0 : i32
    %c0_i32_1 = arith.constant 0 : i32
    return %0, %c0_i32, %c0_i32_0 : i32, i32, i32
  }
  func.func @transform_2(%arg0: i32) -> (i32, i32) {
    %c0_i32 = arith.constant 0 : i32
    %c0_i32_0 = arith.constant 0 : i32
    %c0_i32_1 = arith.constant 0 : i32
    return %c0_i32, %c0_i32_0 : i32, i32
  }
  func.func @transform_3(%arg0: i32) -> (i32, i32) {
    %c0_i32 = arith.constant 0 : i32
    %c0_i32_0 = arith.constant 0 : i32
    %c0_i32_1 = arith.constant 0 : i32
    return %c0_i32, %c0_i32_0 : i32, i32
  }
  func.func @transform_4(%arg0: i32) -> (i32, i32) {
    %c0_i32 = arith.constant 0 : i32
    %c0_i32_0 = arith.constant 0 : i32
    %c0_i32_1 = arith.constant 0 : i32
    return %c0_i32, %c0_i32_0 : i32, i32
  }
  func.func @transform_5(%arg0: i32) -> (i32, i32) {
    %c0_i32 = arith.constant 0 : i32
    %c0_i32_0 = arith.constant 0 : i32
    %c0_i32_1 = arith.constant 0 : i32
    return %c0_i32, %c0_i32_0 : i32, i32
  }
  func.func @transform_6(%arg0: i32) -> (i32, i32) {
    %c0_i32 = arith.constant 0 : i32
    %c0_i32_0 = arith.constant 0 : i32
    %c0_i32_1 = arith.constant 0 : i32
    return %c0_i32, %c0_i32_0 : i32, i32
  }
  func.func @transform_7(%arg0: i32) -> (i32, i32) {
    %c0_i32 = arith.constant 0 : i32
    %c0_i32_0 = arith.constant 0 : i32
    %c0_i32_1 = arith.constant 0 : i32
    return %c0_i32, %c0_i32_0 : i32, i32
  }
  func.func @transform_8(%arg0: i32) -> (i32, i32) {
    %c0_i32 = arith.constant 0 : i32
    %c0_i32_0 = arith.constant 0 : i32
    %c0_i32_1 = arith.constant 0 : i32
    return %c0_i32, %c0_i32_0 : i32, i32
  }
  func.func @transform_9(%arg0: i32) -> (i32, i32, i32) {
    %c0_i32 = arith.constant 0 : i32
    %c0_i32_0 = arith.constant 0 : i32
    %c0_i32_1 = arith.constant 0 : i32
    return %arg0, %c0_i32, %c0_i32_0 : i32, i32, i32
  }
  func.func @transform_10(%arg0: i32) -> (i32, i32, i32) {
    %c1_i32 = arith.constant 1 : i32
    %0 = arith.subi %c1_i32, %arg0 : i32
    %c0_i32 = arith.constant 0 : i32
    %c0_i32_0 = arith.constant 0 : i32
    %c0_i32_1 = arith.constant 0 : i32
    return %0, %c0_i32, %c0_i32_0 : i32, i32, i32
  }
  func.func @transform_11(%arg0: i32) -> (i32, i32, i32) {
    %c0_i32 = arith.constant 0 : i32
    %c0_i32_0 = arith.constant 0 : i32
    %c0_i32_1 = arith.constant 0 : i32
    %c0_i32_2 = arith.constant 0 : i32
    return %c0_i32, %c0_i32_0, %c0_i32_1 : i32, i32, i32
  }
}

</mosaic_0001>

<llo_original>
// kernel: tpu_custom_call.1
$region0: #{tpu_custom_call.1}
  #allocation0 [shape = 'u32[]', space=smem, size = 0x4, offset = 0x4, fixed_abs, tag = 'smem constant byte address 0x4 - core index']
  #allocation1 [shape = 'u32[144,128]{1,0:T(1,128)}', space=vmem, size = 0x12000, scoped, tag = 'internal scratch']
  #allocation2 [shape = 'f32[4,16,384]{2,1,0:T(8,128)}', space=vmem, size = 0x18000, scoped, tag = 'scratch operand']
  #allocation3 [shape = 'f32[4,16,384]{2,1,0:T(8,128)}', space=vmem, size = 0x18000, scoped, tag = 'scratch operand']
  #allocation4 [shape = 'f32[16,128]{1,0:T(8,128)}', space=vmem, size = 0x2000, scoped, tag = 'scratch operand']
  #allocation5 [shape = 'f32[16,128]{1,0:T(8,128)}', space=vmem, size = 0x2000, scoped, tag = 'scratch operand']
  %s0 = inlined_call_operand.hbm [shape: bf16[8,16,128], index: 0, kind: input, shape index: {}]
  %s1 = inlined_call_operand.hbm [shape: bf16[8,16,128], index: 1, kind: input, shape index: {}]
  %s2 = inlined_call_operand.hbm [shape: bf16[128,384], index: 2, kind: input, shape index: {}]
  %s3 = inlined_call_operand.hbm [shape: bf16[128,384], index: 3, kind: input, shape index: {}]
  %s4 = inlined_call_operand.hbm [shape: bf16[128,768], index: 4, kind: input, shape index: {}]
  %s5 = inlined_call_operand.vmem [shape: f32[1,384], index: 5, kind: input, shape index: {}]
  %s6 = inlined_call_operand.vmem [shape: f32[1,384], index: 6, kind: input, shape index: {}]
  %s7 = inlined_call_operand.vmem [shape: f32[1,128], index: 7, kind: input, shape index: {}]
  %s8 = inlined_call_operand.vmem [shape: f32[1,128], index: 8, kind: input, shape index: {}]
  %s9 = inlined_call_operand.hbm [shape: f32[8,16,128], index: 9, kind: output, shape index: {0}]
  %s10 = inlined_call_operand.hbm [shape: f32[8,16,128], index: 10, kind: output, shape index: {1}]
  %s11 = inlined_call_operand.hbm [shape: f32[2,16,128], index: 11, kind: output, shape index: {2}]
  %12 = xla_tuple %s9, %s10, %s11
  %s13 = sld [smem:[#allocation0]]
  $region113: #{tpu_custom_call.1} parent=0
    _
  %s15 = ssub.s32 1, %s13
  %s16 = scalar_select 0, %s15, %s13
  $region1: #{tpu_custom_call.1} parent=0
    #allocation6 [shape = 'u8[32768]{0}', space=vmem, size = 0x8000, scoped, tag = 'input window, operand 0']
    #allocation7 [shape = 's32[2]{0}', space=sflag, size = 0x8, scoped, tag = 'scoped memory for tpu_custom_call.1']
    #allocation8 [shape = 's32[2]{0}', space=sflag, size = 0x8, scoped, tag = 'scoped memory for tpu_custom_call.1']
    #allocation9 [shape = 'u8[32768]{0}', space=vmem, size = 0x8000, scoped, tag = 'input window, operand 1']
    #allocation10 [shape = 's32[2]{0}', space=sflag, size = 0x8, scoped, tag = 'scoped memory for tpu_custom_call.1']
    #allocation11 [shape = 'u8[98304]{0}', space=vmem, size = 0x18000, scoped, tag = 'input window, operand 2, single buffered']
    #allocation12 [shape = 'u8[98304]{0}', space=vmem, size = 0x18000, scoped, tag = 'input window, operand 3, single buffered']
    #allocation13 [shape = 's32[1]{0}', space=sflag, size = 0x4, scoped, tag = 'scoped memory for tpu_custom_call.1']
    #allocation14 [shape = 'u8[196608]{0}', space=vmem, size = 0x30000, scoped, tag = 'input window, operand 4, single buffered']
    #allocation15 [shape = 'u8[65536]{0}', space=vmem, size = 0x10000, scoped, tag = 'output window, operand 0']
    #allocation16 [shape = 'u8[65536]{0}', space=vmem, size = 0x10000, scoped, tag = 'output window, operand 1']
    #allocation17 [shape = 's32[2]{0}', space=sflag, size = 0x8, scoped, tag = 'scoped memory for tpu_custom_call.1']
    #allocation18 [shape = 'u8[16384]{0}', space=vmem, size = 0x4000, scoped, tag = 'output window, operand 2, single buffered']
    %17 = vsyncpa [#allocation7], 0
    %s18 = scalar_lea.sflag [#allocation7], 1
    %19 = vsyncpa %s18, 0
    %20 = vsyncpa [#allocation10], 0
    %s21 = scalar_lea.sflag [#allocation10], 1
    %22 = vsyncpa %s21, 0
    %23 = vsyncpa [#allocation13], 0
    %24 = vsyncpa [#allocation8], 0
    %s25 = scalar_lea.sflag [#allocation8], 1
    %26 = vsyncpa %s25, 0
    %27 = vsyncpa [#allocation17], 0
    %s28 = scalar_lea.sflag [#allocation17], 1
    %29 = vsyncpa %s28, 0
    loop: start=0, step=1, limit=4
    $region2: #{tpu_custom_call.1} parent=1 // loop_pre_header
      _
    $region3: #{tpu_custom_call.1} parent=1 // loop_header
      %s31 = sphi 0, %s35
      %p32 = scmp.ge.s32.totalorder %s31, 4
      %s41 = sphi 0, %s43
      %s44 = sphi 0, %s41
      %s45 = sphi 0, %s44
      %s61 = sphi 0, %s45
      %s69 = sphi 0, %s71
      %s72 = sphi 0, %s69
      %s73 = sphi 0, %s72
      %s89 = sphi 0, %s73
      %s93 = sphi 0, %s93
      %s95 = sphi 0, %s93
      %s96 = sphi 0, %s95
      %s110 = sphi 0, %s96
      %s114 = sphi 0, %s114
      %s116 = sphi 0, %s114
      %s117 = sphi 0, %s116
      %s131 = sphi 0, %s117
      %s135 = sphi 0, %s135
      %s137 = sphi 0, %s135
      %s138 = sphi 0, %s137
      %s152 = sphi 0, %s138
      %s156 = sphi 0, %s156
      %s158 = sphi 0, %s156
      %s159 = sphi 0, %s158
      %s173 = sphi 0, %s159
      %s177 = sphi 0, %s177
      %s179 = sphi 0, %s177
      %s180 = sphi 0, %s179
      %s194 = sphi 0, %s180
      %s198 = sphi 0, %s198
      %s200 = sphi 0, %s198
      %s201 = sphi 0, %s200
      %s215 = sphi 0, %s201
      %s219 = sphi 0, %s219
      %s221 = sphi 0, %s219
      %s222 = sphi 0, %s221
      %s236 = sphi 0, %s222
      %s242 = sphi 0, %s244
      %s245 = sphi 0, %s242
      %s246 = sphi 0, %s245
      %s262 = sphi 0, %s246
      %s270 = sphi 0, %s272
      %s273 = sphi 0, %s270
      %s274 = sphi 0, %s273
      %s290 = sphi 0, %s274
      %s294 = sphi 0, %s294
      %s296 = sphi 0, %s294
      %s297 = sphi 0, %s296
      %s311 = sphi 0, %s297
    $region4: #{tpu_custom_call.1} parent=1 // loop_header_branch
      %34 = sbr.rel (%p32) target = $region8
    $region5: #{tpu_custom_call.1} parent=1 // loop_body
      %s36 = ssub.s32 %s31, 1
      %s37 = ssub.s32 %s31, 2
      %s38 = sadd.s32 %s31, 1
      %s39 = ssub.s32 %s31, %s38
      %p40 = scmp.eq.s32.totalorder %s39, 0
      %s42 = sadd.s32 %s41, 1
      %s43 = scalar_select %p40, %s41, %s42
      %p46 = pneg %p40
      %p47 = scmp.eq.s32.totalorder %s31, 1
      %p48 = por %p46, %p47
      %p49 = scmp.ne.s32.totalorder %s41, %s44
      %p50 = scmp.eq.s32.totalorder %s31, 0
      %p51 = por %p49, %p50
      %p52 = scmp.ne.s32.totalorder %s41, %s44
      %p53 = scmp.eq.s32.totalorder %s36, 1
      %p54 = por %p52, %p53
      %p55 = scmp.ne.s32.totalorder %s44, %s45
      %p56 = scmp.eq.s32.totalorder %s36, 0
      %p57 = por %p55, %p56
      %p58 = scmp.ne.s32.totalorder %s44, %s45
      %p59 = scmp.eq.s32.totalorder %s37, 1
      %p60 = por %p58, %p59
      %p62 = scmp.ne.s32.totalorder %s45, %s61
      %p63 = scmp.eq.s32.totalorder %s37, 0
      %p64 = por %p62, %p63
      %s65 = ssub.s32 1, %s31
      %s66 = ssub.s32 1, %s38
      %s67 = ssub.s32 %s65, %s66
      %p68 = scmp.eq.s32.totalorder %s67, 0
      %s70 = sadd.s32 %s69, 1
      %s71 = scalar_select %p68, %s69, %s70
      %p74 = pneg %p68
      %p75 = scmp.eq.s32.totalorder %s31, 1
      %p76 = por %p74, %p75
      %p77 = scmp.ne.s32.totalorder %s69, %s72
      %p78 = scmp.eq.s32.totalorder %s31, 0
      %p79 = por %p77, %p78
      %p80 = scmp.ne.s32.totalorder %s69, %s72
      %p81 = scmp.eq.s32.totalorder %s36, 1
      %p82 = por %p80, %p81
      %p83 = scmp.ne.s32.totalorder %s72, %s73
      %p84 = scmp.eq.s32.totalorder %s36, 0
      %p85 = por %p83, %p84
      %p86 = scmp.ne.s32.totalorder %s72, %s73
      %p87 = scmp.eq.s32.totalorder %s37, 1
      %p88 = por %p86, %p87
      %p90 = scmp.ne.s32.totalorder %s73, %s89
      %p91 = scmp.eq.s32.totalorder %s37, 0
      %p92 = por %p90, %p91
      %s94 = sadd.s32 %s93, 1
      %p97 = scmp.eq.s32.totalorder %s31, 1
      %p98 = scmp.ne.s32.totalorder %s93, %s95
      %p99 = scmp.eq.s32.totalorder %s31, 0
      %p100 = por %p98, %p99
      %p101 = scmp.ne.s32.totalorder %s93, %s95
      %p102 = scmp.eq.s32.totalorder %s36, 1
      %p103 = por %p101, %p102
      %p104 = scmp.ne.s32.totalorder %s95, %s96
      %p105 = scmp.eq.s32.totalorder %s36, 0
      %p106 = por %p104, %p105
      %p107 = scmp.ne.s32.totalorder %s95, %s96
      %p108 = scmp.eq.s32.totalorder %s37, 1
      %p109 = por %p107, %p108
      %p111 = scmp.ne.s32.totalorder %s96, %s110
      %p112 = scmp.eq.s32.totalorder %s37, 0
      %p113 = por %p111, %p112
      %s115 = sadd.s32 %s114, 1
      %p118 = scmp.eq.s32.totalorder %s31, 1
      %p119 = scmp.ne.s32.totalorder %s114, %s116
      %p120 = scmp.eq.s32.totalorder %s31, 0
      %p121 = por %p119, %p120
      %p122 = scmp.ne.s32.totalorder %s114, %s116
      %p123 = scmp.eq.s32.totalorder %s36, 1
      %p124 = por %p122, %p123
      %p125 = scmp.ne.s32.totalorder %s116, %s117
      %p126 = scmp.eq.s32.totalorder %s36, 0
      %p127 = por %p125, %p126
      %p128 = scmp.ne.s32.totalorder %s116, %s117
      %p129 = scmp.eq.s32.totalorder %s37, 1
      %p130 = por %p128, %p129
      %p132 = scmp.ne.s32.totalorder %s117, %s131
      %p133 = scmp.eq.s32.totalorder %s37, 0
      %p134 = por %p132, %p133
      %s136 = sadd.s32 %s135, 1
      %p139 = scmp.eq.s32.totalorder %s31, 1
      %p140 = scmp.ne.s32.totalorder %s135, %s137
      %p141 = scmp.eq.s32.totalorder %s31, 0
      %p142 = por %p140, %p141
      %p143 = scmp.ne.s32.totalorder %s135, %s137
      %p144 = scmp.eq.s32.totalorder %s36, 1
      %p145 = por %p143, %p144
      %p146 = scmp.ne.s32.totalorder %s137, %s138
      %p147 = scmp.eq.s32.totalorder %s36, 0
      %p148 = por %p146, %p147
      %p149 = scmp.ne.s32.totalorder %s137, %s138
      %p150 = scmp.eq.s32.totalorder %s37, 1
      %p151 = por %p149, %p150
      %p153 = scmp.ne.s32.totalorder %s138, %s152
      %p154 = scmp.eq.s32.totalorder %s37, 0
      %p155 = por %p153, %p154
      %s157 = sadd.s32 %s156, 1
      %p160 = scmp.eq.s32.totalorder %s31, 1
      %p161 = scmp.ne.s32.totalorder %s156, %s158
      %p162 = scmp.eq.s32.totalorder %s31, 0
      %p163 = por %p161, %p162
      %p164 = scmp.ne.s32.totalorder %s156, %s158
      %p165 = scmp.eq.s32.totalorder %s36, 1
      %p166 = por %p164, %p165
      %p167 = scmp.ne.s32.totalorder %s158, %s159
      %p168 = scmp.eq.s32.totalorder %s36, 0
      %p169 = por %p167, %p168
      %p170 = scmp.ne.s32.totalorder %s158, %s159
      %p171 = scmp.eq.s32.totalorder %s37, 1
      %p172 = por %p170, %p171
      %p174 = scmp.ne.s32.totalorder %s159, %s173
      %p175 = scmp.eq.s32.totalorder %s37, 0
      %p176 = por %p174, %p175
      %s178 = sadd.s32 %s177, 1
      %p181 = scmp.eq.s32.totalorder %s31, 1
      %p182 = scmp.ne.s32.totalorder %s177, %s179
      %p183 = scmp.eq.s32.totalorder %s31, 0
      %p184 = por %p182, %p183
      %p185 = scmp.ne.s32.totalorder %s177, %s179
      %p186 = scmp.eq.s32.totalorder %s36, 1
      %p187 = por %p185, %p186
      %p188 = scmp.ne.s32.totalorder %s179, %s180
      %p189 = scmp.eq.s32.totalorder %s36, 0
      %p190 = por %p188, %p189
      %p191 = scmp.ne.s32.totalorder %s179, %s180
      %p192 = scmp.eq.s32.totalorder %s37, 1
      %p193 = por %p191, %p192
      %p195 = scmp.ne.s32.totalorder %s180, %s194
      %p196 = scmp.eq.s32.totalorder %s37, 0
      %p197 = por %p195, %p196
      %s199 = sadd.s32 %s198, 1
      %p202 = scmp.eq.s32.totalorder %s31, 1
      %p203 = scmp.ne.s32.totalorder %s198, %s200
      %p204 = scmp.eq.s32.totalorder %s31, 0
      %p205 = por %p203, %p204
      %p206 = scmp.ne.s32.totalorder %s198, %s200
      %p207 = scmp.eq.s32.totalorder %s36, 1
      %p208 = por %p206, %p207
      %p209 = scmp.ne.s32.totalorder %s200, %s201
      %p210 = scmp.eq.s32.totalorder %s36, 0
      %p211 = por %p209, %p210
      %p212 = scmp.ne.s32.totalorder %s200, %s201
      %p213 = scmp.eq.s32.totalorder %s37, 1
      %p214 = por %p212, %p213
      %p216 = scmp.ne.s32.totalorder %s201, %s215
      %p217 = scmp.eq.s32.totalorder %s37, 0
      %p218 = por %p216, %p217
      %s220 = sadd.s32 %s219, 1
      %p223 = scmp.eq.s32.totalorder %s31, 1
      %p224 = scmp.ne.s32.totalorder %s219, %s221
      %p225 = scmp.eq.s32.totalorder %s31, 0
      %p226 = por %p224, %p225
      %p227 = scmp.ne.s32.totalorder %s219, %s221
      %p228 = scmp.eq.s32.totalorder %s36, 1
      %p229 = por %p227, %p228
      %p230 = scmp.ne.s32.totalorder %s221, %s222
      %p231 = scmp.eq.s32.totalorder %s36, 0
      %p232 = por %p230, %p231
      %p233 = scmp.ne.s32.totalorder %s221, %s222
      %p234 = scmp.eq.s32.totalorder %s37, 1
      %p235 = por %p233, %p234
      %p237 = scmp.ne.s32.totalorder %s222, %s236
      %p238 = scmp.eq.s32.totalorder %s37, 0
      %p239 = por %p237, %p238
      %s240 = ssub.s32 %s31, %s38
      %p241 = scmp.eq.s32.totalorder %s240, 0
      %s243 = sadd.s32 %s242, 1
      %s244 = scalar_select %p241, %s242, %s243
      %p247 = pneg %p241
      %p248 = scmp.eq.s32.totalorder %s31, 1
      %p249 = por %p247, %p248
      %p250 = scmp.ne.s32.totalorder %s242, %s245
      %p251 = scmp.eq.s32.totalorder %s31, 0
      %p252 = por %p250, %p251
      %p253 = scmp.ne.s32.totalorder %s242, %s245
      %p254 = scmp.eq.s32.totalorder %s36, 1
      %p255 = por %p253, %p254
      %p256 = scmp.ne.s32.totalorder %s245, %s246
      %p257 = scmp.eq.s32.totalorder %s36, 0
      %p258 = por %p256, %p257
      %p259 = scmp.ne.s32.totalorder %s245, %s246
      %p260 = scmp.eq.s32.totalorder %s37, 1
      %p261 = por %p259, %p260
      %p263 = scmp.ne.s32.totalorder %s246, %s262
      %p264 = scmp.eq.s32.totalorder %s37, 0
      %p265 = por %p263, %p264
      %s266 = ssub.s32 1, %s31
      %s267 = ssub.s32 1, %s38
      %s268 = ssub.s32 %s266, %s267
      %p269 = scmp.eq.s32.totalorder %s268, 0
      %s271 = sadd.s32 %s270, 1
      %s272 = scalar_select %p269, %s270, %s271
      %p275 = pneg %p269
      %p276 = scmp.eq.s32.totalorder %s31, 1
      %p277 = por %p275, %p276
      %p278 = scmp.ne.s32.totalorder %s270, %s273
      %p279 = scmp.eq.s32.totalorder %s31, 0
      %p280 = por %p278, %p279
      %p281 = scmp.ne.s32.totalorder %s270, %s273
      %p282 = scmp.eq.s32.totalorder %s36, 1
      %p283 = por %p281, %p282
      %p284 = scmp.ne.s32.totalorder %s273, %s274
      %p285 = scmp.eq.s32.totalorder %s36, 0
      %p286 = por %p284, %p285
      %p287 = scmp.ne.s32.totalorder %s273, %s274
      %p288 = scmp.eq.s32.totalorder %s37, 1
      %p289 = por %p287, %p288
      %p291 = scmp.ne.s32.totalorder %s274, %s290
      %p292 = scmp.eq.s32.totalorder %s37, 0
      %p293 = por %p291, %p292
      %s295 = sadd.s32 %s294, 1
      %p298 = scmp.eq.s32.totalorder %s31, 1
      %p299 = scmp.ne.s32.totalorder %s294, %s296
      %p300 = scmp.eq.s32.totalorder %s31, 0
      %p301 = por %p299, %p300
      %p302 = scmp.ne.s32.totalorder %s294, %s296
      %p303 = scmp.eq.s32.totalorder %s36, 1
      %p304 = por %p302, %p303
      %p305 = scmp.ne.s32.totalorder %s296, %s297
      %p306 = scmp.eq.s32.totalorder %s36, 0
      %p307 = por %p305, %p306
      %p308 = scmp.ne.s32.totalorder %s296, %s297
      %p309 = scmp.eq.s32.totalorder %s37, 1
      %p310 = por %p308, %p309
      %p312 = scmp.ne.s32.totalorder %s297, %s311
      %p313 = scmp.eq.s32.totalorder %s37, 0
      %p314 = por %p312, %p313
      %p315 = scmp.le.s32.totalorder 1, %s31
      %p316 = scmp.lt.s32.totalorder %s31, 3
      %p317 = pnand %p315, %p316
      %p318 = pneg %p317
      // Predicated region
      $region9: #{tpu_custom_call.1} parent=5 // pred_check
        _
      $region10: #{tpu_custom_call.1} parent=5 // pred_check_branch
        %320 = sbr.rel (%p317) target = $region12
      $region11: #{tpu_custom_call.1} parent=5 // pred_region
        %s321 = ssub.s32 %s31, 1
        // Predicated region
        $region13: #{tpu_custom_call.1} parent=11 // pred_check
          %p322 = pneg %p106
        $region14: #{tpu_custom_call.1} parent=11 // pred_check_branch
          %324 = sbr.rel (%p322) target = $region16
        $region15: #{tpu_custom_call.1} parent=11 // pred_region
          %s326 = ssub.s32 3072, 3072
          %327 = vsyncadd [#allocation10], %s326
          %s328 = sshll.u32 [#allocation11], 4
          %s329 = int_to_ptr.vmem [resolvable:$true] %s328
          %334 = dma.hbm_to_vmem [thread:$0]  %s2, 3072, %s329, [#allocation10], 192, 192, 12
        $region16: #{tpu_custom_call.1} parent=11 // pred_fallthru
          _
        // Predicated region
        $region17: #{tpu_custom_call.1} parent=11 // pred_check
          %p335 = pneg %p127
        $region18: #{tpu_custom_call.1} parent=11 // pred_check_branch
          %337 = sbr.rel (%p335) target = $region20
        $region19: #{tpu_custom_call.1} parent=11 // pred_region
          %s339 = ssub.s32 3072, 3072
          %340 = vsyncadd [#allocation13], %s339
          %s341 = sshll.u32 [#allocation12], 4
          %s342 = int_to_ptr.vmem [resolvable:$true] %s341
          %347 = dma.hbm_to_vmem [thread:$0]  %s3, 3072, %s342, [#allocation13], 192, 192, 12
        $region20: #{tpu_custom_call.1} parent=11 // pred_fallthru
          _
        // Predicated region
        $region21: #{tpu_custom_call.1} parent=11 // pred_check
          %p348 = pneg %p148
        $region22: #{tpu_custom_call.1} parent=11 // pred_check_branch
          %350 = sbr.rel (%p348) target = $region24
        $region23: #{tpu_custom_call.1} parent=11 // pred_region
          %s352 = ssub.s32 6144, 6144
          %353 = vsyncadd [#allocation13], %s352
          %s354 = sshll.u32 [#allocation14], 4
          %s355 = int_to_ptr.vmem [resolvable:$true] %s354
          %360 = dma.hbm_to_vmem [thread:$0]  %s4, 6144, %s355, [#allocation13], 384, 384, 24
        $region24: #{tpu_custom_call.1} parent=11 // pred_fallthru
          _
        // Predicated region
        $region25: #{tpu_custom_call.1} parent=11 // pred_check
          %p361 = pneg %p169
        $region26: #{tpu_custom_call.1} parent=11 // pred_check_branch
          %363 = sbr.rel (%p361) target = $region28
        $region27: #{tpu_custom_call.1} parent=11 // pred_region
          _
        $region28: #{tpu_custom_call.1} parent=11 // pred_fallthru
          _
        // Predicated region
        $region29: #{tpu_custom_call.1} parent=11 // pred_check
          %p364 = pneg %p190
        $region30: #{tpu_custom_call.1} parent=11 // pred_check_branch
          %366 = sbr.rel (%p364) target = $region32
        $region31: #{tpu_custom_call.1} parent=11 // pred_region
          _
        $region32: #{tpu_custom_call.1} parent=11 // pred_fallthru
          _
        // Predicated region
        $region33: #{tpu_custom_call.1} parent=11 // pred_check
          %p367 = pneg %p211
        $region34: #{tpu_custom_call.1} parent=11 // pred_check_branch
          %369 = sbr.rel (%p367) target = $region36
        $region35: #{tpu_custom_call.1} parent=11 // pred_region
          _
        $region36: #{tpu_custom_call.1} parent=11 // pred_fallthru
          _
        // Predicated region
        $region37: #{tpu_custom_call.1} parent=11 // pred_check
          %p370 = pneg %p232
        $region38: #{tpu_custom_call.1} parent=11 // pred_check_branch
          %372 = sbr.rel (%p370) target = $region40
        $region39: #{tpu_custom_call.1} parent=11 // pred_region
          _
        $region40: #{tpu_custom_call.1} parent=11 // pred_fallthru
          _
      $region12: #{tpu_custom_call.1} parent=5 // pred_fallthru
        _
      %p373 = scmp.lt.s32.totalorder %s31, 2
      // Predicated region
      $region41: #{tpu_custom_call.1} parent=5 // pred_check
        %p374 = pneg %p373
      $region42: #{tpu_custom_call.1} parent=5 // pred_check_branch
        %376 = sbr.rel (%p374) target = $region44
      $region43: #{tpu_custom_call.1} parent=5 // pred_region
        // Predicated region
        $region45: #{tpu_custom_call.1} parent=43 // pred_check
          %p377 = pneg %p51
        $region46: #{tpu_custom_call.1} parent=43 // pred_check_branch
          %379 = sbr.rel (%p377) target = $region48
        $region47: #{tpu_custom_call.1} parent=43 // pred_region
          %s380 = sand.u32 %s41, 1
          %s381 = scalar_lea.sflag [#allocation7], %s380
          %s382 = sand.u32 %s41, 1
          %s383 = smul.addr %s382, 32
          %s384 = scalar_lea.vmem [#allocation6], %s383
          %s385 = smul.u32 4, %s31
          %s387 = ssub.s32 512, 512
          %388 = vsyncadd %s381, %s387
          %s389 = smul.addr %s385, 2
          %s390 = smul.addr %s389, 64
          %s391 = scalar_lea.hbm %s0, %s390
          %s392 = sshll.u32 %s384, 4
          %s393 = int_to_ptr.vmem [resolvable:$true] %s392
          %398 = dma.hbm_to_vmem [thread:$0]  %s391, 512, %s393, %s381, 64, 64, 4
        $region48: #{tpu_custom_call.1} parent=43 // pred_fallthru
          _
        // Predicated region
        $region49: #{tpu_custom_call.1} parent=43 // pred_check
          %p399 = pneg %p79
        $region50: #{tpu_custom_call.1} parent=43 // pred_check_branch
          %401 = sbr.rel (%p399) target = $region52
        $region51: #{tpu_custom_call.1} parent=43 // pred_region
          %s402 = sand.u32 %s31, 1
          %s403 = scalar_lea.sflag [#allocation10], %s402
          %s404 = sand.u32 %s69, 1
          %s405 = smul.addr %s404, 32
          %s406 = scalar_lea.vmem [#allocation9], %s405
          %s407 = ssub.s32 1, %s31
          %s408 = smul.u32 4, %s407
          %s410 = ssub.s32 512, 512
          %411 = vsyncadd %s403, %s410
          %s412 = smul.addr %s408, 2
          %s413 = smul.addr %s412, 64
          %s414 = scalar_lea.hbm %s1, %s413
          %s415 = sshll.u32 %s406, 4
          %s416 = int_to_ptr.vmem [resolvable:$true] %s415
          %421 = dma.hbm_to_vmem [thread:$0]  %s414, 512, %s416, %s403, 64, 64, 4
        $region52: #{tpu_custom_call.1} parent=43 // pred_fallthru
          _
      $region44: #{tpu_custom_call.1} parent=5 // pred_fallthru
        _
      %p422 = scmp.le.s32.totalorder 1, %s31
      %p423 = scmp.lt.s32.totalorder %s31, 3
      %p424 = pnand %p422, %p423
      %p425 = pneg %p424
      // Predicated region
      $region53: #{tpu_custom_call.1} parent=5 // pred_check
        _
      $region54: #{tpu_custom_call.1} parent=5 // pred_check_branch
        %427 = sbr.rel (%p424) target = $region56
      $region55: #{tpu_custom_call.1} parent=5 // pred_region
        %s428 = ssub.s32 %s31, 1
        %s429 = sand.u32 %s44, 1
        %s430 = scalar_lea.sflag [#allocation7], %s429
        %s431 = sand.u32 %s44, 1
        %s432 = smul.addr %s431, 32
        %s433 = scalar_lea.vmem [#allocation6], %s432
        // Predicated region
        $region57: #{tpu_custom_call.1} parent=55 // pred_check
          %p434 = pneg %p57
        $region58: #{tpu_custom_call.1} parent=55 // pred_check_branch
          %436 = sbr.rel (%p434) target = $region60
        $region59: #{tpu_custom_call.1} parent=55 // pred_region
          %437 = dma.done %s430, 512
        $region60: #{tpu_custom_call.1} parent=55 // pred_fallthru
          _
        %s438 = sand.u32 %s36, 1
        %s439 = scalar_lea.sflag [#allocation10], %s438
        %s440 = sand.u32 %s72, 1
        %s441 = smul.addr %s440, 32
        %s442 = scalar_lea.vmem [#allocation9], %s441
        // Predicated region
        $region61: #{tpu_custom_call.1} parent=55 // pred_check
          %p443 = pneg %p85
        $region62: #{tpu_custom_call.1} parent=55 // pred_check_branch
          %445 = sbr.rel (%p443) target = $region64
        $region63: #{tpu_custom_call.1} parent=55 // pred_region
          %446 = dma.done %s439, 512
        $region64: #{tpu_custom_call.1} parent=55 // pred_fallthru
          _
        // Predicated region
        $region65: #{tpu_custom_call.1} parent=55 // pred_check
          %p447 = pneg %p106
        $region66: #{tpu_custom_call.1} parent=55 // pred_check_branch
          %449 = sbr.rel (%p447) target = $region68
        $region67: #{tpu_custom_call.1} parent=55 // pred_region
          %450 = dma.done [#allocation10], 3072
        $region68: #{tpu_custom_call.1} parent=55 // pred_fallthru
          _
        // Predicated region
        $region69: #{tpu_custom_call.1} parent=55 // pred_check
          %p451 = pneg %p127
        $region70: #{tpu_custom_call.1} parent=55 // pred_check_branch
          %453 = sbr.rel (%p451) target = $region72
        $region71: #{tpu_custom_call.1} parent=55 // pred_region
          %454 = dma.done [#allocation13], 3072
        $region72: #{tpu_custom_call.1} parent=55 // pred_fallthru
          _
        // Predicated region
        $region73: #{tpu_custom_call.1} parent=55 // pred_check
          %p455 = pneg %p148
        $region74: #{tpu_custom_call.1} parent=55 // pred_check_branch
          %457 = sbr.rel (%p455) target = $region76
        $region75: #{tpu_custom_call.1} parent=55 // pred_region
          %458 = dma.done [#allocation13], 6144
        $region76: #{tpu_custom_call.1} parent=55 // pred_fallthru
          _
        %s459 = sand.u32 %s44, 1
        %s460 = scalar_lea.sflag [#allocation7], %s459
        %s461 = sand.u32 %s44, 1
        %s462 = smul.addr %s461, 32
        %s463 = scalar_lea.vmem [#allocation6], %s462
        %p464 = pneg %p57
        %p465 = pneg %p54
        %s466 = sand.u32 %s36, 1
        %s467 = scalar_lea.sflag [#allocation10], %s466
        %s468 = sand.u32 %s72, 1
        %s469 = smul.addr %s468, 32
        %s470 = scalar_lea.vmem [#allocation9], %s469
        %p471 = pneg %p85
        %p472 = pneg %p82
        %p473 = pneg %p106
        %p474 = pneg %p103
        %p475 = pneg %p127
        %p476 = pneg %p124
        %p477 = pneg %p148
        %p478 = pneg %p145
        %p479 = pneg %p169
        %p480 = pneg %p166
        %p481 = pneg %p190
        %p482 = pneg %p187
        %p483 = pneg %p211
        %p484 = pneg %p208
        %p485 = pneg %p232
        %p486 = pneg %p229
        %p487 = pneg %p258
        %p488 = pneg %p255
        %s489 = sand.u32 %s245, 1
        %s490 = scalar_lea.sflag [#allocation8], %s489
        %s491 = sand.u32 %s245, 1
        %s492 = smul.addr %s491, 64
        %s493 = scalar_lea.vmem [#allocation15], %s492
        %p494 = pneg %p286
        %p495 = pneg %p283
        %s496 = sand.u32 %s36, 1
        %s497 = scalar_lea.sflag [#allocation17], %s496
        %s498 = sand.u32 %s273, 1
        %s499 = smul.addr %s498, 64
        %s500 = scalar_lea.vmem [#allocation16], %s499
        %p501 = pneg %p307
        %p502 = pneg %p304
        %s503 = smul.u32 4, %s36
        %s504 = ssub.s32 1, %s36
        %s505 = smul.u32 4, %s504
        %s506 = smul.u32 4, %s36
        %s507 = ssub.s32 1, %s36
        %s508 = smul.u32 4, %s507
        %p510 = scmp.eq.s32.totalorder %s36, 0
        // Predicated region
        $region77: #{tpu_custom_call.1} parent=55 // pred_check
          %p511 = pneg %p510
        $region78: #{tpu_custom_call.1} parent=55 // pred_check_branch
          %513 = sbr.rel (%p511) target = $region80
        $region79: #{tpu_custom_call.1} parent=55 // pred_region
          %514 = vst [vmem:[#allocation4] sm:$0xff] 0.0
          %515 = vst [vmem:[#allocation4 + $0x8] sm:$0xff] 0.0
          %516 = vst [vmem:[#allocation5] sm:$0xff] 0.0
          %517 = vst [vmem:[#allocation5 + $0x8] sm:$0xff] 0.0
        $region80: #{tpu_custom_call.1} parent=55 // pred_fallthru
          _
        %v518 = vld [vmem:[%s433] sm:$0xf]
        %v519 = vld [vmem:[%s433 + $0x4] sm:$0xf]
        %v520 = vld [vmem:[%s433 + $0x8] sm:$0xf]
        %v521 = vld [vmem:[%s433 + $0xc] sm:$0xf]
        %v522 = vld [vmem:[%s433 + $0x10] sm:$0xf]
        %v523 = vld [vmem:[%s433 + $0x14] sm:$0xf]
        %v524 = vld [vmem:[%s433 + $0x18] sm:$0xf]
        %v525 = vld [vmem:[%s433 + $0x1c] sm:$0xf]
        %v526 = vld [vmem:[%s442] sm:$0xf]
        %v527 = vld [vmem:[%s442 + $0x4] sm:$0xf]
        %v528 = vld [vmem:[%s442 + $0x8] sm:$0xf]
        %v529 = vld [vmem:[%s442 + $0xc] sm:$0xf]
        %v530 = vld [vmem:[%s442 + $0x10] sm:$0xf]
        %v531 = vld [vmem:[%s442 + $0x14] sm:$0xf]
        %v532 = vld [vmem:[%s442 + $0x18] sm:$0xf]
        %v533 = vld [vmem:[%s442 + $0x1c] sm:$0xf]
        %v534 = vld [vmem:[#allocation11] sm:$0xff]
        %v535 = vld [vmem:[#allocation11 + $0x8] sm:$0xf]
        %v536 = vld [vmem:[#allocation11 + $0xc] sm:$0xff]
        %v537 = vld [vmem:[#allocation11 + $0x14] sm:$0xf]
        %v538 = vld [vmem:[#allocation11 + $0x18] sm:$0xff]
        %v539 = vld [vmem:[#allocation11 + $0x20] sm:$0xf]
        %v540 = vld [vmem:[#allocation11 + $0x24] sm:$0xff]
        %v541 = vld [vmem:[#allocation11 + $0x2c] sm:$0xf]
        %v542 = vld [vmem:[#allocation11 + $0x30] sm:$0xff]
        %v543 = vld [vmem:[#allocation11 + $0x38] sm:$0xf]
        %v544 = vld [vmem:[#allocation11 + $0x3c] sm:$0xff]
        %v545 = vld [vmem:[#allocation11 + $0x44] sm:$0xf]
        %v546 = vld [vmem:[#allocation11 + $0x48] sm:$0xff]
        %v547 = vld [vmem:[#allocation11 + $0x50] sm:$0xf]
        %v548 = vld [vmem:[#allocation11 + $0x54] sm:$0xff]
        %v549 = vld [vmem:[#allocation11 + $0x5c] sm:$0xf]
        %v550 = vld [vmem:[#allocation11 + $0x60] sm:$0xff]
        %v551 = vld [vmem:[#allocation11 + $0x68] sm:$0xf]
        %v552 = vld [vmem:[#allocation11 + $0x6c] sm:$0xff]
        %v553 = vld [vmem:[#allocation11 + $0x74] sm:$0xf]
        %v554 = vld [vmem:[#allocation11 + $0x78] sm:$0xff]
        %v555 = vld [vmem:[#allocation11 + $0x80] sm:$0xf]
        %v556 = vld [vmem:[#allocation11 + $0x84] sm:$0xff]
        %v557 = vld [vmem:[#allocation11 + $0x8c] sm:$0xf]
        %v558 = vld [vmem:[#allocation11 + $0x90] sm:$0xff]
        %v559 = vld [vmem:[#allocation11 + $0x98] sm:$0xf]
        %v560 = vld [vmem:[#allocation11 + $0x9c] sm:$0xff]
        %v561 = vld [vmem:[#allocation11 + $0xa4] sm:$0xf]
        %v562 = vld [vmem:[#allocation11 + $0xa8] sm:$0xff]
        %v563 = vld [vmem:[#allocation11 + $0xb0] sm:$0xf]
        %v564 = vld [vmem:[#allocation11 + $0xb4] sm:$0xff]
        %v565 = vld [vmem:[#allocation11 + $0xbc] sm:$0xf]
        %v566 = vld [vmem:[%s5] sm:$0x7]
        %v568 = vlaneseq
        %v569 = vshrl.u32 %v568, 7
        %v570 = vsub.s32 0, %v569
        %v571 = vrot.slane %v566, %v570
        %v572 = vlaneseq
        %v573 = vshrl.u32 %v572, 7
        %v574 = vsub.s32 1, %v573
        %v575 = vrot.slane %v566, %v574
        %v576 = vlaneseq
        %v577 = vshrl.u32 %v576, 7
        %v578 = vsub.s32 2, %v577
        %v579 = vrot.slane %v566, %v578
        %v591 = vunpack.c.l.b16 %v518
        %v592 = vunpack.c.l.b16 %v519
        %v593 = vunpack.c.l.b16 %v520
        %v594 = vunpack.c.l.b16 %v521
        %v595 = vunpack.c.l.b16 %v522
        %v596 = vunpack.c.l.b16 %v523
        %v597 = vunpack.c.l.b16 %v524
        %v598 = vunpack.c.l.b16 %v525
        %v599 = vpack.c.b16 %v592, %v591
        %v600 = vpack.c.b16 %v594, %v593
        %v601 = vpack.c.b16 %v596, %v595
        %v602 = vpack.c.b16 %v598, %v597
        %v639 = vunpack.c.l.b16 %v534
        %v640 = vunpack.c.h.b16 %v534
        %v641 = vunpack.c.l.b16 %v535
        %v642 = vunpack.c.l.b16 %v536
        %v643 = vunpack.c.h.b16 %v536
        %v644 = vunpack.c.l.b16 %v537
        %v645 = vunpack.c.l.b16 %v538
        %v646 = vunpack.c.h.b16 %v538
        %v647 = vunpack.c.l.b16 %v539
        %v648 = vunpack.c.l.b16 %v540
        %v649 = vunpack.c.h.b16 %v540
        %v650 = vunpack.c.l.b16 %v541
        %v651 = vunpack.c.l.b16 %v542
        %v652 = vunpack.c.h.b16 %v542
        %v653 = vunpack.c.l.b16 %v543
        %v654 = vunpack.c.l.b16 %v544
        %v655 = vunpack.c.h.b16 %v544
        %v656 = vunpack.c.l.b16 %v545
        %v657 = vunpack.c.l.b16 %v546
        %v658 = vunpack.c.h.b16 %v546
        %v659 = vunpack.c.l.b16 %v547
        %v660 = vunpack.c.l.b16 %v548
        %v661 = vunpack.c.h.b16 %v548
        %v662 = vunpack.c.l.b16 %v549
        %v663 = vunpack.c.l.b16 %v550
        %v664 = vunpack.c.h.b16 %v550
        %v665 = vunpack.c.l.b16 %v551
        %v666 = vunpack.c.l.b16 %v552
        %v667 = vunpack.c.h.b16 %v552
        %v668 = vunpack.c.l.b16 %v553
        %v669 = vunpack.c.l.b16 %v554
        %v670 = vunpack.c.h.b16 %v554
        %v671 = vunpack.c.l.b16 %v555
        %v672 = vunpack.c.l.b16 %v556
        %v673 = vunpack.c.h.b16 %v556
        %v674 = vunpack.c.l.b16 %v557
        %v675 = vunpack.c.l.b16 %v558
        %v676 = vunpack.c.h.b16 %v558
        %v677 = vunpack.c.l.b16 %v559
        %v678 = vunpack.c.l.b16 %v560
        %v679 = vunpack.c.h.b16 %v560
        %v680 = vunpack.c.l.b16 %v561
        %v681 = vunpack.c.l.b16 %v562
        %v682 = vunpack.c.h.b16 %v562
        %v683 = vunpack.c.l.b16 %v563
        %v684 = vunpack.c.l.b16 %v564
        %v685 = vunpack.c.h.b16 %v564
        %v686 = vunpack.c.l.b16 %v565
        %v687 = vpack.c.b16 %v642, %v639
        %v688 = vpack.c.b16 %v643, %v640
        %v689 = vpack.c.b16 %v644, %v641
        %v690 = vpack.c.b16 %v648, %v645
        %v691 = vpack.c.b16 %v649, %v646
        %v692 = vpack.c.b16 %v650, %v647
        %v693 = vpack.c.b16 %v654, %v651
        %v694 = vpack.c.b16 %v655, %v652
        %v695 = vpack.c.b16 %v656, %v653
        %v696 = vpack.c.b16 %v660, %v657
        %v697 = vpack.c.b16 %v661, %v658
        %v698 = vpack.c.b16 %v662, %v659
        %v699 = vpack.c.b16 %v666, %v663
        %v700 = vpack.c.b16 %v667, %v664
        %v701 = vpack.c.b16 %v668, %v665
        %v702 = vpack.c.b16 %v672, %v669
        %v703 = vpack.c.b16 %v673, %v670
        %v704 = vpack.c.b16 %v674, %v671
        %v705 = vpack.c.b16 %v678, %v675
        %v706 = vpack.c.b16 %v679, %v676
        %v707 = vpack.c.b16 %v680, %v677
        %v708 = vpack.c.b16 %v684, %v681
        %v709 = vpack.c.b16 %v685, %v682
        %v710 = vpack.c.b16 %v686, %v683
        %735 = vmatprep.subr.bf16.mxu0 %v688
        %736 = vmatpush1.bf16.msra.mxu0 %v687
        %737 = vmatprep.subr.bf16.mxu0 %v691
        %738 = vmatpush1.bf16.msra.mxu0 %v690
        %739 = vmatprep.subr.bf16.mxu0 %v694
        %740 = vmatpush1.bf16.msra.mxu0 %v693
        %741 = vmatprep.subr.bf16.mxu0 %v697
        %742 = vmatpush1.bf16.msra.mxu0 %v696
        %743 = vmatprep.subr.bf16.mxu0 %v700
        %744 = vmatpush1.bf16.msra.mxu0 %v699
        %745 = vmatprep.subr.bf16.mxu0 %v703
        %746 = vmatpush1.bf16.msra.mxu0 %v702
        %747 = vmatprep.subr.bf16.mxu0 %v706
        %748 = vmatpush1.bf16.msra.mxu0 %v705
        %749 = vmatprep.subr.bf16.mxu0 %v709
        %750 = vmatpush1.bf16.msra.mxu0 %v708
        %751 = vmatprep.subr.bf16.mxu0 0
        %752 = vmatpush1.bf16.msra.mxu0 0
        %753 = vmatprep.subr.bf16.mxu0 0
        %754 = vmatpush1.bf16.msra.mxu0 0
        %755 = vmatprep.subr.bf16.mxu0 0
        %756 = vmatpush1.bf16.msra.mxu0 0
        %757 = vmatprep.subr.bf16.mxu0 0
        %758 = vmatpush1.bf16.msra.mxu0 0
        %759 = vmatprep.subr.bf16.mxu0 0
        %760 = vmatpush1.bf16.msra.mxu0 0
        %761 = vmatprep.subr.bf16.mxu0 0
        %762 = vmatpush1.bf16.msra.mxu0 0
        %763 = vmatprep.subr.bf16.mxu0 0
        %764 = vmatpush1.bf16.msra.mxu0 0
        %765 = vmatprep.subr.bf16.mxu0 0
        %766 = vmatpush1.bf16.msra.mxu0 0
        %767 = vmatprep.mubr.bf16.mxu0 0
        %768 = vmatmul.mubr.bf16.gmra.mrb[0].mxu0 %v599
        %v769 = vpop.f32.mrb[0].mxu0
        %v770 = vadd.f32 %v571, %v769
        %v771 = vpop.f32.mrb[0].mxu0
        %v772 = vadd.f32 %v575, %v771
        %v773 = vpop.f32.mrb[0].mxu0
        %v774 = vadd.f32 %v571, %v773
        %v775 = vpop.f32.mrb[0].mxu0
        %v776 = vadd.f32 %v575, %v775
        %777 = vmatprep.mubr.bf16.mxu0 0
        %778 = vmatmul.mubr.bf16.gmra.mrb[0].mxu0 %v600
        %v779 = vpop.f32.mrb[0].mxu0
        %v780 = vadd.f32 %v571, %v779
        %v781 = vpop.f32.mrb[0].mxu0
        %v782 = vadd.f32 %v575, %v781
        %v783 = vpop.f32.mrb[0].mxu0
        %v784 = vadd.f32 %v571, %v783
        %v785 = vpop.f32.mrb[0].mxu0
        %v786 = vadd.f32 %v575, %v785
        %787 = vmatprep.mubr.bf16.mxu0 0
        %788 = vmatmul.mubr.bf16.gmra.mrb[0].mxu0 %v601
        %v789 = vpop.f32.mrb[0].mxu0
        %v790 = vadd.f32 %v571, %v789
        %v791 = vpop.f32.mrb[0].mxu0
        %v792 = vadd.f32 %v575, %v791
        %v793 = vpop.f32.mrb[0].mxu0
        %v794 = vadd.f32 %v571, %v793
        %v795 = vpop.f32.mrb[0].mxu0
        %v796 = vadd.f32 %v575, %v795
        %797 = vmatprep.mubr.bf16.mxu0 0
        %798 = vmatmul.mubr.bf16.gmra.mrb[0].mxu0 %v602
        %v799 = vpop.f32.mrb[0].mxu0
        %v800 = vadd.f32 %v571, %v799
        %v801 = vpop.f32.mrb[0].mxu0
        %v802 = vadd.f32 %v575, %v801
        %v803 = vpop.f32.mrb[0].mxu0
        %v804 = vadd.f32 %v571, %v803
        %v805 = vpop.f32.mrb[0].mxu0
        %v806 = vadd.f32 %v575, %v805
        %807 = vdwg.mxu0
        %808 = vmatprep.subr.bf16.mxu0 0
        %809 = vmatpush1.bf16.msra.mxu0 %v689
        %810 = vmatprep.subr.bf16.mxu0 0
        %811 = vmatpush1.bf16.msra.mxu0 %v692
        %812 = vmatprep.subr.bf16.mxu0 0
        %813 = vmatpush1.bf16.msra.mxu0 %v695
        %814 = vmatprep.subr.bf16.mxu0 0
        %815 = vmatpush1.bf16.msra.mxu0 %v698
        %816 = vmatprep.subr.bf16.mxu0 0
        %817 = vmatpush1.bf16.msra.mxu0 %v701
        %818 = vmatprep.subr.bf16.mxu0 0
        %819 = vmatpush1.bf16.msra.mxu0 %v704
        %820 = vmatprep.subr.bf16.mxu0 0
        %821 = vmatpush1.bf16.msra.mxu0 %v707
        %822 = vmatprep.subr.bf16.mxu0 0
        %823 = vmatpush1.bf16.msra.mxu0 %v710
        %824 = vmatprep.subr.bf16.mxu0 0
        %825 = vmatpush1.bf16.msra.mxu0 0
        %826 = vmatprep.subr.bf16.mxu0 0
        %827 = vmatpush1.bf16.msra.mxu0 0
        %828 = vmatprep.subr.bf16.mxu0 0
        %829 = vmatpush1.bf16.msra.mxu0 0
        %830 = vmatprep.subr.bf16.mxu0 0
        %831 = vmatpush1.bf16.msra.mxu0 0
        %832 = vmatprep.subr.bf16.mxu0 0
        %833 = vmatpush1.bf16.msra.mxu0 0
        %834 = vmatprep.subr.bf16.mxu0 0
        %835 = vmatpush1.bf16.msra.mxu0 0
        %836 = vmatprep.subr.bf16.mxu0 0
        %837 = vmatpush1.bf16.msra.mxu0 0
        %838 = vmatprep.subr.bf16.mxu0 0
        %839 = vmatpush1.bf16.msra.mxu0 0
        %840 = vmatprep.mubr.bf16.mxu0 0
        %841 = vmatmul.mubr.bf16.gmra.mrb[0].mxu0 %v599
        %v842 = vpop.f32.mrb[0].mxu0
        %v843 = vadd.f32 %v579, %v842
        %v844 = vpop.f32.mrb[0].mxu0
        %v845 = vpop.f32.mrb[0].mxu0
        %v846 = vadd.f32 %v579, %v845
        %v847 = vpop.f32.mrb[0].mxu0
        %848 = vmatprep.mubr.bf16.mxu0 0
        %849 = vmatmul.mubr.bf16.gmra.mrb[0].mxu0 %v600
        %v850 = vpop.f32.mrb[0].mxu0
        %v851 = vadd.f32 %v579, %v850
        %v852 = vpop.f32.mrb[0].mxu0
        %v853 = vpop.f32.mrb[0].mxu0
        %v854 = vadd.f32 %v579, %v853
        %v855 = vpop.f32.mrb[0].mxu0
        %856 = vmatprep.mubr.bf16.mxu0 0
        %857 = vmatmul.mubr.bf16.gmra.mrb[0].mxu0 %v601
        %v858 = vpop.f32.mrb[0].mxu0
        %v859 = vadd.f32 %v579, %v858
        %v860 = vpop.f32.mrb[0].mxu0
        %v861 = vpop.f32.mrb[0].mxu0
        %v862 = vadd.f32 %v579, %v861
        %v863 = vpop.f32.mrb[0].mxu0
        %864 = vmatprep.mubr.bf16.mxu0 0
        %865 = vmatmul.mubr.bf16.gmra.mrb[0].mxu0 %v602
        %v866 = vpop.f32.mrb[0].mxu0
        %v867 = vadd.f32 %v579, %v866
        %v868 = vpop.f32.mrb[0].mxu0
        %v869 = vpop.f32.mrb[0].mxu0
        %v870 = vadd.f32 %v579, %v869
        %v871 = vpop.f32.mrb[0].mxu0
        %872 = vdwg.mxu0
        %873 = vst [vmem:[#allocation2] sm:$0xff] %v770
        %874 = vst [vmem:[#allocation2 + $0x8] sm:$0xff] %v772
        %875 = vst [vmem:[#allocation2 + $0x10] sm:$0xff] %v843
        %876 = vst [vmem:[#allocation2 + $0x18] sm:$0xff] %v774
        %877 = vst [vmem:[#allocation2 + $0x20] sm:$0xff] %v776
        %878 = vst [vmem:[#allocation2 + $0x28] sm:$0xff] %v846
        %879 = vst [vmem:[#allocation2 + $0x30] sm:$0xff] %v780
        %880 = vst [vmem:[#allocation2 + $0x38] sm:$0xff] %v782
        %881 = vst [vmem:[#allocation2 + $0x40] sm:$0xff] %v851
        %882 = vst [vmem:[#allocation2 + $0x48] sm:$0xff] %v784
        %883 = vst [vmem:[#allocation2 + $0x50] sm:$0xff] %v786
        %884 = vst [vmem:[#allocation2 + $0x58] sm:$0xff] %v854
        %885 = vst [vmem:[#allocation2 + $0x60] sm:$0xff] %v790
        %886 = vst [vmem:[#allocation2 + $0x68] sm:$0xff] %v792
        %887 = vst [vmem:[#allocation2 + $0x70] sm:$0xff] %v859
        %888 = vst [vmem:[#allocation2 + $0x78] sm:$0xff] %v794
        %889 = vst [vmem:[#allocation2 + $0x80] sm:$0xff] %v796
        %890 = vst [vmem:[#allocation2 + $0x88] sm:$0xff] %v862
        %891 = vst [vmem:[#allocation2 + $0x90] sm:$0xff] %v800
        %892 = vst [vmem:[#allocation2 + $0x98] sm:$0xff] %v802
        %893 = vst [vmem:[#allocation2 + $0xa0] sm:$0xff] %v867
        %894 = vst [vmem:[#allocation2 + $0xa8] sm:$0xff] %v804
        %895 = vst [vmem:[#allocation2 + $0xb0] sm:$0xff] %v806
        %896 = vst [vmem:[#allocation2 + $0xb8] sm:$0xff] %v870
        %v897 = vld [vmem:[#allocation12] sm:$0xff]
        %v898 = vld [vmem:[#allocation12 + $0x8] sm:$0xf]
        %v899 = vld [vmem:[#allocation12 + $0xc] sm:$0xff]
        %v900 = vld [vmem:[#allocation12 + $0x14] sm:$0xf]
        %v901 = vld [vmem:[#allocation12 + $0x18] sm:$0xff]
        %v902 = vld [vmem:[#allocation12 + $0x20] sm:$0xf]
        %v903 = vld [vmem:[#allocation12 + $0x24] sm:$0xff]
        %v904 = vld [vmem:[#allocation12 + $0x2c] sm:$0xf]
        %v905 = vld [vmem:[#allocation12 + $0x30] sm:$0xff]
        %v906 = vld [vmem:[#allocation12 + $0x38] sm:$0xf]
        %v907 = vld [vmem:[#allocation12 + $0x3c] sm:$0xff]
        %v908 = vld [vmem:[#allocation12 + $0x44] sm:$0xf]
        %v909 = vld [vmem:[#allocation12 + $0x48] sm:$0xff]
        %v910 = vld [vmem:[#allocation12 + $0x50] sm:$0xf]
        %v911 = vld [vmem:[#allocation12 + $0x54] sm:$0xff]
        %v912 = vld [vmem:[#allocation12 + $0x5c] sm:$0xf]
        %v913 = vld [vmem:[#allocation12 + $0x60] sm:$0xff]
        %v914 = vld [vmem:[#allocation12 + $0x68] sm:$0xf]
        %v915 = vld [vmem:[#allocation12 + $0x6c] sm:$0xff]
        %v916 = vld [vmem:[#allocation12 + $0x74] sm:$0xf]
        %v917 = vld [vmem:[#allocation12 + $0x78] sm:$0xff]
        %v918 = vld [vmem:[#allocation12 + $0x80] sm:$0xf]
        %v919 = vld [vmem:[#allocation12 + $0x84] sm:$0xff]
        %v920 = vld [vmem:[#allocation12 + $0x8c] sm:$0xf]
        %v921 = vld [vmem:[#allocation12 + $0x90] sm:$0xff]
        %v922 = vld [vmem:[#allocation12 + $0x98] sm:$0xf]
        %v923 = vld [vmem:[#allocation12 + $0x9c] sm:$0xff]
        %v924 = vld [vmem:[#allocation12 + $0xa4] sm:$0xf]
        %v925 = vld [vmem:[#allocation12 + $0xa8] sm:$0xff]
        %v926 = vld [vmem:[#allocation12 + $0xb0] sm:$0xf]
        %v927 = vld [vmem:[#allocation12 + $0xb4] sm:$0xff]
        %v928 = vld [vmem:[#allocation12 + $0xbc] sm:$0xf]
        %v929 = vld [vmem:[%s6] sm:$0x7]
        %v931 = vlaneseq
        %v932 = vshrl.u32 %v931, 7
        %v933 = vsub.s32 0, %v932
        %v934 = vrot.slane %v929, %v933
        %v935 = vlaneseq
        %v936 = vshrl.u32 %v935, 7
        %v937 = vsub.s32 1, %v936
        %v938 = vrot.slane %v929, %v937
        %v939 = vlaneseq
        %v940 = vshrl.u32 %v939, 7
        %v941 = vsub.s32 2, %v940
        %v942 = vrot.slane %v929, %v941
        %v954 = vunpack.c.l.b16 %v526
        %v955 = vunpack.c.l.b16 %v527
        %v956 = vunpack.c.l.b16 %v528
        %v957 = vunpack.c.l.b16 %v529
        %v958 = vunpack.c.l.b16 %v530
        %v959 = vunpack.c.l.b16 %v531
        %v960 = vunpack.c.l.b16 %v532
        %v961 = vunpack.c.l.b16 %v533
        %v962 = vpack.c.b16 %v955, %v954
        %v963 = vpack.c.b16 %v957, %v956
        %v964 = vpack.c.b16 %v959, %v958
        %v965 = vpack.c.b16 %v961, %v960
        %v1002 = vunpack.c.l.b16 %v897
        %v1003 = vunpack.c.h.b16 %v897
        %v1004 = vunpack.c.l.b16 %v898
        %v1005 = vunpack.c.l.b16 %v899
        %v1006 = vunpack.c.h.b16 %v899
        %v1007 = vunpack.c.l.b16 %v900
        %v1008 = vunpack.c.l.b16 %v901
        %v1009 = vunpack.c.h.b16 %v901
        %v1010 = vunpack.c.l.b16 %v902
        %v1011 = vunpack.c.l.b16 %v903
        %v1012 = vunpack.c.h.b16 %v903
        %v1013 = vunpack.c.l.b16 %v904
        %v1014 = vunpack.c.l.b16 %v905
        %v1015 = vunpack.c.h.b16 %v905
        %v1016 = vunpack.c.l.b16 %v906
        %v1017 = vunpack.c.l.b16 %v907
        %v1018 = vunpack.c.h.b16 %v907
        %v1019 = vunpack.c.l.b16 %v908
        %v1020 = vunpack.c.l.b16 %v909
        %v1021 = vunpack.c.h.b16 %v909
        %v1022 = vunpack.c.l.b16 %v910
        %v1023 = vunpack.c.l.b16 %v911
        %v1024 = vunpack.c.h.b16 %v911
        %v1025 = vunpack.c.l.b16 %v912
        %v1026 = vunpack.c.l.b16 %v913
        %v1027 = vunpack.c.h.b16 %v913
        %v1028 = vunpack.c.l.b16 %v914
        %v1029 = vunpack.c.l.b16 %v915
        %v1030 = vunpack.c.h.b16 %v915
        %v1031 = vunpack.c.l.b16 %v916
        %v1032 = vunpack.c.l.b16 %v917
        %v1033 = vunpack.c.h.b16 %v917
        %v1034 = vunpack.c.l.b16 %v918
        %v1035 = vunpack.c.l.b16 %v919
        %v1036 = vunpack.c.h.b16 %v919
        %v1037 = vunpack.c.l.b16 %v920
        %v1038 = vunpack.c.l.b16 %v921
        %v1039 = vunpack.c.h.b16 %v921
        %v1040 = vunpack.c.l.b16 %v922
        %v1041 = vunpack.c.l.b16 %v923
        %v1042 = vunpack.c.h.b16 %v923
        %v1043 = vunpack.c.l.b16 %v924
        %v1044 = vunpack.c.l.b16 %v925
        %v1045 = vunpack.c.h.b16 %v925
        %v1046 = vunpack.c.l.b16 %v926
        %v1047 = vunpack.c.l.b16 %v927
        %v1048 = vunpack.c.h.b16 %v927
        %v1049 = vunpack.c.l.b16 %v928
        %v1050 = vpack.c.b16 %v1005, %v1002
        %v1051 = vpack.c.b16 %v1006, %v1003
        %v1052 = vpack.c.b16 %v1007, %v1004
        %v1053 = vpack.c.b16 %v1011, %v1008
        %v1054 = vpack.c.b16 %v1012, %v1009
        %v1055 = vpack.c.b16 %v1013, %v1010
        %v1056 = vpack.c.b16 %v1017, %v1014
        %v1057 = vpack.c.b16 %v1018, %v1015
        %v1058 = vpack.c.b16 %v1019, %v1016
        %v1059 = vpack.c.b16 %v1023, %v1020
        %v1060 = vpack.c.b16 %v1024, %v1021
        %v1061 = vpack.c.b16 %v1025, %v1022
        %v1062 = vpack.c.b16 %v1029, %v1026
        %v1063 = vpack.c.b16 %v1030, %v1027
        %v1064 = vpack.c.b16 %v1031, %v1028
        %v1065 = vpack.c.b16 %v1035, %v1032
        %v1066 = vpack.c.b16 %v1036, %v1033
        %v1067 = vpack.c.b16 %v1037, %v1034
        %v1068 = vpack.c.b16 %v1041, %v1038
        %v1069 = vpack.c.b16 %v1042, %v1039
        %v1070 = vpack.c.b16 %v1043, %v1040
        %v1071 = vpack.c.b16 %v1047, %v1044
        %v1072 = vpack.c.b16 %v1048, %v1045
        %v1073 = vpack.c.b16 %v1049, %v1046
        %1098 = vmatprep.subr.bf16.mxu0 %v1051
        %1099 = vmatpush1.bf16.msra.mxu0 %v1050
        %1100 = vmatprep.subr.bf16.mxu0 %v1054
        %1101 = vmatpush1.bf16.msra.mxu0 %v1053
        %1102 = vmatprep.subr.bf16.mxu0 %v1057
        %1103 = vmatpush1.bf16.msra.mxu0 %v1056
        %1104 = vmatprep.subr.bf16.mxu0 %v1060
        %1105 = vmatpush1.bf16.msra.mxu0 %v1059
        %1106 = vmatprep.subr.bf16.mxu0 %v1063
        %1107 = vmatpush1.bf16.msra.mxu0 %v1062
        %1108 = vmatprep.subr.bf16.mxu0 %v1066
        %1109 = vmatpush1.bf16.msra.mxu0 %v1065
        %1110 = vmatprep.subr.bf16.mxu0 %v1069
        %1111 = vmatpush1.bf16.msra.mxu0 %v1068
        %1112 = vmatprep.subr.bf16.mxu0 %v1072
        %1113 = vmatpush1.bf16.msra.mxu0 %v1071
        %1114 = vmatprep.subr.bf16.mxu0 0
        %1115 = vmatpush1.bf16.msra.mxu0 0
        %1116 = vmatprep.subr.bf16.mxu0 0
        %1117 = vmatpush1.bf16.msra.mxu0 0
        %1118 = vmatprep.subr.bf16.mxu0 0
        %1119 = vmatpush1.bf16.msra.mxu0 0
        %1120 = vmatprep.subr.bf16.mxu0 0
        %1121 = vmatpush1.bf16.msra.mxu0 0
        %1122 = vmatprep.subr.bf16.mxu0 0
        %1123 = vmatpush1.bf16.msra.mxu0 0
        %1124 = vmatprep.subr.bf16.mxu0 0
        %1125 = vmatpush1.bf16.msra.mxu0 0
        %1126 = vmatprep.subr.bf16.mxu0 0
        %1127 = vmatpush1.bf16.msra.mxu0 0
        %1128 = vmatprep.subr.bf16.mxu0 0
        %1129 = vmatpush1.bf16.msra.mxu0 0
        %1130 = vmatprep.mubr.bf16.mxu0 0
        %1131 = vmatmul.mubr.bf16.gmra.mrb[0].mxu0 %v962
        %v1132 = vpop.f32.mrb[0].mxu0
        %v1133 = vadd.f32 %v934, %v1132
        %v1134 = vpop.f32.mrb[0].mxu0
        %v1135 = vadd.f32 %v938, %v1134
        %v1136 = vpop.f32.mrb[0].mxu0
        %v1137 = vadd.f32 %v934, %v1136
        %v1138 = vpop.f32.mrb[0].mxu0
        %v1139 = vadd.f32 %v938, %v1138
        %1140 = vmatprep.mubr.bf16.mxu0 0
        %1141 = vmatmul.mubr.bf16.gmra.mrb[0].mxu0 %v963
        %v1142 = vpop.f32.mrb[0].mxu0
        %v1143 = vadd.f32 %v934, %v1142
        %v1144 = vpop.f32.mrb[0].mxu0
        %v1145 = vadd.f32 %v938, %v1144
        %v1146 = vpop.f32.mrb[0].mxu0
        %v1147 = vadd.f32 %v934, %v1146
        %v1148 = vpop.f32.mrb[0].mxu0
        %v1149 = vadd.f32 %v938, %v1148
        %1150 = vmatprep.mubr.bf16.mxu0 0
        %1151 = vmatmul.mubr.bf16.gmra.mrb[0].mxu0 %v964
        %v1152 = vpop.f32.mrb[0].mxu0
        %v1153 = vadd.f32 %v934, %v1152
        %v1154 = vpop.f32.mrb[0].mxu0
        %v1155 = vadd.f32 %v938, %v1154
        %v1156 = vpop.f32.mrb[0].mxu0
        %v1157 = vadd.f32 %v934, %v1156
        %v1158 = vpop.f32.mrb[0].mxu0
        %v1159 = vadd.f32 %v938, %v1158
        %1160 = vmatprep.mubr.bf16.mxu0 0
        %1161 = vmatmul.mubr.bf16.gmra.mrb[0].mxu0 %v965
        %v1162 = vpop.f32.mrb[0].mxu0
        %v1163 = vadd.f32 %v934, %v1162
        %v1164 = vpop.f32.mrb[0].mxu0
        %v1165 = vadd.f32 %v938, %v1164
        %v1166 = vpop.f32.mrb[0].mxu0
        %v1167 = vadd.f32 %v934, %v1166
        %v1168 = vpop.f32.mrb[0].mxu0
        %v1169 = vadd.f32 %v938, %v1168
        %1170 = vdwg.mxu0
        %1171 = vmatprep.subr.bf16.mxu0 0
        %1172 = vmatpush1.bf16.msra.mxu0 %v1052
        %1173 = vmatprep.subr.bf16.mxu0 0
        %1174 = vmatpush1.bf16.msra.mxu0 %v1055
        %1175 = vmatprep.subr.bf16.mxu0 0
        %1176 = vmatpush1.bf16.msra.mxu0 %v1058
        %1177 = vmatprep.subr.bf16.mxu0 0
        %1178 = vmatpush1.bf16.msra.mxu0 %v1061
        %1179 = vmatprep.subr.bf16.mxu0 0
        %1180 = vmatpush1.bf16.msra.mxu0 %v1064
        %1181 = vmatprep.subr.bf16.mxu0 0
        %1182 = vmatpush1.bf16.msra.mxu0 %v1067
        %1183 = vmatprep.subr.bf16.mxu0 0
        %1184 = vmatpush1.bf16.msra.mxu0 %v1070
        %1185 = vmatprep.subr.bf16.mxu0 0
        %1186 = vmatpush1.bf16.msra.mxu0 %v1073
        %1187 = vmatprep.subr.bf16.mxu0 0
        %1188 = vmatpush1.bf16.msra.mxu0 0
        %1189 = vmatprep.subr.bf16.mxu0 0
        %1190 = vmatpush1.bf16.msra.mxu0 0
        %1191 = vmatprep.subr.bf16.mxu0 0
        %1192 = vmatpush1.bf16.msra.mxu0 0
        %1193 = vmatprep.subr.bf16.mxu0 0
        %1194 = vmatpush1.bf16.msra.mxu0 0
        %1195 = vmatprep.subr.bf16.mxu0 0
        %1196 = vmatpush1.bf16.msra.mxu0 0
        %1197 = vmatprep.subr.bf16.mxu0 0
        %1198 = vmatpush1.bf16.msra.mxu0 0
        %1199 = vmatprep.subr.bf16.mxu0 0
        %1200 = vmatpush1.bf16.msra.mxu0 0
        %1201 = vmatprep.subr.bf16.mxu0 0
        %1202 = vmatpush1.bf16.msra.mxu0 0
        %1203 = vmatprep.mubr.bf16.mxu0 0
        %1204 = vmatmul.mubr.bf16.gmra.mrb[0].mxu0 %v962
        %v1205 = vpop.f32.mrb[0].mxu0
        %v1206 = vadd.f32 %v942, %v1205
        %v1207 = vpop.f32.mrb[0].mxu0
        %v1208 = vpop.f32.mrb[0].mxu0
        %v1209 = vadd.f32 %v942, %v1208
        %v1210 = vpop.f32.mrb[0].mxu0
        %1211 = vmatprep.mubr.bf16.mxu0 0
        %1212 = vmatmul.mubr.bf16.gmra.mrb[0].mxu0 %v963
        %v1213 = vpop.f32.mrb[0].mxu0
        %v1214 = vadd.f32 %v942, %v1213
        %v1215 = vpop.f32.mrb[0].mxu0
        %v1216 = vpop.f32.mrb[0].mxu0
        %v1217 = vadd.f32 %v942, %v1216
        %v1218 = vpop.f32.mrb[0].mxu0
        %1219 = vmatprep.mubr.bf16.mxu0 0
        %1220 = vmatmul.mubr.bf16.gmra.mrb[0].mxu0 %v964
        %v1221 = vpop.f32.mrb[0].mxu0
        %v1222 = vadd.f32 %v942, %v1221
        %v1223 = vpop.f32.mrb[0].mxu0
        %v1224 = vpop.f32.mrb[0].mxu0
        %v1225 = vadd.f32 %v942, %v1224
        %v1226 = vpop.f32.mrb[0].mxu0
        %1227 = vmatprep.mubr.bf16.mxu0 0
        %1228 = vmatmul.mubr.bf16.gmra.mrb[0].mxu0 %v965
        %v1229 = vpop.f32.mrb[0].mxu0
        %v1230 = vadd.f32 %v942, %v1229
        %v1231 = vpop.f32.mrb[0].mxu0
        %v1232 = vpop.f32.mrb[0].mxu0
        %v1233 = vadd.f32 %v942, %v1232
        %v1234 = vpop.f32.mrb[0].mxu0
        %1235 = vdwg.mxu0
        %1236 = vst [vmem:[#allocation3] sm:$0xff] %v1133
        %1237 = vst [vmem:[#allocation3 + $0x8] sm:$0xff] %v1135
        %1238 = vst [vmem:[#allocation3 + $0x10] sm:$0xff] %v1206
        %1239 = vst [vmem:[#allocation3 + $0x18] sm:$0xff] %v1137
        %1240 = vst [vmem:[#allocation3 + $0x20] sm:$0xff] %v1139
        %1241 = vst [vmem:[#allocation3 + $0x28] sm:$0xff] %v1209
        %1242 = vst [vmem:[#allocation3 + $0x30] sm:$0xff] %v1143
        %1243 = vst [vmem:[#allocation3 + $0x38] sm:$0xff] %v1145
        %1244 = vst [vmem:[#allocation3 + $0x40] sm:$0xff] %v1214
        %1245 = vst [vmem:[#allocation3 + $0x48] sm:$0xff] %v1147
        %1246 = vst [vmem:[#allocation3 + $0x50] sm:$0xff] %v1149
        %1247 = vst [vmem:[#allocation3 + $0x58] sm:$0xff] %v1217
        %1248 = vst [vmem:[#allocation3 + $0x60] sm:$0xff] %v1153
        %1249 = vst [vmem:[#allocation3 + $0x68] sm:$0xff] %v1155
        %1250 = vst [vmem:[#allocation3 + $0x70] sm:$0xff] %v1222
        %1251 = vst [vmem:[#allocation3 + $0x78] sm:$0xff] %v1157
        %1252 = vst [vmem:[#allocation3 + $0x80] sm:$0xff] %v1159
        %1253 = vst [vmem:[#allocation3 + $0x88] sm:$0xff] %v1225
        %1254 = vst [vmem:[#allocation3 + $0x90] sm:$0xff] %v1163
        %1255 = vst [vmem:[#allocation3 + $0x98] sm:$0xff] %v1165
        %1256 = vst [vmem:[#allocation3 + $0xa0] sm:$0xff] %v1230
        %1257 = vst [vmem:[#allocation3 + $0xa8] sm:$0xff] %v1167
        %1258 = vst [vmem:[#allocation3 + $0xb0] sm:$0xff] %v1169
        %1259 = vst [vmem:[#allocation3 + $0xb8] sm:$0xff] %v1233
        %v1260 = vld [vmem:[%s7] sm:$0x1]
        %v1262 = vlaneseq
        %v1263 = vshrl.u32 %v1262, 7
        %v1264 = vsub.s32 0, %v1263
        %v1265 = vrot.slane %v1260, %v1264
        %v1267 = vld [vmem:[%s8] sm:$0x1]
        %v1269 = vlaneseq
        %v1270 = vshrl.u32 %v1269, 7
        %v1271 = vsub.s32 0, %v1270
        %v1272 = vrot.slane %v1267, %v1271
        %v1274 = vld [vmem:[#allocation4] sm:$0xff]
        %v1275 = vld [vmem:[#allocation4 + $0x8] sm:$0xff]
        %v1276 = vld [vmem:[#allocation5] sm:$0xff]
        %v1277 = vld [vmem:[#allocation5 + $0x8] sm:$0xff]
        %v1278 = vld [vmem:[#allocation2] sm:$0xff]
        %v1279 = vld [vmem:[#allocation2 + $0x8] sm:$0xff]
        %v1280 = vld [vmem:[#allocation2 + $0x10] sm:$0xff]
        %v1281 = vld [vmem:[#allocation2 + $0x18] sm:$0xff]
        %v1282 = vld [vmem:[#allocation2 + $0x20] sm:$0xff]
        %v1283 = vld [vmem:[#allocation2 + $0x28] sm:$0xff]
        %s1284 = scalar_lea.vmem [#allocation3], 144
        %v1285 = vld [vmem:[%s1284] sm:$0xff]
        %v1286 = vld [vmem:[%s1284 + $0x8] sm:$0xff]
        %v1287 = vld [vmem:[%s1284 + $0x10] sm:$0xff]
        %v1288 = vld [vmem:[%s1284 + $0x18] sm:$0xff]
        %v1289 = vld [vmem:[%s1284 + $0x20] sm:$0xff]
        %v1290 = vld [vmem:[%s1284 + $0x28] sm:$0xff]
        %v1291 = vpack.c.bf16 %v1275, %v1274
        %v1292 = vpack.c.bf16 %v1277, %v1276
        %v1293 = vld [vmem:[#allocation14] sm:$0xff]
        %v1294 = vld [vmem:[#allocation14 + $0x8] sm:$0xff]
        %v1295 = vld [vmem:[#allocation14 + $0x10] sm:$0xff]
        %v1296 = vld [vmem:[#allocation14 + $0x18] sm:$0xff]
        %v1297 = vld [vmem:[#allocation14 + $0x20] sm:$0xff]
        %v1298 = vld [vmem:[#allocation14 + $0x28] sm:$0xff]
        %v1299 = vld [vmem:[#allocation14 + $0x30] sm:$0xff]
        %v1300 = vld [vmem:[#allocation14 + $0x38] sm:$0xff]
        %v1301 = vld [vmem:[#allocation14 + $0x40] sm:$0xff]
        %v1302 = vld [vmem:[#allocation14 + $0x48] sm:$0xff]
        %v1303 = vld [vmem:[#allocation14 + $0x50] sm:$0xff]
        %v1304 = vld [vmem:[#allocation14 + $0x58] sm:$0xff]
        %v1305 = vld [vmem:[#allocation14 + $0x60] sm:$0xff]
        %v1306 = vld [vmem:[#allocation14 + $0x68] sm:$0xff]
        %v1307 = vld [vmem:[#allocation14 + $0x70] sm:$0xff]
        %v1308 = vld [vmem:[#allocation14 + $0x78] sm:$0xff]
        %v1309 = vld [vmem:[#allocation14 + $0x80] sm:$0xff]
        %v1310 = vld [vmem:[#allocation14 + $0x88] sm:$0xff]
        %v1311 = vld [vmem:[#allocation14 + $0x90] sm:$0xff]
        %v1312 = vld [vmem:[#allocation14 + $0x98] sm:$0xff]
        %v1313 = vld [vmem:[#allocation14 + $0xa0] sm:$0xff]
        %v1314 = vld [vmem:[#allocation14 + $0xa8] sm:$0xff]
        %v1315 = vld [vmem:[#allocation14 + $0xb0] sm:$0xff]
        %v1316 = vld [vmem:[#allocation14 + $0xb8] sm:$0xff]
        %v1317 = vld [vmem:[#allocation14 + $0xc0] sm:$0xff]
        %v1318 = vld [vmem:[#allocation14 + $0xc8] sm:$0xff]
        %v1319 = vld [vmem:[#allocation14 + $0xd0] sm:$0xff]
        %v1320 = vld [vmem:[#allocation14 + $0xd8] sm:$0xff]
        %v1321 = vld [vmem:[#allocation14 + $0xe0] sm:$0xff]
        %v1322 = vld [vmem:[#allocation14 + $0xe8] sm:$0xff]
        %v1323 = vld [vmem:[#allocation14 + $0xf0] sm:$0xff]
        %v1324 = vld [vmem:[#allocation14 + $0xf8] sm:$0xff]
        %v1325 = vld [vmem:[#allocation14 + $0x100] sm:$0xff]
        %v1326 = vld [vmem:[#allocation14 + $0x108] sm:$0xff]
        %v1327 = vld [vmem:[#allocation14 + $0x110] sm:$0xff]
        %v1328 = vld [vmem:[#allocation14 + $0x118] sm:$0xff]
        %v1329 = vld [vmem:[#allocation14 + $0x120] sm:$0xff]
        %v1330 = vld [vmem:[#allocation14 + $0x128] sm:$0xff]
        %v1331 = vld [vmem:[#allocation14 + $0x130] sm:$0xff]
        %v1332 = vld [vmem:[#allocation14 + $0x138] sm:$0xff]
        %v1333 = vld [vmem:[#allocation14 + $0x140] sm:$0xff]
        %v1334 = vld [vmem:[#allocation14 + $0x148] sm:$0xff]
        %v1335 = vld [vmem:[#allocation14 + $0x150] sm:$0xff]
        %v1336 = vld [vmem:[#allocation14 + $0x158] sm:$0xff]
        %v1337 = vld [vmem:[#allocation14 + $0x160] sm:$0xff]
        %v1338 = vld [vmem:[#allocation14 + $0x168] sm:$0xff]
        %v1339 = vld [vmem:[#allocation14 + $0x170] sm:$0xff]
        %v1340 = vld [vmem:[#allocation14 + $0x178] sm:$0xff]
        %v1389 = vunpack.c.l.b16 %v1293
        %v1390 = vunpack.c.h.b16 %v1293
        %v1391 = vunpack.c.l.b16 %v1294
        %v1392 = vunpack.c.h.b16 %v1294
        %v1393 = vunpack.c.l.b16 %v1295
        %v1394 = vunpack.c.h.b16 %v1295
        %v1395 = vunpack.c.l.b16 %v1296
        %v1396 = vunpack.c.h.b16 %v1296
        %v1397 = vunpack.c.l.b16 %v1297
        %v1398 = vunpack.c.h.b16 %v1297
        %v1399 = vunpack.c.l.b16 %v1298
        %v1400 = vunpack.c.h.b16 %v1298
        %v1401 = vunpack.c.l.b16 %v1299
        %v1402 = vunpack.c.h.b16 %v1299
        %v1403 = vunpack.c.l.b16 %v1300
        %v1404 = vunpack.c.h.b16 %v1300
        %v1405 = vunpack.c.l.b16 %v1301
        %v1406 = vunpack.c.h.b16 %v1301
        %v1407 = vunpack.c.l.b16 %v1302
        %v1408 = vunpack.c.h.b16 %v1302
        %v1409 = vunpack.c.l.b16 %v1303
        %v1410 = vunpack.c.h.b16 %v1303
        %v1411 = vunpack.c.l.b16 %v1304
        %v1412 = vunpack.c.h.b16 %v1304
        %v1413 = vunpack.c.l.b16 %v1305
        %v1414 = vunpack.c.h.b16 %v1305
        %v1415 = vunpack.c.l.b16 %v1306
        %v1416 = vunpack.c.h.b16 %v1306
        %v1417 = vunpack.c.l.b16 %v1307
        %v1418 = vunpack.c.h.b16 %v1307
        %v1419 = vunpack.c.l.b16 %v1308
        %v1420 = vunpack.c.h.b16 %v1308
        %v1421 = vunpack.c.l.b16 %v1309
        %v1422 = vunpack.c.h.b16 %v1309
        %v1423 = vunpack.c.l.b16 %v1310
        %v1424 = vunpack.c.h.b16 %v1310
        %v1425 = vunpack.c.l.b16 %v1311
        %v1426 = vunpack.c.h.b16 %v1311
        %v1427 = vunpack.c.l.b16 %v1312
        %v1428 = vunpack.c.h.b16 %v1312
        %v1429 = vunpack.c.l.b16 %v1313
        %v1430 = vunpack.c.h.b16 %v1313
        %v1431 = vunpack.c.l.b16 %v1314
        %v1432 = vunpack.c.h.b16 %v1314
        %v1433 = vunpack.c.l.b16 %v1315
        %v1434 = vunpack.c.h.b16 %v1315
        %v1435 = vunpack.c.l.b16 %v1316
        %v1436 = vunpack.c.h.b16 %v1316
        %v1437 = vunpack.c.l.b16 %v1317
        %v1438 = vunpack.c.h.b16 %v1317
        %v1439 = vunpack.c.l.b16 %v1318
        %v1440 = vunpack.c.h.b16 %v1318
        %v1441 = vunpack.c.l.b16 %v1319
        %v1442 = vunpack.c.h.b16 %v1319
        %v1443 = vunpack.c.l.b16 %v1320
        %v1444 = vunpack.c.h.b16 %v1320
        %v1445 = vunpack.c.l.b16 %v1321
        %v1446 = vunpack.c.h.b16 %v1321
        %v1447 = vunpack.c.l.b16 %v1322
        %v1448 = vunpack.c.h.b16 %v1322
        %v1449 = vunpack.c.l.b16 %v1323
        %v1450 = vunpack.c.h.b16 %v1323
        %v1451 = vunpack.c.l.b16 %v1324
        %v1452 = vunpack.c.h.b16 %v1324
        %v1453 = vunpack.c.l.b16 %v1325
        %v1454 = vunpack.c.h.b16 %v1325
        %v1455 = vunpack.c.l.b16 %v1326
        %v1456 = vunpack.c.h.b16 %v1326
        %v1457 = vunpack.c.l.b16 %v1327
        %v1458 = vunpack.c.h.b16 %v1327
        %v1459 = vunpack.c.l.b16 %v1328
        %v1460 = vunpack.c.h.b16 %v1328
        %v1461 = vunpack.c.l.b16 %v1329
        %v1462 = vunpack.c.h.b16 %v1329
        %v1463 = vunpack.c.l.b16 %v1330
        %v1464 = vunpack.c.h.b16 %v1330
        %v1465 = vunpack.c.l.b16 %v1331
        %v1466 = vunpack.c.h.b16 %v1331
        %v1467 = vunpack.c.l.b16 %v1332
        %v1468 = vunpack.c.h.b16 %v1332
        %v1469 = vunpack.c.l.b16 %v1333
        %v1470 = vunpack.c.h.b16 %v1333
        %v1471 = vunpack.c.l.b16 %v1334
        %v1472 = vunpack.c.h.b16 %v1334
        %v1473 = vunpack.c.l.b16 %v1335
        %v1474 = vunpack.c.h.b16 %v1335
        %v1475 = vunpack.c.l.b16 %v1336
        %v1476 = vunpack.c.h.b16 %v1336
        %v1477 = vunpack.c.l.b16 %v1337
        %v1478 = vunpack.c.h.b16 %v1337
        %v1479 = vunpack.c.l.b16 %v1338
        %v1480 = vunpack.c.h.b16 %v1338
        %v1481 = vunpack.c.l.b16 %v1339
        %v1482 = vunpack.c.h.b16 %v1339
        %v1483 = vunpack.c.l.b16 %v1340
        %v1484 = vunpack.c.h.b16 %v1340
        %v1485 = vpack.c.b16 %v1395, %v1389
        %v1486 = vpack.c.b16 %v1396, %v1390
        %v1487 = vpack.c.b16 %v1397, %v1391
        %v1488 = vpack.c.b16 %v1398, %v1392
        %v1489 = vpack.c.b16 %v1399, %v1393
        %v1490 = vpack.c.b16 %v1400, %v1394
        %v1491 = vpack.c.b16 %v1407, %v1401
        %v1492 = vpack.c.b16 %v1408, %v1402
        %v1493 = vpack.c.b16 %v1409, %v1403
        %v1494 = vpack.c.b16 %v1410, %v1404
        %v1495 = vpack.c.b16 %v1411, %v1405
        %v1496 = vpack.c.b16 %v1412, %v1406
        %v1497 = vpack.c.b16 %v1419, %v1413
        %v1498 = vpack.c.b16 %v1420, %v1414
        %v1499 = vpack.c.b16 %v1421, %v1415
        %v1500 = vpack.c.b16 %v1422, %v1416
        %v1501 = vpack.c.b16 %v1423, %v1417
        %v1502 = vpack.c.b16 %v1424, %v1418
        %v1503 = vpack.c.b16 %v1431, %v1425
        %v1504 = vpack.c.b16 %v1432, %v1426
        %v1505 = vpack.c.b16 %v1433, %v1427
        %v1506 = vpack.c.b16 %v1434, %v1428
        %v1507 = vpack.c.b16 %v1435, %v1429
        %v1508 = vpack.c.b16 %v1436, %v1430
        %v1509 = vpack.c.b16 %v1443, %v1437
        %v1510 = vpack.c.b16 %v1444, %v1438
        %v1511 = vpack.c.b16 %v1445, %v1439
        %v1512 = vpack.c.b16 %v1446, %v1440
        %v1513 = vpack.c.b16 %v1447, %v1441
        %v1514 = vpack.c.b16 %v1448, %v1442
        %v1515 = vpack.c.b16 %v1455, %v1449
        %v1516 = vpack.c.b16 %v1456, %v1450
        %v1517 = vpack.c.b16 %v1457, %v1451
        %v1518 = vpack.c.b16 %v1458, %v1452
        %v1519 = vpack.c.b16 %v1459, %v1453
        %v1520 = vpack.c.b16 %v1460, %v1454
        %v1521 = vpack.c.b16 %v1467, %v1461
        %v1522 = vpack.c.b16 %v1468, %v1462
        %v1523 = vpack.c.b16 %v1469, %v1463
        %v1524 = vpack.c.b16 %v1470, %v1464
        %v1525 = vpack.c.b16 %v1471, %v1465
        %v1526 = vpack.c.b16 %v1472, %v1466
        %v1527 = vpack.c.b16 %v1479, %v1473
        %v1528 = vpack.c.b16 %v1480, %v1474
        %v1529 = vpack.c.b16 %v1481, %v1475
        %v1530 = vpack.c.b16 %v1482, %v1476
        %v1531 = vpack.c.b16 %v1483, %v1477
        %v1532 = vpack.c.b16 %v1484, %v1478
        %1581 = vmatprep.subr.bf16.mxu0 %v1486
        %1582 = vmatpush1.bf16.msra.mxu0 %v1485
        %1583 = vmatprep.subr.bf16.mxu0 %v1492
        %1584 = vmatpush1.bf16.msra.mxu0 %v1491
        %1585 = vmatprep.subr.bf16.mxu0 %v1498
        %1586 = vmatpush1.bf16.msra.mxu0 %v1497
        %1587 = vmatprep.subr.bf16.mxu0 %v1504
        %1588 = vmatpush1.bf16.msra.mxu0 %v1503
        %1589 = vmatprep.subr.bf16.mxu0 %v1510
        %1590 = vmatpush1.bf16.msra.mxu0 %v1509
        %1591 = vmatprep.subr.bf16.mxu0 %v1516
        %1592 = vmatpush1.bf16.msra.mxu0 %v1515
        %1593 = vmatprep.subr.bf16.mxu0 %v1522
        %1594 = vmatpush1.bf16.msra.mxu0 %v1521
        %1595 = vmatprep.subr.bf16.mxu0 %v1528
        %1596 = vmatpush1.bf16.msra.mxu0 %v1527
        %1597 = vmatprep.subr.bf16.mxu0 0
        %1598 = vmatpush1.bf16.msra.mxu0 0
        %1599 = vmatprep.subr.bf16.mxu0 0
        %1600 = vmatpush1.bf16.msra.mxu0 0
        %1601 = vmatprep.subr.bf16.mxu0 0
        %1602 = vmatpush1.bf16.msra.mxu0 0
        %1603 = vmatprep.subr.bf16.mxu0 0
        %1604 = vmatpush1.bf16.msra.mxu0 0
        %1605 = vmatprep.subr.bf16.mxu0 0
        %1606 = vmatpush1.bf16.msra.mxu0 0
        %1607 = vmatprep.subr.bf16.mxu0 0
        %1608 = vmatpush1.bf16.msra.mxu0 0
        %1609 = vmatprep.subr.bf16.mxu0 0
        %1610 = vmatpush1.bf16.msra.mxu0 0
        %1611 = vmatprep.subr.bf16.mxu0 0
        %1612 = vmatpush1.bf16.msra.mxu0 0
        %1613 = vmatprep.mubr.bf16.mxu0 0
        %1614 = vmatmul.mubr.bf16.gmra.mrb[0].mxu0 %v1291
        %v1615 = vpop.f32.mrb[0].mxu0
        %v1616 = vadd.f32 0.0, %v1615
        %v1617 = vpop.f32.mrb[0].mxu0
        %v1618 = vadd.f32 0.0, %v1617
        %v1619 = vpop.f32.mrb[0].mxu0
        %v1620 = vadd.f32 0.0, %v1619
        %v1621 = vpop.f32.mrb[0].mxu0
        %v1622 = vadd.f32 0.0, %v1621
        %1623 = vmatprep.mubr.bf16.mxu0 0
        %1624 = vmatmul.mubr.bf16.gmra.mrb[0].mxu0 %v1292
        %v1625 = vpop.f32.mrb[0].mxu0
        %v1626 = vpop.f32.mrb[0].mxu0
        %v1627 = vpop.f32.mrb[0].mxu0
        %v1628 = vpop.f32.mrb[0].mxu0
        %1629 = vdwg.mxu0
        %1630 = vmatprep.subr.bf16.mxu0 %v1488
        %1631 = vmatpush1.bf16.msra.mxu0 %v1487
        %1632 = vmatprep.subr.bf16.mxu0 %v1494
        %1633 = vmatpush1.bf16.msra.mxu0 %v1493
        %1634 = vmatprep.subr.bf16.mxu0 %v1500
        %1635 = vmatpush1.bf16.msra.mxu0 %v1499
        %1636 = vmatprep.subr.bf16.mxu0 %v1506
        %1637 = vmatpush1.bf16.msra.mxu0 %v1505
        %1638 = vmatprep.subr.bf16.mxu0 %v1512
        %1639 = vmatpush1.bf16.msra.mxu0 %v1511
        %1640 = vmatprep.subr.bf16.mxu0 %v1518
        %1641 = vmatpush1.bf16.msra.mxu0 %v1517
        %1642 = vmatprep.subr.bf16.mxu0 %v1524
        %1643 = vmatpush1.bf16.msra.mxu0 %v1523
        %1644 = vmatprep.subr.bf16.mxu0 %v1530
        %1645 = vmatpush1.bf16.msra.mxu0 %v1529
        %1646 = vmatprep.subr.bf16.mxu0 0
        %1647 = vmatpush1.bf16.msra.mxu0 0
        %1648 = vmatprep.subr.bf16.mxu0 0
        %1649 = vmatpush1.bf16.msra.mxu0 0
        %1650 = vmatprep.subr.bf16.mxu0 0
        %1651 = vmatpush1.bf16.msra.mxu0 0
        %1652 = vmatprep.subr.bf16.mxu0 0
        %1653 = vmatpush1.bf16.msra.mxu0 0
        %1654 = vmatprep.subr.bf16.mxu0 0
        %1655 = vmatpush1.bf16.msra.mxu0 0
        %1656 = vmatprep.subr.bf16.mxu0 0
        %1657 = vmatpush1.bf16.msra.mxu0 0
        %1658 = vmatprep.subr.bf16.mxu0 0
        %1659 = vmatpush1.bf16.msra.mxu0 0
        %1660 = vmatprep.subr.bf16.mxu0 0
        %1661 = vmatpush1.bf16.msra.mxu0 0
        %1662 = vmatprep.mubr.bf16.mxu0 0
        %1663 = vmatmul.mubr.bf16.gmra.mrb[0].mxu0 %v1291
        %v1664 = vpop.f32.mrb[0].mxu0
        %v1665 = vadd.f32 0.0, %v1664
        %v1666 = vpop.f32.mrb[0].mxu0
        %v1667 = vpop.f32.mrb[0].mxu0
        %v1668 = vadd.f32 0.0, %v1667
        %v1669 = vpop.f32.mrb[0].mxu0
        %1670 = vmatprep.mubr.bf16.mxu0 0
        %1671 = vmatmul.mubr.bf16.gmra.mrb[0].mxu0 %v1292
        %v1672 = vpop.f32.mrb[0].mxu0
        %v1673 = vpop.f32.mrb[0].mxu0
        %v1674 = vadd.f32 0.0, %v1673
        %v1675 = vpop.f32.mrb[0].mxu0
        %v1676 = vpop.f32.mrb[0].mxu0
        %v1677 = vadd.f32 0.0, %v1676
        %1678 = vdwg.mxu0
        %1679 = vmatprep.subr.bf16.mxu0 %v1490
        %1680 = vmatpush1.bf16.msra.mxu0 %v1489
        %1681 = vmatprep.subr.bf16.mxu0 %v1496
        %1682 = vmatpush1.bf16.msra.mxu0 %v1495
        %1683 = vmatprep.subr.bf16.mxu0 %v1502
        %1684 = vmatpush1.bf16.msra.mxu0 %v1501
        %1685 = vmatprep.subr.bf16.mxu0 %v1508
        %1686 = vmatpush1.bf16.msra.mxu0 %v1507
        %1687 = vmatprep.subr.bf16.mxu0 %v1514
        %1688 = vmatpush1.bf16.msra.mxu0 %v1513
        %1689 = vmatprep.subr.bf16.mxu0 %v1520
        %1690 = vmatpush1.bf16.msra.mxu0 %v1519
        %1691 = vmatprep.subr.bf16.mxu0 %v1526
        %1692 = vmatpush1.bf16.msra.mxu0 %v1525
        %1693 = vmatprep.subr.bf16.mxu0 %v1532
        %1694 = vmatpush1.bf16.msra.mxu0 %v1531
        %1695 = vmatprep.subr.bf16.mxu0 0
        %1696 = vmatpush1.bf16.msra.mxu0 0
        %1697 = vmatprep.subr.bf16.mxu0 0
        %1698 = vmatpush1.bf16.msra.mxu0 0
        %1699 = vmatprep.subr.bf16.mxu0 0
        %1700 = vmatpush1.bf16.msra.mxu0 0
        %1701 = vmatprep.subr.bf16.mxu0 0
        %1702 = vmatpush1.bf16.msra.mxu0 0
        %1703 = vmatprep.subr.bf16.mxu0 0
        %1704 = vmatpush1.bf16.msra.mxu0 0
        %1705 = vmatprep.subr.bf16.mxu0 0
        %1706 = vmatpush1.bf16.msra.mxu0 0
        %1707 = vmatprep.subr.bf16.mxu0 0
        %1708 = vmatpush1.bf16.msra.mxu0 0
        %1709 = vmatprep.subr.bf16.mxu0 0
        %1710 = vmatpush1.bf16.msra.mxu0 0
        %1711 = vmatprep.mubr.bf16.mxu0 0
        %1712 = vmatmul.mubr.bf16.gmra.mrb[0].mxu0 %v1291
        %v1713 = vpop.f32.mrb[0].mxu0
        %v1714 = vpop.f32.mrb[0].mxu0
        %v1715 = vpop.f32.mrb[0].mxu0
        %v1716 = vpop.f32.mrb[0].mxu0
        %1717 = vmatprep.mubr.bf16.mxu0 0
        %1718 = vmatmul.mubr.bf16.gmra.mrb[0].mxu0 %v1292
        %v1719 = vpop.f32.mrb[0].mxu0
        %v1720 = vadd.f32 0.0, %v1719
        %v1721 = vpop.f32.mrb[0].mxu0
        %v1722 = vadd.f32 0.0, %v1721
        %v1723 = vpop.f32.mrb[0].mxu0
        %v1724 = vadd.f32 0.0, %v1723
        %v1725 = vpop.f32.mrb[0].mxu0
        %v1726 = vadd.f32 0.0, %v1725
        %1727 = vdwg.mxu0
        %v1728 = vadd.f32 %v1278, %v1616
        %v1729 = vadd.f32 %v1281, %v1620
        %v1730 = vxor.u32 %v1728, 2147483648
        %v1731 = vxor.u32 %v1729, 2147483648
        %v1732 = vmul.f32 %v1730, 1.442695
        %v1733 = vpow.pop %v1732
        %v1734 = vmul.f32 %v1731, 1.442695
        %v1735 = vpow.pop %v1734
        %v1736 = vadd.f32 %v1733, 1.0
        %v1737 = vadd.f32 %v1735, 1.0
        %v1738 = vrcp.pop %v1736
        %v1739 = vmul.f32 1.0, %v1738
        %v1740 = vrcp.pop %v1737
        %v1741 = vmul.f32 1.0, %v1740
        %v1742 = vadd.f32 %v1279, %v1618
        %v1743 = vadd.f32 %v1282, %v1622
        %v1744 = vxor.u32 %v1742, 2147483648
        %v1745 = vxor.u32 %v1743, 2147483648
        %v1746 = vmul.f32 %v1744, 1.442695
        %v1747 = vpow.pop %v1746
        %v1748 = vmul.f32 %v1745, 1.442695
        %v1749 = vpow.pop %v1748
        %v1750 = vadd.f32 %v1747, 1.0
        %v1751 = vadd.f32 %v1749, 1.0
        %v1752 = vrcp.pop %v1750
        %v1753 = vmul.f32 1.0, %v1752
        %v1754 = vrcp.pop %v1751
        %v1755 = vmul.f32 1.0, %v1754
        %v1756 = vadd.f32 %v1665, %v1265
        %v1757 = vadd.f32 %v1668, %v1265
        %v1758 = vmul.f32 %v1739, %v1756
        %v1759 = vmul.f32 %v1741, %v1757
        %v1760 = vadd.f32 %v1280, %v1758
        %v1761 = vadd.f32 %v1283, %v1759
        %v1762 = vtanh.pop %v1760
        %v1763 = vtanh.pop %v1761
        %v1764 = vsub.f32 1.0, %v1753
        %v1765 = vsub.f32 1.0, %v1755
        %v1766 = vmul.f32 %v1764, %v1762
        %v1767 = vmul.f32 %v1765, %v1763
        %v1768 = vmul.f32 %v1753, %v1274
        %v1769 = vmul.f32 %v1755, %v1275
        %v1770 = vadd.f32 %v1766, %v1768
        %v1771 = vadd.f32 %v1767, %v1769
        %v1772 = vadd.f32 %v1285, %v1674
        %v1773 = vadd.f32 %v1288, %v1677
        %v1774 = vxor.u32 %v1772, 2147483648
        %v1775 = vxor.u32 %v1773, 2147483648
        %v1776 = vmul.f32 %v1774, 1.442695
        %v1777 = vpow.pop %v1776
        %v1778 = vmul.f32 %v1775, 1.442695
        %v1779 = vpow.pop %v1778
        %v1780 = vadd.f32 %v1777, 1.0
        %v1781 = vadd.f32 %v1779, 1.0
        %v1782 = vrcp.pop %v1780
        %v1783 = vmul.f32 1.0, %v1782
        %v1784 = vrcp.pop %v1781
        %v1785 = vmul.f32 1.0, %v1784
        %v1786 = vadd.f32 %v1286, %v1720
        %v1787 = vadd.f32 %v1289, %v1724
        %v1788 = vxor.u32 %v1786, 2147483648
        %v1789 = vxor.u32 %v1787, 2147483648
        %v1790 = vmul.f32 %v1788, 1.442695
        %v1791 = vpow.pop %v1790
        %v1792 = vmul.f32 %v1789, 1.442695
        %v1793 = vpow.pop %v1792
        %v1794 = vadd.f32 %v1791, 1.0
        %v1795 = vadd.f32 %v1793, 1.0
        %v1796 = vrcp.pop %v1794
        %v1797 = vmul.f32 1.0, %v1796
        %v1798 = vrcp.pop %v1795
        %v1799 = vmul.f32 1.0, %v1798
        %v1800 = vadd.f32 %v1722, %v1272
        %v1801 = vadd.f32 %v1726, %v1272
        %v1802 = vmul.f32 %v1783, %v1800
        %v1803 = vmul.f32 %v1785, %v1801
        %v1804 = vadd.f32 %v1287, %v1802
        %v1805 = vadd.f32 %v1290, %v1803
        %v1806 = vtanh.pop %v1804
        %v1807 = vtanh.pop %v1805
        %v1808 = vsub.f32 1.0, %v1797
        %v1809 = vsub.f32 1.0, %v1799
        %v1810 = vmul.f32 %v1808, %v1806
        %v1811 = vmul.f32 %v1809, %v1807
        %v1812 = vmul.f32 %v1797, %v1276
        %v1813 = vmul.f32 %v1799, %v1277
        %v1814 = vadd.f32 %v1810, %v1812
        %v1815 = vadd.f32 %v1811, %v1813
        %1816 = vst [vmem:[%s493] sm:$0xff] %v1770
        %1817 = vst [vmem:[%s493 + $0x8] sm:$0xff] %v1771
        %s1818 = scalar_lea.vmem %s500, 48 [#allocation16]
        %1819 = vst [vmem:[%s1818] sm:$0xff] %v1814
        %1820 = vst [vmem:[%s1818 + $0x8] sm:$0xff] %v1815
        %s1821 = scalar_lea.vmem [#allocation2], 48
        %v1822 = vld [vmem:[%s1821] sm:$0xff]
        %v1823 = vld [vmem:[%s1821 + $0x8] sm:$0xff]
        %v1824 = vld [vmem:[%s1821 + $0x10] sm:$0xff]
        %v1825 = vld [vmem:[%s1821 + $0x18] sm:$0xff]
        %v1826 = vld [vmem:[%s1821 + $0x20] sm:$0xff]
        %v1827 = vld [vmem:[%s1821 + $0x28] sm:$0xff]
        %s1828 = scalar_lea.vmem [#allocation3], 96
        %v1829 = vld [vmem:[%s1828] sm:$0xff]
        %v1830 = vld [vmem:[%s1828 + $0x8] sm:$0xff]
        %v1831 = vld [vmem:[%s1828 + $0x10] sm:$0xff]
        %v1832 = vld [vmem:[%s1828 + $0x18] sm:$0xff]
        %v1833 = vld [vmem:[%s1828 + $0x20] sm:$0xff]
        %v1834 = vld [vmem:[%s1828 + $0x28] sm:$0xff]
        %v1835 = vpack.c.bf16 %v1771, %v1770
        %v1836 = vpack.c.bf16 %v1815, %v1814
        %v1837 = vld [vmem:[#allocation14] sm:$0xff]
        %v1838 = vld [vmem:[#allocation14 + $0x8] sm:$0xff]
        %v1839 = vld [vmem:[#allocation14 + $0x10] sm:$0xff]
        %v1840 = vld [vmem:[#allocation14 + $0x18] sm:$0xff]
        %v1841 = vld [vmem:[#allocation14 + $0x20] sm:$0xff]
        %v1842 = vld [vmem:[#allocation14 + $0x28] sm:$0xff]
        %v1843 = vld [vmem:[#allocation14 + $0x30] sm:$0xff]
        %v1844 = vld [vmem:[#allocation14 + $0x38] sm:$0xff]
        %v1845 = vld [vmem:[#allocation14 + $0x40] sm:$0xff]
        %v1846 = vld [vmem:[#allocation14 + $0x48] sm:$0xff]
        %v1847 = vld [vmem:[#allocation14 + $0x50] sm:$0xff]
        %v1848 = vld [vmem:[#allocation14 + $0x58] sm:$0xff]
        %v1849 = vld [vmem:[#allocation14 + $0x60] sm:$0xff]
        %v1850 = vld [vmem:[#allocation14 + $0x68] sm:$0xff]
        %v1851 = vld [vmem:[#allocation14 + $0x70] sm:$0xff]
        %v1852 = vld [vmem:[#allocation14 + $0x78] sm:$0xff]
        %v1853 = vld [vmem:[#allocation14 + $0x80] sm:$0xff]
        %v1854 = vld [vmem:[#allocation14 + $0x88] sm:$0xff]
        %v1855 = vld [vmem:[#allocation14 + $0x90] sm:$0xff]
        %v1856 = vld [vmem:[#allocation14 + $0x98] sm:$0xff]
        %v1857 = vld [vmem:[#allocation14 + $0xa0] sm:$0xff]
        %v1858 = vld [vmem:[#allocation14 + $0xa8] sm:$0xff]
        %v1859 = vld [vmem:[#allocation14 + $0xb0] sm:$0xff]
        %v1860 = vld [vmem:[#allocation14 + $0xb8] sm:$0xff]
        %v1861 = vld [vmem:[#allocation14 + $0xc0] sm:$0xff]
        %v1862 = vld [vmem:[#allocation14 + $0xc8] sm:$0xff]
        %v1863 = vld [vmem:[#allocation14 + $0xd0] sm:$0xff]
        %v1864 = vld [vmem:[#allocation14 + $0xd8] sm:$0xff]
        %v1865 = vld [vmem:[#allocation14 + $0xe0] sm:$0xff]
        %v1866 = vld [vmem:[#allocation14 + $0xe8] sm:$0xff]
        %v1867 = vld [vmem:[#allocation14 + $0xf0] sm:$0xff]
        %v1868 = vld [vmem:[#allocation14 + $0xf8] sm:$0xff]
        %v1869 = vld [vmem:[#allocation14 + $0x100] sm:$0xff]
        %v1870 = vld [vmem:[#allocation14 + $0x108] sm:$0xff]
        %v1871 = vld [vmem:[#allocation14 + $0x110] sm:$0xff]
        %v1872 = vld [vmem:[#allocation14 + $0x118] sm:$0xff]
        %v1873 = vld [vmem:[#allocation14 + $0x120] sm:$0xff]
        %v1874 = vld [vmem:[#allocation14 + $0x128] sm:$0xff]
        %v1875 = vld [vmem:[#allocation14 + $0x130] sm:$0xff]
        %v1876 = vld [vmem:[#allocation14 + $0x138] sm:$0xff]
        %v1877 = vld [vmem:[#allocation14 + $0x140] sm:$0xff]
        %v1878 = vld [vmem:[#allocation14 + $0x148] sm:$0xff]
        %v1879 = vld [vmem:[#allocation14 + $0x150] sm:$0xff]
        %v1880 = vld [vmem:[#allocation14 + $0x158] sm:$0xff]
        %v1881 = vld [vmem:[#allocation14 + $0x160] sm:$0xff]
        %v1882 = vld [vmem:[#allocation14 + $0x168] sm:$0xff]
        %v1883 = vld [vmem:[#allocation14 + $0x170] sm:$0xff]
        %v1884 = vld [vmem:[#allocation14 + $0x178] sm:$0xff]
        %v1933 = vunpack.c.l.b16 %v1837
        %v1934 = vunpack.c.h.b16 %v1837
        %v1935 = vunpack.c.l.b16 %v1838
        %v1936 = vunpack.c.h.b16 %v1838
        %v1937 = vunpack.c.l.b16 %v1839
        %v1938 = vunpack.c.h.b16 %v1839
        %v1939 = vunpack.c.l.b16 %v1840
        %v1940 = vunpack.c.h.b16 %v1840
        %v1941 = vunpack.c.l.b16 %v1841
        %v1942 = vunpack.c.h.b16 %v1841
        %v1943 = vunpack.c.l.b16 %v1842
        %v1944 = vunpack.c.h.b16 %v1842
        %v1945 = vunpack.c.l.b16 %v1843
        %v1946 = vunpack.c.h.b16 %v1843
        %v1947 = vunpack.c.l.b16 %v1844
        %v1948 = vunpack.c.h.b16 %v1844
        %v1949 = vunpack.c.l.b16 %v1845
        %v1950 = vunpack.c.h.b16 %v1845
        %v1951 = vunpack.c.l.b16 %v1846
        %v1952 = vunpack.c.h.b16 %v1846
        %v1953 = vunpack.c.l.b16 %v1847
        %v1954 = vunpack.c.h.b16 %v1847
        %v1955 = vunpack.c.l.b16 %v1848
        %v1956 = vunpack.c.h.b16 %v1848
        %v1957 = vunpack.c.l.b16 %v1849
        %v1958 = vunpack.c.h.b16 %v1849
        %v1959 = vunpack.c.l.b16 %v1850
        %v1960 = vunpack.c.h.b16 %v1850
        %v1961 = vunpack.c.l.b16 %v1851
        %v1962 = vunpack.c.h.b16 %v1851
        %v1963 = vunpack.c.l.b16 %v1852
        %v1964 = vunpack.c.h.b16 %v1852
        %v1965 = vunpack.c.l.b16 %v1853
        %v1966 = vunpack.c.h.b16 %v1853
        %v1967 = vunpack.c.l.b16 %v1854
        %v1968 = vunpack.c.h.b16 %v1854
        %v1969 = vunpack.c.l.b16 %v1855
        %v1970 = vunpack.c.h.b16 %v1855
        %v1971 = vunpack.c.l.b16 %v1856
        %v1972 = vunpack.c.h.b16 %v1856
        %v1973 = vunpack.c.l.b16 %v1857
        %v1974 = vunpack.c.h.b16 %v1857
        %v1975 = vunpack.c.l.b16 %v1858
        %v1976 = vunpack.c.h.b16 %v1858
        %v1977 = vunpack.c.l.b16 %v1859
        %v1978 = vunpack.c.h.b16 %v1859
        %v1979 = vunpack.c.l.b16 %v1860
        %v1980 = vunpack.c.h.b16 %v1860
        %v1981 = vunpack.c.l.b16 %v1861
        %v1982 = vunpack.c.h.b16 %v1861
        %v1983 = vunpack.c.l.b16 %v1862
        %v1984 = vunpack.c.h.b16 %v1862
        %v1985 = vunpack.c.l.b16 %v1863
        %v1986 = vunpack.c.h.b16 %v1863
        %v1987 = vunpack.c.l.b16 %v1864
        %v1988 = vunpack.c.h.b16 %v1864
        %v1989 = vunpack.c.l.b16 %v1865
        %v1990 = vunpack.c.h.b16 %v1865
        %v1991 = vunpack.c.l.b16 %v1866
        %v1992 = vunpack.c.h.b16 %v1866
        %v1993 = vunpack.c.l.b16 %v1867
        %v1994 = vunpack.c.h.b16 %v1867
        %v1995 = vunpack.c.l.b16 %v1868
        %v1996 = vunpack.c.h.b16 %v1868
        %v1997 = vunpack.c.l.b16 %v1869
        %v1998 = vunpack.c.h.b16 %v1869
        %v1999 = vunpack.c.l.b16 %v1870
        %v2000 = vunpack.c.h.b16 %v1870
        %v2001 = vunpack.c.l.b16 %v1871
        %v2002 = vunpack.c.h.b16 %v1871
        %v2003 = vunpack.c.l.b16 %v1872
        %v2004 = vunpack.c.h.b16 %v1872
        %v2005 = vunpack.c.l.b16 %v1873
        %v2006 = vunpack.c.h.b16 %v1873
        %v2007 = vunpack.c.l.b16 %v1874
        %v2008 = vunpack.c.h.b16 %v1874
        %v2009 = vunpack.c.l.b16 %v1875
        %v2010 = vunpack.c.h.b16 %v1875
        %v2011 = vunpack.c.l.b16 %v1876
        %v2012 = vunpack.c.h.b16 %v1876
        %v2013 = vunpack.c.l.b16 %v1877
        %v2014 = vunpack.c.h.b16 %v1877
        %v2015 = vunpack.c.l.b16 %v1878
        %v2016 = vunpack.c.h.b16 %v1878
        %v2017 = vunpack.c.l.b16 %v1879
        %v2018 = vunpack.c.h.b16 %v1879
        %v2019 = vunpack.c.l.b16 %v1880
        %v2020 = vunpack.c.h.b16 %v1880
        %v2021 = vunpack.c.l.b16 %v1881
        %v2022 = vunpack.c.h.b16 %v1881
        %v2023 = vunpack.c.l.b16 %v1882
        %v2024 = vunpack.c.h.b16 %v1882
        %v2025 = vunpack.c.l.b16 %v1883
        %v2026 = vunpack.c.h.b16 %v1883
        %v2027 = vunpack.c.l.b16 %v1884
        %v2028 = vunpack.c.h.b16 %v1884
        %v2029 = vpack.c.b16 %v1939, %v1933
        %v2030 = vpack.c.b16 %v1940, %v1934
        %v2031 = vpack.c.b16 %v1941, %v1935
        %v2032 = vpack.c.b16 %v1942, %v1936
        %v2033 = vpack.c.b16 %v1943, %v1937
        %v2034 = vpack.c.b16 %v1944, %v1938
        %v2035 = vpack.c.b16 %v1951, %v1945
        %v2036 = vpack.c.b16 %v1952, %v1946
        %v2037 = vpack.c.b16 %v1953, %v1947
        %v2038 = vpack.c.b16 %v1954, %v1948
        %v2039 = vpack.c.b16 %v1955, %v1949
        %v2040 = vpack.c.b16 %v1956, %v1950
        %v2041 = vpack.c.b16 %v1963, %v1957
        %v2042 = vpack.c.b16 %v1964, %v1958
        %v2043 = vpack.c.b16 %v1965, %v1959
        %v2044 = vpack.c.b16 %v1966, %v1960
        %v2045 = vpack.c.b16 %v1967, %v1961
        %v2046 = vpack.c.b16 %v1968, %v1962
        %v2047 = vpack.c.b16 %v1975, %v1969
        %v2048 = vpack.c.b16 %v1976, %v1970
        %v2049 = vpack.c.b16 %v1977, %v1971
        %v2050 = vpack.c.b16 %v1978, %v1972
        %v2051 = vpack.c.b16 %v1979, %v1973
        %v2052 = vpack.c.b16 %v1980, %v1974
        %v2053 = vpack.c.b16 %v1987, %v1981
        %v2054 = vpack.c.b16 %v1988, %v1982
        %v2055 = vpack.c.b16 %v1989, %v1983
        %v2056 = vpack.c.b16 %v1990, %v1984
        %v2057 = vpack.c.b16 %v1991, %v1985
        %v2058 = vpack.c.b16 %v1992, %v1986
        %v2059 = vpack.c.b16 %v1999, %v1993
        %v2060 = vpack.c.b16 %v2000, %v1994
        %v2061 = vpack.c.b16 %v2001, %v1995
        %v2062 = vpack.c.b16 %v2002, %v1996
        %v2063 = vpack.c.b16 %v2003, %v1997
        %v2064 = vpack.c.b16 %v2004, %v1998
        %v2065 = vpack.c.b16 %v2011, %v2005
        %v2066 = vpack.c.b16 %v2012, %v2006
        %v2067 = vpack.c.b16 %v2013, %v2007
        %v2068 = vpack.c.b16 %v2014, %v2008
        %v2069 = vpack.c.b16 %v2015, %v2009
        %v2070 = vpack.c.b16 %v2016, %v2010
        %v2071 = vpack.c.b16 %v2023, %v2017
        %v2072 = vpack.c.b16 %v2024, %v2018
        %v2073 = vpack.c.b16 %v2025, %v2019
        %v2074 = vpack.c.b16 %v2026, %v2020
        %v2075 = vpack.c.b16 %v2027, %v2021
        %v2076 = vpack.c.b16 %v2028, %v2022
        %2125 = vmatprep.subr.bf16.mxu0 %v2030
        %2126 = vmatpush1.bf16.msra.mxu0 %v2029
        %2127 = vmatprep.subr.bf16.mxu0 %v2036
        %2128 = vmatpush1.bf16.msra.mxu0 %v2035
        %2129 = vmatprep.subr.bf16.mxu0 %v2042
        %2130 = vmatpush1.bf16.msra.mxu0 %v2041
        %2131 = vmatprep.subr.bf16.mxu0 %v2048
        %2132 = vmatpush1.bf16.msra.mxu0 %v2047
        %2133 = vmatprep.subr.bf16.mxu0 %v2054
        %2134 = vmatpush1.bf16.msra.mxu0 %v2053
        %2135 = vmatprep.subr.bf16.mxu0 %v2060
        %2136 = vmatpush1.bf16.msra.mxu0 %v2059
        %2137 = vmatprep.subr.bf16.mxu0 %v2066
        %2138 = vmatpush1.bf16.msra.mxu0 %v2065
        %2139 = vmatprep.subr.bf16.mxu0 %v2072
        %2140 = vmatpush1.bf16.msra.mxu0 %v2071
        %2141 = vmatprep.subr.bf16.mxu0 0
        %2142 = vmatpush1.bf16.msra.mxu0 0
        %2143 = vmatprep.subr.bf16.mxu0 0
        %2144 = vmatpush1.bf16.msra.mxu0 0
        %2145 = vmatprep.subr.bf16.mxu0 0
        %2146 = vmatpush1.bf16.msra.mxu0 0
        %2147 = vmatprep.subr.bf16.mxu0 0
        %2148 = vmatpush1.bf16.msra.mxu0 0
        %2149 = vmatprep.subr.bf16.mxu0 0
        %2150 = vmatpush1.bf16.msra.mxu0 0
        %2151 = vmatprep.subr.bf16.mxu0 0
        %2152 = vmatpush1.bf16.msra.mxu0 0
        %2153 = vmatprep.subr.bf16.mxu0 0
        %2154 = vmatpush1.bf16.msra.mxu0 0
        %2155 = vmatprep.subr.bf16.mxu0 0
        %2156 = vmatpush1.bf16.msra.mxu0 0
        %2157 = vmatprep.mubr.bf16.mxu0 0
        %2158 = vmatmul.mubr.bf16.gmra.mrb[0].mxu0 %v1835
        %v2159 = vpop.f32.mrb[0].mxu0
        %v2160 = vadd.f32 0.0, %v2159
        %v2161 = vpop.f32.mrb[0].mxu0
        %v2162 = vadd.f32 0.0, %v2161
        %v2163 = vpop.f32.mrb[0].mxu0
        %v2164 = vadd.f32 0.0, %v2163
        %v2165 = vpop.f32.mrb[0].mxu0
        %v2166 = vadd.f32 0.0, %v2165
        %2167 = vmatprep.mubr.bf16.mxu0 0
        %2168 = vmatmul.mubr.bf16.gmra.mrb[0].mxu0 %v1836
        %v2169 = vpop.f32.mrb[0].mxu0
        %v2170 = vpop.f32.mrb[0].mxu0
        %v2171 = vpop.f32.mrb[0].mxu0
        %v2172 = vpop.f32.mrb[0].mxu0
        %2173 = vdwg.mxu0
        %2174 = vmatprep.subr.bf16.mxu0 %v2032
        %2175 = vmatpush1.bf16.msra.mxu0 %v2031
        %2176 = vmatprep.subr.bf16.mxu0 %v2038
        %2177 = vmatpush1.bf16.msra.mxu0 %v2037
        %2178 = vmatprep.subr.bf16.mxu0 %v2044
        %2179 = vmatpush1.bf16.msra.mxu0 %v2043
        %2180 = vmatprep.subr.bf16.mxu0 %v2050
        %2181 = vmatpush1.bf16.msra.mxu0 %v2049
        %2182 = vmatprep.subr.bf16.mxu0 %v2056
        %2183 = vmatpush1.bf16.msra.mxu0 %v2055
        %2184 = vmatprep.subr.bf16.mxu0 %v2062
        %2185 = vmatpush1.bf16.msra.mxu0 %v2061
        %2186 = vmatprep.subr.bf16.mxu0 %v2068
        %2187 = vmatpush1.bf16.msra.mxu0 %v2067
        %2188 = vmatprep.subr.bf16.mxu0 %v2074
        %2189 = vmatpush1.bf16.msra.mxu0 %v2073
        %2190 = vmatprep.subr.bf16.mxu0 0
        %2191 = vmatpush1.bf16.msra.mxu0 0
        %2192 = vmatprep.subr.bf16.mxu0 0
        %2193 = vmatpush1.bf16.msra.mxu0 0
        %2194 = vmatprep.subr.bf16.mxu0 0
        %2195 = vmatpush1.bf16.msra.mxu0 0
        %2196 = vmatprep.subr.bf16.mxu0 0
        %2197 = vmatpush1.bf16.msra.mxu0 0
        %2198 = vmatprep.subr.bf16.mxu0 0
        %2199 = vmatpush1.bf16.msra.mxu0 0
        %2200 = vmatprep.subr.bf16.mxu0 0
        %2201 = vmatpush1.bf16.msra.mxu0 0
        %2202 = vmatprep.subr.bf16.mxu0 0
        %2203 = vmatpush1.bf16.msra.mxu0 0
        %2204 = vmatprep.subr.bf16.mxu0 0
        %2205 = vmatpush1.bf16.msra.mxu0 0
        %2206 = vmatprep.mubr.bf16.mxu0 0
        %2207 = vmatmul.mubr.bf16.gmra.mrb[0].mxu0 %v1835
        %v2208 = vpop.f32.mrb[0].mxu0
        %v2209 = vadd.f32 0.0, %v2208
        %v2210 = vpop.f32.mrb[0].mxu0
        %v2211 = vpop.f32.mrb[0].mxu0
        %v2212 = vadd.f32 0.0, %v2211
        %v2213 = vpop.f32.mrb[0].mxu0
        %2214 = vmatprep.mubr.bf16.mxu0 0
        %2215 = vmatmul.mubr.bf16.gmra.mrb[0].mxu0 %v1836
        %v2216 = vpop.f32.mrb[0].mxu0
        %v2217 = vpop.f32.mrb[0].mxu0
        %v2218 = vadd.f32 0.0, %v2217
        %v2219 = vpop.f32.mrb[0].mxu0
        %v2220 = vpop.f32.mrb[0].mxu0
        %v2221 = vadd.f32 0.0, %v2220
        %2222 = vdwg.mxu0
        %2223 = vmatprep.subr.bf16.mxu0 %v2034
        %2224 = vmatpush1.bf16.msra.mxu0 %v2033
        %2225 = vmatprep.subr.bf16.mxu0 %v2040
        %2226 = vmatpush1.bf16.msra.mxu0 %v2039
        %2227 = vmatprep.subr.bf16.mxu0 %v2046
        %2228 = vmatpush1.bf16.msra.mxu0 %v2045
        %2229 = vmatprep.subr.bf16.mxu0 %v2052
        %2230 = vmatpush1.bf16.msra.mxu0 %v2051
        %2231 = vmatprep.subr.bf16.mxu0 %v2058
        %2232 = vmatpush1.bf16.msra.mxu0 %v2057
        %2233 = vmatprep.subr.bf16.mxu0 %v2064
        %2234 = vmatpush1.bf16.msra.mxu0 %v2063
        %2235 = vmatprep.subr.bf16.mxu0 %v2070
        %2236 = vmatpush1.bf16.msra.mxu0 %v2069
        %2237 = vmatprep.subr.bf16.mxu0 %v2076
        %2238 = vmatpush1.bf16.msra.mxu0 %v2075
        %2239 = vmatprep.subr.bf16.mxu0 0
        %2240 = vmatpush1.bf16.msra.mxu0 0
        %2241 = vmatprep.subr.bf16.mxu0 0
        %2242 = vmatpush1.bf16.msra.mxu0 0
        %2243 = vmatprep.subr.bf16.mxu0 0
        %2244 = vmatpush1.bf16.msra.mxu0 0
        %2245 = vmatprep.subr.bf16.mxu0 0
        %2246 = vmatpush1.bf16.msra.mxu0 0
        %2247 = vmatprep.subr.bf16.mxu0 0
        %2248 = vmatpush1.bf16.msra.mxu0 0
        %2249 = vmatprep.subr.bf16.mxu0 0
        %2250 = vmatpush1.bf16.msra.mxu0 0
        %2251 = vmatprep.subr.bf16.mxu0 0
        %2252 = vmatpush1.bf16.msra.mxu0 0
        %2253 = vmatprep.subr.bf16.mxu0 0
        %2254 = vmatpush1.bf16.msra.mxu0 0
        %2255 = vmatprep.mubr.bf16.mxu0 0
        %2256 = vmatmul.mubr.bf16.gmra.mrb[0].mxu0 %v1835
        %v2257 = vpop.f32.mrb[0].mxu0
        %v2258 = vpop.f32.mrb[0].mxu0
        %v2259 = vpop.f32.mrb[0].mxu0
        %v2260 = vpop.f32.mrb[0].mxu0
        %2261 = vmatprep.mubr.bf16.mxu0 0
        %2262 = vmatmul.mubr.bf16.gmra.mrb[0].mxu0 %v1836
        %v2263 = vpop.f32.mrb[0].mxu0
        %v2264 = vadd.f32 0.0, %v2263
        %v2265 = vpop.f32.mrb[0].mxu0
        %v2266 = vadd.f32 0.0, %v2265
        %v2267 = vpop.f32.mrb[0].mxu0
        %v2268 = vadd.f32 0.0, %v2267
        %v2269 = vpop.f32.mrb[0].mxu0
        %v2270 = vadd.f32 0.0, %v2269
        %2271 = vdwg.mxu0
        %v2272 = vadd.f32 %v1822, %v2160
        %v2273 = vadd.f32 %v1825, %v2164
        %v2274 = vxor.u32 %v2272, 2147483648
        %v2275 = vxor.u32 %v2273, 2147483648
        %v2276 = vmul.f32 %v2274, 1.442695
        %v2277 = vpow.pop %v2276
        %v2278 = vmul.f32 %v2275, 1.442695
        %v2279 = vpow.pop %v2278
        %v2280 = vadd.f32 %v2277, 1.0
        %v2281 = vadd.f32 %v2279, 1.0
        %v2282 = vrcp.pop %v2280
        %v2283 = vmul.f32 1.0, %v2282
        %v2284 = vrcp.pop %v2281
        %v2285 = vmul.f32 1.0, %v2284
        %v2286 = vadd.f32 %v1823, %v2162
        %v2287 = vadd.f32 %v1826, %v2166
        %v2288 = vxor.u32 %v2286, 2147483648
        %v2289 = vxor.u32 %v2287, 2147483648
        %v2290 = vmul.f32 %v2288, 1.442695
        %v2291 = vpow.pop %v2290
        %v2292 = vmul.f32 %v2289, 1.442695
        %v2293 = vpow.pop %v2292
        %v2294 = vadd.f32 %v2291, 1.0
        %v2295 = vadd.f32 %v2293, 1.0
        %v2296 = vrcp.pop %v2294
        %v2297 = vmul.f32 1.0, %v2296
        %v2298 = vrcp.pop %v2295
        %v2299 = vmul.f32 1.0, %v2298
        %v2300 = vadd.f32 %v2209, %v1265
        %v2301 = vadd.f32 %v2212, %v1265
        %v2302 = vmul.f32 %v2283, %v2300
        %v2303 = vmul.f32 %v2285, %v2301
        %v2304 = vadd.f32 %v1824, %v2302
        %v2305 = vadd.f32 %v1827, %v2303
        %v2306 = vtanh.pop %v2304
        %v2307 = vtanh.pop %v2305
        %v2308 = vsub.f32 1.0, %v2297
        %v2309 = vsub.f32 1.0, %v2299
        %v2310 = vmul.f32 %v2308, %v2306
        %v2311 = vmul.f32 %v2309, %v2307
        %v2312 = vmul.f32 %v2297, %v1770
        %v2313 = vmul.f32 %v2299, %v1771
        %v2314 = vadd.f32 %v2310, %v2312
        %v2315 = vadd.f32 %v2311, %v2313
        %v2316 = vadd.f32 %v1829, %v2218
        %v2317 = vadd.f32 %v1832, %v2221
        %v2318 = vxor.u32 %v2316, 2147483648
        %v2319 = vxor.u32 %v2317, 2147483648
        %v2320 = vmul.f32 %v2318, 1.442695
        %v2321 = vpow.pop %v2320
        %v2322 = vmul.f32 %v2319, 1.442695
        %v2323 = vpow.pop %v2322
        %v2324 = vadd.f32 %v2321, 1.0
        %v2325 = vadd.f32 %v2323, 1.0
        %v2326 = vrcp.pop %v2324
        %v2327 = vmul.f32 1.0, %v2326
        %v2328 = vrcp.pop %v2325
        %v2329 = vmul.f32 1.0, %v2328
        %v2330 = vadd.f32 %v1830, %v2264
        %v2331 = vadd.f32 %v1833, %v2268
        %v2332 = vxor.u32 %v2330, 2147483648
        %v2333 = vxor.u32 %v2331, 2147483648
        %v2334 = vmul.f32 %v2332, 1.442695
        %v2335 = vpow.pop %v2334
        %v2336 = vmul.f32 %v2333, 1.442695
        %v2337 = vpow.pop %v2336
        %v2338 = vadd.f32 %v2335, 1.0
        %v2339 = vadd.f32 %v2337, 1.0
        %v2340 = vrcp.pop %v2338
        %v2341 = vmul.f32 1.0, %v2340
        %v2342 = vrcp.pop %v2339
        %v2343 = vmul.f32 1.0, %v2342
        %v2344 = vadd.f32 %v2266, %v1272
        %v2345 = vadd.f32 %v2270, %v1272
        %v2346 = vmul.f32 %v2327, %v2344
        %v2347 = vmul.f32 %v2329, %v2345
        %v2348 = vadd.f32 %v1831, %v2346
        %v2349 = vadd.f32 %v1834, %v2347
        %v2350 = vtanh.pop %v2348
        %v2351 = vtanh.pop %v2349
        %v2352 = vsub.f32 1.0, %v2341
        %v2353 = vsub.f32 1.0, %v2343
        %v2354 = vmul.f32 %v2352, %v2350
        %v2355 = vmul.f32 %v2353, %v2351
        %v2356 = vmul.f32 %v2341, %v1814
        %v2357 = vmul.f32 %v2343, %v1815
        %v2358 = vadd.f32 %v2354, %v2356
        %v2359 = vadd.f32 %v2355, %v2357
        %s2360 = scalar_lea.vmem %s493, 16 [#allocation15]
        %2361 = vst [vmem:[%s2360] sm:$0xff] %v2314
        %2362 = vst [vmem:[%s2360 + $0x8] sm:$0xff] %v2315
        %s2363 = scalar_lea.vmem %s500, 32 [#allocation16]
        %2364 = vst [vmem:[%s2363] sm:$0xff] %v2358
        %2365 = vst [vmem:[%s2363 + $0x8] sm:$0xff] %v2359
        %s2366 = scalar_lea.vmem [#allocation2], 96
        %v2367 = vld [vmem:[%s2366] sm:$0xff]
        %v2368 = vld [vmem:[%s2366 + $0x8] sm:$0xff]
        %v2369 = vld [vmem:[%s2366 + $0x10] sm:$0xff]
        %v2370 = vld [vmem:[%s2366 + $0x18] sm:$0xff]
        %v2371 = vld [vmem:[%s2366 + $0x20] sm:$0xff]
        %v2372 = vld [vmem:[%s2366 + $0x28] sm:$0xff]
        %s2373 = scalar_lea.vmem [#allocation3], 48
        %v2374 = vld [vmem:[%s2373] sm:$0xff]
        %v2375 = vld [vmem:[%s2373 + $0x8] sm:$0xff]
        %v2376 = vld [vmem:[%s2373 + $0x10] sm:$0xff]
        %v2377 = vld [vmem:[%s2373 + $0x18] sm:$0xff]
        %v2378 = vld [vmem:[%s2373 + $0x20] sm:$0xff]
        %v2379 = vld [vmem:[%s2373 + $0x28] sm:$0xff]
        %v2380 = vpack.c.bf16 %v2315, %v2314
        %v2381 = vpack.c.bf16 %v2359, %v2358
        %v2382 = vld [vmem:[#allocation14] sm:$0xff]
        %v2383 = vld [vmem:[#allocation14 + $0x8] sm:$0xff]
        %v2384 = vld [vmem:[#allocation14 + $0x10] sm:$0xff]
        %v2385 = vld [vmem:[#allocation14 + $0x18] sm:$0xff]
        %v2386 = vld [vmem:[#allocation14 + $0x20] sm:$0xff]
        %v2387 = vld [vmem:[#allocation14 + $0x28] sm:$0xff]
        %v2388 = vld [vmem:[#allocation14 + $0x30] sm:$0xff]
        %v2389 = vld [vmem:[#allocation14 + $0x38] sm:$0xff]
        %v2390 = vld [vmem:[#allocation14 + $0x40] sm:$0xff]
        %v2391 = vld [vmem:[#allocation14 + $0x48] sm:$0xff]
        %v2392 = vld [vmem:[#allocation14 + $0x50] sm:$0xff]
        %v2393 = vld [vmem:[#allocation14 + $0x58] sm:$0xff]
        %v2394 = vld [vmem:[#allocation14 + $0x60] sm:$0xff]
        %v2395 = vld [vmem:[#allocation14 + $0x68] sm:$0xff]
        %v2396 = vld [vmem:[#allocation14 + $0x70] sm:$0xff]
        %v2397 = vld [vmem:[#allocation14 + $0x78] sm:$0xff]
        %v2398 = vld [vmem:[#allocation14 + $0x80] sm:$0xff]
        %v2399 = vld [vmem:[#allocation14 + $0x88] sm:$0xff]
        %v2400 = vld [vmem:[#allocation14 + $0x90] sm:$0xff]
        %v2401 = vld [vmem:[#allocation14 + $0x98] sm:$0xff]
        %v2402 = vld [vmem:[#allocation14 + $0xa0] sm:$0xff]
        %v2403 = vld [vmem:[#allocation14 + $0xa8] sm:$0xff]
        %v2404 = vld [vmem:[#allocation14 + $0xb0] sm:$0xff]
        %v2405 = vld [vmem:[#allocation14 + $0xb8] sm:$0xff]
        %v2406 = vld [vmem:[#allocation14 + $0xc0] sm:$0xff]
        %v2407 = vld [vmem:[#allocation14 + $0xc8] sm:$0xff]
        %v2408 = vld [vmem:[#allocation14 + $0xd0] sm:$0xff]
        %v2409 = vld [vmem:[#allocation14 + $0xd8] sm:$0xff]
        %v2410 = vld [vmem:[#allocation14 + $0xe0] sm:$0xff]
        %v2411 = vld [vmem:[#allocation14 + $0xe8] sm:$0xff]
        %v2412 = vld [vmem:[#allocation14 + $0xf0] sm:$0xff]
        %v2413 = vld [vmem:[#allocation14 + $0xf8] sm:$0xff]
        %v2414 = vld [vmem:[#allocation14 + $0x100] sm:$0xff]
        %v2415 = vld [vmem:[#allocation14 + $0x108] sm:$0xff]
        %v2416 = vld [vmem:[#allocation14 + $0x110] sm:$0xff]
        %v2417 = vld [vmem:[#allocation14 + $0x118] sm:$0xff]
        %v2418 = vld [vmem:[#allocation14 + $0x120] sm:$0xff]
        %v2419 = vld [vmem:[#allocation14 + $0x128] sm:$0xff]
        %v2420 = vld [vmem:[#allocation14 + $0x130] sm:$0xff]
        %v2421 = vld [vmem:[#allocation14 + $0x138] sm:$0xff]
        %v2422 = vld [vmem:[#allocation14 + $0x140] sm:$0xff]
        %v2423 = vld [vmem:[#allocation14 + $0x148] sm:$0xff]
        %v2424 = vld [vmem:[#allocation14 + $0x150] sm:$0xff]
        %v2425 = vld [vmem:[#allocation14 + $0x158] sm:$0xff]
        %v2426 = vld [vmem:[#allocation14 + $0x160] sm:$0xff]
        %v2427 = vld [vmem:[#allocation14 + $0x168] sm:$0xff]
        %v2428 = vld [vmem:[#allocation14 + $0x170] sm:$0xff]
        %v2429 = vld [vmem:[#allocation14 + $0x178] sm:$0xff]
        %v2478 = vunpack.c.l.b16 %v2382
        %v2479 = vunpack.c.h.b16 %v2382
        %v2480 = vunpack.c.l.b16 %v2383
        %v2481 = vunpack.c.h.b16 %v2383
        %v2482 = vunpack.c.l.b16 %v2384
        %v2483 = vunpack.c.h.b16 %v2384
        %v2484 = vunpack.c.l.b16 %v2385
        %v2485 = vunpack.c.h.b16 %v2385
        %v2486 = vunpack.c.l.b16 %v2386
        %v2487 = vunpack.c.h.b16 %v2386
        %v2488 = vunpack.c.l.b16 %v2387
        %v2489 = vunpack.c.h.b16 %v2387
        %v2490 = vunpack.c.l.b16 %v2388
        %v2491 = vunpack.c.h.b16 %v2388
        %v2492 = vunpack.c.l.b16 %v2389
        %v2493 = vunpack.c.h.b16 %v2389
        %v2494 = vunpack.c.l.b16 %v2390
        %v2495 = vunpack.c.h.b16 %v2390
        %v2496 = vunpack.c.l.b16 %v2391
        %v2497 = vunpack.c.h.b16 %v2391
        %v2498 = vunpack.c.l.b16 %v2392
        %v2499 = vunpack.c.h.b16 %v2392
        %v2500 = vunpack.c.l.b16 %v2393
        %v2501 = vunpack.c.h.b16 %v2393
        %v2502 = vunpack.c.l.b16 %v2394
        %v2503 = vunpack.c.h.b16 %v2394
        %v2504 = vunpack.c.l.b16 %v2395
        %v2505 = vunpack.c.h.b16 %v2395
        %v2506 = vunpack.c.l.b16 %v2396
        %v2507 = vunpack.c.h.b16 %v2396
        %v2508 = vunpack.c.l.b16 %v2397
        %v2509 = vunpack.c.h.b16 %v2397
        %v2510 = vunpack.c.l.b16 %v2398
        %v2511 = vunpack.c.h.b16 %v2398
        %v2512 = vunpack.c.l.b16 %v2399
        %v2513 = vunpack.c.h.b16 %v2399
        %v2514 = vunpack.c.l.b16 %v2400
        %v2515 = vunpack.c.h.b16 %v2400
        %v2516 = vunpack.c.l.b16 %v2401
        %v2517 = vunpack.c.h.b16 %v2401
        %v2518 = vunpack.c.l.b16 %v2402
        %v2519 = vunpack.c.h.b16 %v2402
        %v2520 = vunpack.c.l.b16 %v2403
        %v2521 = vunpack.c.h.b16 %v2403
        %v2522 = vunpack.c.l.b16 %v2404
        %v2523 = vunpack.c.h.b16 %v2404
        %v2524 = vunpack.c.l.b16 %v2405
        %v2525 = vunpack.c.h.b16 %v2405
        %v2526 = vunpack.c.l.b16 %v2406
        %v2527 = vunpack.c.h.b16 %v2406
        %v2528 = vunpack.c.l.b16 %v2407
        %v2529 = vunpack.c.h.b16 %v2407
        %v2530 = vunpack.c.l.b16 %v2408
        %v2531 = vunpack.c.h.b16 %v2408
        %v2532 = vunpack.c.l.b16 %v2409
        %v2533 = vunpack.c.h.b16 %v2409
        %v2534 = vunpack.c.l.b16 %v2410
        %v2535 = vunpack.c.h.b16 %v2410
        %v2536 = vunpack.c.l.b16 %v2411
        %v2537 = vunpack.c.h.b16 %v2411
        %v2538 = vunpack.c.l.b16 %v2412
        %v2539 = vunpack.c.h.b16 %v2412
        %v2540 = vunpack.c.l.b16 %v2413
        %v2541 = vunpack.c.h.b16 %v2413
        %v2542 = vunpack.c.l.b16 %v2414
        %v2543 = vunpack.c.h.b16 %v2414
        %v2544 = vunpack.c.l.b16 %v2415
        %v2545 = vunpack.c.h.b16 %v2415
        %v2546 = vunpack.c.l.b16 %v2416
        %v2547 = vunpack.c.h.b16 %v2416
        %v2548 = vunpack.c.l.b16 %v2417
        %v2549 = vunpack.c.h.b16 %v2417
        %v2550 = vunpack.c.l.b16 %v2418
        %v2551 = vunpack.c.h.b16 %v2418
        %v2552 = vunpack.c.l.b16 %v2419
        %v2553 = vunpack.c.h.b16 %v2419
        %v2554 = vunpack.c.l.b16 %v2420
        %v2555 = vunpack.c.h.b16 %v2420
        %v2556 = vunpack.c.l.b16 %v2421
        %v2557 = vunpack.c.h.b16 %v2421
        %v2558 = vunpack.c.l.b16 %v2422
        %v2559 = vunpack.c.h.b16 %v2422
        %v2560 = vunpack.c.l.b16 %v2423
        %v2561 = vunpack.c.h.b16 %v2423
        %v2562 = vunpack.c.l.b16 %v2424
        %v2563 = vunpack.c.h.b16 %v2424
        %v2564 = vunpack.c.l.b16 %v2425
        %v2565 = vunpack.c.h.b16 %v2425
        %v2566 = vunpack.c.l.b16 %v2426
        %v2567 = vunpack.c.h.b16 %v2426
        %v2568 = vunpack.c.l.b16 %v2427
        %v2569 = vunpack.c.h.b16 %v2427
        %v2570 = vunpack.c.l.b16 %v2428
        %v2571 = vunpack.c.h.b16 %v2428
        %v2572 = vunpack.c.l.b16 %v2429
        %v2573 = vunpack.c.h.b16 %v2429
        %v2574 = vpack.c.b16 %v2484, %v2478
        %v2575 = vpack.c.b16 %v2485, %v2479
        %v2576 = vpack.c.b16 %v2486, %v2480
        %v2577 = vpack.c.b16 %v2487, %v2481
        %v2578 = vpack.c.b16 %v2488, %v2482
        %v2579 = vpack.c.b16 %v2489, %v2483
        %v2580 = vpack.c.b16 %v2496, %v2490
        %v2581 = vpack.c.b16 %v2497, %v2491
        %v2582 = vpack.c.b16 %v2498, %v2492
        %v2583 = vpack.c.b16 %v2499, %v2493
        %v2584 = vpack.c.b16 %v2500, %v2494
        %v2585 = vpack.c.b16 %v2501, %v2495
        %v2586 = vpack.c.b16 %v2508, %v2502
        %v2587 = vpack.c.b16 %v2509, %v2503
        %v2588 = vpack.c.b16 %v2510, %v2504
        %v2589 = vpack.c.b16 %v2511, %v2505
        %v2590 = vpack.c.b16 %v2512, %v2506
        %v2591 = vpack.c.b16 %v2513, %v2507
        %v2592 = vpack.c.b16 %v2520, %v2514
        %v2593 = vpack.c.b16 %v2521, %v2515
        %v2594 = vpack.c.b16 %v2522, %v2516
        %v2595 = vpack.c.b16 %v2523, %v2517
        %v2596 = vpack.c.b16 %v2524, %v2518
        %v2597 = vpack.c.b16 %v2525, %v2519
        %v2598 = vpack.c.b16 %v2532, %v2526
        %v2599 = vpack.c.b16 %v2533, %v2527
        %v2600 = vpack.c.b16 %v2534, %v2528
        %v2601 = vpack.c.b16 %v2535, %v2529
        %v2602 = vpack.c.b16 %v2536, %v2530
        %v2603 = vpack.c.b16 %v2537, %v2531
        %v2604 = vpack.c.b16 %v2544, %v2538
        %v2605 = vpack.c.b16 %v2545, %v2539
        %v2606 = vpack.c.b16 %v2546, %v2540
        %v2607 = vpack.c.b16 %v2547, %v2541
        %v2608 = vpack.c.b16 %v2548, %v2542
        %v2609 = vpack.c.b16 %v2549, %v2543
        %v2610 = vpack.c.b16 %v2556, %v2550
        %v2611 = vpack.c.b16 %v2557, %v2551
        %v2612 = vpack.c.b16 %v2558, %v2552
        %v2613 = vpack.c.b16 %v2559, %v2553
        %v2614 = vpack.c.b16 %v2560, %v2554
        %v2615 = vpack.c.b16 %v2561, %v2555
        %v2616 = vpack.c.b16 %v2568, %v2562
        %v2617 = vpack.c.b16 %v2569, %v2563
        %v2618 = vpack.c.b16 %v2570, %v2564
        %v2619 = vpack.c.b16 %v2571, %v2565
        %v2620 = vpack.c.b16 %v2572, %v2566
        %v2621 = vpack.c.b16 %v2573, %v2567
        %2670 = vmatprep.subr.bf16.mxu0 %v2575
        %2671 = vmatpush1.bf16.msra.mxu0 %v2574
        %2672 = vmatprep.subr.bf16.mxu0 %v2581
        %2673 = vmatpush1.bf16.msra.mxu0 %v2580
        %2674 = vmatprep.subr.bf16.mxu0 %v2587
        %2675 = vmatpush1.bf16.msra.mxu0 %v2586
        %2676 = vmatprep.subr.bf16.mxu0 %v2593
        %2677 = vmatpush1.bf16.msra.mxu0 %v2592
        %2678 = vmatprep.subr.bf16.mxu0 %v2599
        %2679 = vmatpush1.bf16.msra.mxu0 %v2598
        %2680 = vmatprep.subr.bf16.mxu0 %v2605
        %2681 = vmatpush1.bf16.msra.mxu0 %v2604
        %2682 = vmatprep.subr.bf16.mxu0 %v2611
        %2683 = vmatpush1.bf16.msra.mxu0 %v2610
        %2684 = vmatprep.subr.bf16.mxu0 %v2617
        %2685 = vmatpush1.bf16.msra.mxu0 %v2616
        %2686 = vmatprep.subr.bf16.mxu0 0
        %2687 = vmatpush1.bf16.msra.mxu0 0
        %2688 = vmatprep.subr.bf16.mxu0 0
        %2689 = vmatpush1.bf16.msra.mxu0 0
        %2690 = vmatprep.subr.bf16.mxu0 0
        %2691 = vmatpush1.bf16.msra.mxu0 0
        %2692 = vmatprep.subr.bf16.mxu0 0
        %2693 = vmatpush1.bf16.msra.mxu0 0
        %2694 = vmatprep.subr.bf16.mxu0 0
        %2695 = vmatpush1.bf16.msra.mxu0 0
        %2696 = vmatprep.subr.bf16.mxu0 0
        %2697 = vmatpush1.bf16.msra.mxu0 0
        %2698 = vmatprep.subr.bf16.mxu0 0
        %2699 = vmatpush1.bf16.msra.mxu0 0
        %2700 = vmatprep.subr.bf16.mxu0 0
        %2701 = vmatpush1.bf16.msra.mxu0 0
        %2702 = vmatprep.mubr.bf16.mxu0 0
        %2703 = vmatmul.mubr.bf16.gmra.mrb[0].mxu0 %v2380
        %v2704 = vpop.f32.mrb[0].mxu0
        %v2705 = vadd.f32 0.0, %v2704
        %v2706 = vpop.f32.mrb[0].mxu0
        %v2707 = vadd.f32 0.0, %v2706
        %v2708 = vpop.f32.mrb[0].mxu0
        %v2709 = vadd.f32 0.0, %v2708
        %v2710 = vpop.f32.mrb[0].mxu0
        %v2711 = vadd.f32 0.0, %v2710
        %2712 = vmatprep.mubr.bf16.mxu0 0
        %2713 = vmatmul.mubr.bf16.gmra.mrb[0].mxu0 %v2381
        %v2714 = vpop.f32.mrb[0].mxu0
        %v2715 = vpop.f32.mrb[0].mxu0
        %v2716 = vpop.f32.mrb[0].mxu0
        %v2717 = vpop.f32.mrb[0].mxu0
        %2718 = vdwg.mxu0
        %2719 = vmatprep.subr.bf16.mxu0 %v2577
        %2720 = vmatpush1.bf16.msra.mxu0 %v2576
        %2721 = vmatprep.subr.bf16.mxu0 %v2583
        %2722 = vmatpush1.bf16.msra.mxu0 %v2582
        %2723 = vmatprep.subr.bf16.mxu0 %v2589
        %2724 = vmatpush1.bf16.msra.mxu0 %v2588
        %2725 = vmatprep.subr.bf16.mxu0 %v2595
        %2726 = vmatpush1.bf16.msra.mxu0 %v2594
        %2727 = vmatprep.subr.bf16.mxu0 %v2601
        %2728 = vmatpush1.bf16.msra.mxu0 %v2600
        %2729 = vmatprep.subr.bf16.mxu0 %v2607
        %2730 = vmatpush1.bf16.msra.mxu0 %v2606
        %2731 = vmatprep.subr.bf16.mxu0 %v2613
        %2732 = vmatpush1.bf16.msra.mxu0 %v2612
        %2733 = vmatprep.subr.bf16.mxu0 %v2619
        %2734 = vmatpush1.bf16.msra.mxu0 %v2618
        %2735 = vmatprep.subr.bf16.mxu0 0
        %2736 = vmatpush1.bf16.msra.mxu0 0
        %2737 = vmatprep.subr.bf16.mxu0 0
        %2738 = vmatpush1.bf16.msra.mxu0 0
        %2739 = vmatprep.subr.bf16.mxu0 0
        %2740 = vmatpush1.bf16.msra.mxu0 0
        %2741 = vmatprep.subr.bf16.mxu0 0
        %2742 = vmatpush1.bf16.msra.mxu0 0
        %2743 = vmatprep.subr.bf16.mxu0 0
        %2744 = vmatpush1.bf16.msra.mxu0 0
        %2745 = vmatprep.subr.bf16.mxu0 0
        %2746 = vmatpush1.bf16.msra.mxu0 0
        %2747 = vmatprep.subr.bf16.mxu0 0
        %2748 = vmatpush1.bf16.msra.mxu0 0
        %2749 = vmatprep.subr.bf16.mxu0 0
        %2750 = vmatpush1.bf16.msra.mxu0 0
        %2751 = vmatprep.mubr.bf16.mxu0 0
        %2752 = vmatmul.mubr.bf16.gmra.mrb[0].mxu0 %v2380
        %v2753 = vpop.f32.mrb[0].mxu0
        %v2754 = vadd.f32 0.0, %v2753
        %v2755 = vpop.f32.mrb[0].mxu0
        %v2756 = vpop.f32.mrb[0].mxu0
        %v2757 = vadd.f32 0.0, %v2756
        %v2758 = vpop.f32.mrb[0].mxu0
        %2759 = vmatprep.mubr.bf16.mxu0 0
        %2760 = vmatmul.mubr.bf16.gmra.mrb[0].mxu0 %v2381
        %v2761 = vpop.f32.mrb[0].mxu0
        %v2762 = vpop.f32.mrb[0].mxu0
        %v2763 = vadd.f32 0.0, %v2762
        %v2764 = vpop.f32.mrb[0].mxu0
        %v2765 = vpop.f32.mrb[0].mxu0
        %v2766 = vadd.f32 0.0, %v2765
        %2767 = vdwg.mxu0
        %2768 = vmatprep.subr.bf16.mxu0 %v2579
        %2769 = vmatpush1.bf16.msra.mxu0 %v2578
        %2770 = vmatprep.subr.bf16.mxu0 %v2585
        %2771 = vmatpush1.bf16.msra.mxu0 %v2584
        %2772 = vmatprep.subr.bf16.mxu0 %v2591
        %2773 = vmatpush1.bf16.msra.mxu0 %v2590
        %2774 = vmatprep.subr.bf16.mxu0 %v2597
        %2775 = vmatpush1.bf16.msra.mxu0 %v2596
        %2776 = vmatprep.subr.bf16.mxu0 %v2603
        %2777 = vmatpush1.bf16.msra.mxu0 %v2602
        %2778 = vmatprep.subr.bf16.mxu0 %v2609
        %2779 = vmatpush1.bf16.msra.mxu0 %v2608
        %2780 = vmatprep.subr.bf16.mxu0 %v2615
        %2781 = vmatpush1.bf16.msra.mxu0 %v2614
        %2782 = vmatprep.subr.bf16.mxu0 %v2621
        %2783 = vmatpush1.bf16.msra.mxu0 %v2620
        %2784 = vmatprep.subr.bf16.mxu0 0
        %2785 = vmatpush1.bf16.msra.mxu0 0
        %2786 = vmatprep.subr.bf16.mxu0 0
        %2787 = vmatpush1.bf16.msra.mxu0 0
        %2788 = vmatprep.subr.bf16.mxu0 0
        %2789 = vmatpush1.bf16.msra.mxu0 0
        %2790 = vmatprep.subr.bf16.mxu0 0
        %2791 = vmatpush1.bf16.msra.mxu0 0
        %2792 = vmatprep.subr.bf16.mxu0 0
        %2793 = vmatpush1.bf16.msra.mxu0 0
        %2794 = vmatprep.subr.bf16.mxu0 0
        %2795 = vmatpush1.bf16.msra.mxu0 0
        %2796 = vmatprep.subr.bf16.mxu0 0
        %2797 = vmatpush1.bf16.msra.mxu0 0
        %2798 = vmatprep.subr.bf16.mxu0 0
        %2799 = vmatpush1.bf16.msra.mxu0 0
        %2800 = vmatprep.mubr.bf16.mxu0 0
        %2801 = vmatmul.mubr.bf16.gmra.mrb[0].mxu0 %v2380
        %v2802 = vpop.f32.mrb[0].mxu0
        %v2803 = vpop.f32.mrb[0].mxu0
        %v2804 = vpop.f32.mrb[0].mxu0
        %v2805 = vpop.f32.mrb[0].mxu0
        %2806 = vmatprep.mubr.bf16.mxu0 0
        %2807 = vmatmul.mubr.bf16.gmra.mrb[0].mxu0 %v2381
        %v2808 = vpop.f32.mrb[0].mxu0
        %v2809 = vadd.f32 0.0, %v2808
        %v2810 = vpop.f32.mrb[0].mxu0
        %v2811 = vadd.f32 0.0, %v2810
        %v2812 = vpop.f32.mrb[0].mxu0
        %v2813 = vadd.f32 0.0, %v2812
        %v2814 = vpop.f32.mrb[0].mxu0
        %v2815 = vadd.f32 0.0, %v2814
        %2816 = vdwg.mxu0
        %v2817 = vadd.f32 %v2367, %v2705
        %v2818 = vadd.f32 %v2370, %v2709
        %v2819 = vxor.u32 %v2817, 2147483648
        %v2820 = vxor.u32 %v2818, 2147483648
        %v2821 = vmul.f32 %v2819, 1.442695
        %v2822 = vpow.pop %v2821
        %v2823 = vmul.f32 %v2820, 1.442695
        %v2824 = vpow.pop %v2823
        %v2825 = vadd.f32 %v2822, 1.0
        %v2826 = vadd.f32 %v2824, 1.0
        %v2827 = vrcp.pop %v2825
        %v2828 = vmul.f32 1.0, %v2827
        %v2829 = vrcp.pop %v2826
        %v2830 = vmul.f32 1.0, %v2829
        %v2831 = vadd.f32 %v2368, %v2707
        %v2832 = vadd.f32 %v2371, %v2711
        %v2833 = vxor.u32 %v2831, 2147483648
        %v2834 = vxor.u32 %v2832, 2147483648
        %v2835 = vmul.f32 %v2833, 1.442695
        %v2836 = vpow.pop %v2835
        %v2837 = vmul.f32 %v2834, 1.442695
        %v2838 = vpow.pop %v2837
        %v2839 = vadd.f32 %v2836, 1.0
        %v2840 = vadd.f32 %v2838, 1.0
        %v2841 = vrcp.pop %v2839
        %v2842 = vmul.f32 1.0, %v2841
        %v2843 = vrcp.pop %v2840
        %v2844 = vmul.f32 1.0, %v2843
        %v2845 = vadd.f32 %v2754, %v1265
        %v2846 = vadd.f32 %v2757, %v1265
        %v2847 = vmul.f32 %v2828, %v2845
        %v2848 = vmul.f32 %v2830, %v2846
        %v2849 = vadd.f32 %v2369, %v2847
        %v2850 = vadd.f32 %v2372, %v2848
        %v2851 = vtanh.pop %v2849
        %v2852 = vtanh.pop %v2850
        %v2853 = vsub.f32 1.0, %v2842
        %v2854 = vsub.f32 1.0, %v2844
        %v2855 = vmul.f32 %v2853, %v2851
        %v2856 = vmul.f32 %v2854, %v2852
        %v2857 = vmul.f32 %v2842, %v2314
        %v2858 = vmul.f32 %v2844, %v2315
        %v2859 = vadd.f32 %v2855, %v2857
        %v2860 = vadd.f32 %v2856, %v2858
        %v2861 = vadd.f32 %v2374, %v2763
        %v2862 = vadd.f32 %v2377, %v2766
        %v2863 = vxor.u32 %v2861, 2147483648
        %v2864 = vxor.u32 %v2862, 2147483648
        %v2865 = vmul.f32 %v2863, 1.442695
        %v2866 = vpow.pop %v2865
        %v2867 = vmul.f32 %v2864, 1.442695
        %v2868 = vpow.pop %v2867
        %v2869 = vadd.f32 %v2866, 1.0
        %v2870 = vadd.f32 %v2868, 1.0
        %v2871 = vrcp.pop %v2869
        %v2872 = vmul.f32 1.0, %v2871
        %v2873 = vrcp.pop %v2870
        %v2874 = vmul.f32 1.0, %v2873
        %v2875 = vadd.f32 %v2375, %v2809
        %v2876 = vadd.f32 %v2378, %v2813
        %v2877 = vxor.u32 %v2875, 2147483648
        %v2878 = vxor.u32 %v2876, 2147483648
        %v2879 = vmul.f32 %v2877, 1.442695
        %v2880 = vpow.pop %v2879
        %v2881 = vmul.f32 %v2878, 1.442695
        %v2882 = vpow.pop %v2881
        %v2883 = vadd.f32 %v2880, 1.0
        %v2884 = vadd.f32 %v2882, 1.0
        %v2885 = vrcp.pop %v2883
        %v2886 = vmul.f32 1.0, %v2885
        %v2887 = vrcp.pop %v2884
        %v2888 = vmul.f32 1.0, %v2887
        %v2889 = vadd.f32 %v2811, %v1272
        %v2890 = vadd.f32 %v2815, %v1272
        %v2891 = vmul.f32 %v2872, %v2889
        %v2892 = vmul.f32 %v2874, %v2890
        %v2893 = vadd.f32 %v2376, %v2891
        %v2894 = vadd.f32 %v2379, %v2892
        %v2895 = vtanh.pop %v2893
        %v2896 = vtanh.pop %v2894
        %v2897 = vsub.f32 1.0, %v2886
        %v2898 = vsub.f32 1.0, %v2888
        %v2899 = vmul.f32 %v2897, %v2895
        %v2900 = vmul.f32 %v2898, %v2896
        %v2901 = vmul.f32 %v2886, %v2358
        %v2902 = vmul.f32 %v2888, %v2359
        %v2903 = vadd.f32 %v2899, %v2901
        %v2904 = vadd.f32 %v2900, %v2902
        %s2905 = scalar_lea.vmem %s493, 32 [#allocation15]
        %2906 = vst [vmem:[%s2905] sm:$0xff] %v2859
        %2907 = vst [vmem:[%s2905 + $0x8] sm:$0xff] %v2860
        %s2908 = scalar_lea.vmem %s500, 16 [#allocation16]
        %2909 = vst [vmem:[%s2908] sm:$0xff] %v2903
        %2910 = vst [vmem:[%s2908 + $0x8] sm:$0xff] %v2904
        %s2911 = scalar_lea.vmem [#allocation2], 144
        %v2912 = vld [vmem:[%s2911] sm:$0xff]
        %v2913 = vld [vmem:[%s2911 + $0x8] sm:$0xff]
        %v2914 = vld [vmem:[%s2911 + $0x10] sm:$0xff]
        %v2915 = vld [vmem:[%s2911 + $0x18] sm:$0xff]
        %v2916 = vld [vmem:[%s2911 + $0x20] sm:$0xff]
        %v2917 = vld [vmem:[%s2911 + $0x28] sm:$0xff]
        %v2918 = vld [vmem:[#allocation3] sm:$0xff]
        %v2919 = vld [vmem:[#allocation3 + $0x8] sm:$0xff]
        %v2920 = vld [vmem:[#allocation3 + $0x10] sm:$0xff]
        %v2921 = vld [vmem:[#allocation3 + $0x18] sm:$0xff]
        %v2922 = vld [vmem:[#allocation3 + $0x20] sm:$0xff]
        %v2923 = vld [vmem:[#allocation3 + $0x28] sm:$0xff]
        %v2924 = vpack.c.bf16 %v2860, %v2859
        %v2925 = vpack.c.bf16 %v2904, %v2903
        %v2926 = vld [vmem:[#allocation14] sm:$0xff]
        %v2927 = vld [vmem:[#allocation14 + $0x8] sm:$0xff]
        %v2928 = vld [vmem:[#allocation14 + $0x10] sm:$0xff]
        %v2929 = vld [vmem:[#allocation14 + $0x18] sm:$0xff]
        %v2930 = vld [vmem:[#allocation14 + $0x20] sm:$0xff]
        %v2931 = vld [vmem:[#allocation14 + $0x28] sm:$0xff]
        %v2932 = vld [vmem:[#allocation14 + $0x30] sm:$0xff]
        %v2933 = vld [vmem:[#allocation14 + $0x38] sm:$0xff]
        %v2934 = vld [vmem:[#allocation14 + $0x40] sm:$0xff]
        %v2935 = vld [vmem:[#allocation14 + $0x48] sm:$0xff]
        %v2936 = vld [vmem:[#allocation14 + $0x50] sm:$0xff]
        %v2937 = vld [vmem:[#allocation14 + $0x58] sm:$0xff]
        %v2938 = vld [vmem:[#allocation14 + $0x60] sm:$0xff]
        %v2939 = vld [vmem:[#allocation14 + $0x68] sm:$0xff]
        %v2940 = vld [vmem:[#allocation14 + $0x70] sm:$0xff]
        %v2941 = vld [vmem:[#allocation14 + $0x78] sm:$0xff]
        %v2942 = vld [vmem:[#allocation14 + $0x80] sm:$0xff]
        %v2943 = vld [vmem:[#allocation14 + $0x88] sm:$0xff]
        %v2944 = vld [vmem:[#allocation14 + $0x90] sm:$0xff]
        %v2945 = vld [vmem:[#allocation14 + $0x98] sm:$0xff]
        %v2946 = vld [vmem:[#allocation14 + $0xa0] sm:$0xff]
        %v2947 = vld [vmem:[#allocation14 + $0xa8] sm:$0xff]
        %v2948 = vld [vmem:[#allocation14 + $0xb0] sm:$0xff]
        %v2949 = vld [vmem:[#allocation14 + $0xb8] sm:$0xff]
        %v2950 = vld [vmem:[#allocation14 + $0xc0] sm:$0xff]
        %v2951 = vld [vmem:[#allocation14 + $0xc8] sm:$0xff]
        %v2952 = vld [vmem:[#allocation14 + $0xd0] sm:$0xff]
        %v2953 = vld [vmem:[#allocation14 + $0xd8] sm:$0xff]
        %v2954 = vld [vmem:[#allocation14 + $0xe0] sm:$0xff]
        %v2955 = vld [vmem:[#allocation14 + $0xe8] sm:$0xff]
        %v2956 = vld [vmem:[#allocation14 + $0xf0] sm:$0xff]
        %v2957 = vld [vmem:[#allocation14 + $0xf8] sm:$0xff]
        %v2958 = vld [vmem:[#allocation14 + $0x100] sm:$0xff]
        %v2959 = vld [vmem:[#allocation14 + $0x108] sm:$0xff]
        %v2960 = vld [vmem:[#allocation14 + $0x110] sm:$0xff]
        %v2961 = vld [vmem:[#allocation14 + $0x118] sm:$0xff]
        %v2962 = vld [vmem:[#allocation14 + $0x120] sm:$0xff]
        %v2963 = vld [vmem:[#allocation14 + $0x128] sm:$0xff]
        %v2964 = vld [vmem:[#allocation14 + $0x130] sm:$0xff]
        %v2965 = vld [vmem:[#allocation14 + $0x138] sm:$0xff]
        %v2966 = vld [vmem:[#allocation14 + $0x140] sm:$0xff]
        %v2967 = vld [vmem:[#allocation14 + $0x148] sm:$0xff]
        %v2968 = vld [vmem:[#allocation14 + $0x150] sm:$0xff]
        %v2969 = vld [vmem:[#allocation14 + $0x158] sm:$0xff]
        %v2970 = vld [vmem:[#allocation14 + $0x160] sm:$0xff]
        %v2971 = vld [vmem:[#allocation14 + $0x168] sm:$0xff]
        %v2972 = vld [vmem:[#allocation14 + $0x170] sm:$0xff]
        %v2973 = vld [vmem:[#allocation14 + $0x178] sm:$0xff]
        %v3022 = vunpack.c.l.b16 %v2926
        %v3023 = vunpack.c.h.b16 %v2926
        %v3024 = vunpack.c.l.b16 %v2927
        %v3025 = vunpack.c.h.b16 %v2927
        %v3026 = vunpack.c.l.b16 %v2928
        %v3027 = vunpack.c.h.b16 %v2928
        %v3028 = vunpack.c.l.b16 %v2929
        %v3029 = vunpack.c.h.b16 %v2929
        %v3030 = vunpack.c.l.b16 %v2930
        %v3031 = vunpack.c.h.b16 %v2930
        %v3032 = vunpack.c.l.b16 %v2931
        %v3033 = vunpack.c.h.b16 %v2931
        %v3034 = vunpack.c.l.b16 %v2932
        %v3035 = vunpack.c.h.b16 %v2932
        %v3036 = vunpack.c.l.b16 %v2933
        %v3037 = vunpack.c.h.b16 %v2933
        %v3038 = vunpack.c.l.b16 %v2934
        %v3039 = vunpack.c.h.b16 %v2934
        %v3040 = vunpack.c.l.b16 %v2935
        %v3041 = vunpack.c.h.b16 %v2935
        %v3042 = vunpack.c.l.b16 %v2936
        %v3043 = vunpack.c.h.b16 %v2936
        %v3044 = vunpack.c.l.b16 %v2937
        %v3045 = vunpack.c.h.b16 %v2937
        %v3046 = vunpack.c.l.b16 %v2938
        %v3047 = vunpack.c.h.b16 %v2938
        %v3048 = vunpack.c.l.b16 %v2939
        %v3049 = vunpack.c.h.b16 %v2939
        %v3050 = vunpack.c.l.b16 %v2940
        %v3051 = vunpack.c.h.b16 %v2940
        %v3052 = vunpack.c.l.b16 %v2941
        %v3053 = vunpack.c.h.b16 %v2941
        %v3054 = vunpack.c.l.b16 %v2942
        %v3055 = vunpack.c.h.b16 %v2942
        %v3056 = vunpack.c.l.b16 %v2943
        %v3057 = vunpack.c.h.b16 %v2943
        %v3058 = vunpack.c.l.b16 %v2944
        %v3059 = vunpack.c.h.b16 %v2944
        %v3060 = vunpack.c.l.b16 %v2945
        %v3061 = vunpack.c.h.b16 %v2945
        %v3062 = vunpack.c.l.b16 %v2946
        %v3063 = vunpack.c.h.b16 %v2946
        %v3064 = vunpack.c.l.b16 %v2947
        %v3065 = vunpack.c.h.b16 %v2947
        %v3066 = vunpack.c.l.b16 %v2948
        %v3067 = vunpack.c.h.b16 %v2948
        %v3068 = vunpack.c.l.b16 %v2949
        %v3069 = vunpack.c.h.b16 %v2949
        %v3070 = vunpack.c.l.b16 %v2950
        %v3071 = vunpack.c.h.b16 %v2950
        %v3072 = vunpack.c.l.b16 %v2951
        %v3073 = vunpack.c.h.b16 %v2951
        %v3074 = vunpack.c.l.b16 %v2952
        %v3075 = vunpack.c.h.b16 %v2952
        %v3076 = vunpack.c.l.b16 %v2953
        %v3077 = vunpack.c.h.b16 %v2953
        %v3078 = vunpack.c.l.b16 %v2954
        %v3079 = vunpack.c.h.b16 %v2954
        %v3080 = vunpack.c.l.b16 %v2955
        %v3081 = vunpack.c.h.b16 %v2955
        %v3082 = vunpack.c.l.b16 %v2956
        %v3083 = vunpack.c.h.b16 %v2956
        %v3084 = vunpack.c.l.b16 %v2957
        %v3085 = vunpack.c.h.b16 %v2957
        %v3086 = vunpack.c.l.b16 %v2958
        %v3087 = vunpack.c.h.b16 %v2958
        %v3088 = vunpack.c.l.b16 %v2959
        %v3089 = vunpack.c.h.b16 %v2959
        %v3090 = vunpack.c.l.b16 %v2960
        %v3091 = vunpack.c.h.b16 %v2960
        %v3092 = vunpack.c.l.b16 %v2961
        %v3093 = vunpack.c.h.b16 %v2961
        %v3094 = vunpack.c.l.b16 %v2962
        %v3095 = vunpack.c.h.b16 %v2962
        %v3096 = vunpack.c.l.b16 %v2963
        %v3097 = vunpack.c.h.b16 %v2963
        %v3098 = vunpack.c.l.b16 %v2964
        %v3099 = vunpack.c.h.b16 %v2964
        %v3100 = vunpack.c.l.b16 %v2965
        %v3101 = vunpack.c.h.b16 %v2965
        %v3102 = vunpack.c.l.b16 %v2966
        %v3103 = vunpack.c.h.b16 %v2966
        %v3104 = vunpack.c.l.b16 %v2967
        %v3105 = vunpack.c.h.b16 %v2967
        %v3106 = vunpack.c.l.b16 %v2968
        %v3107 = vunpack.c.h.b16 %v2968
        %v3108 = vunpack.c.l.b16 %v2969
        %v3109 = vunpack.c.h.b16 %v2969
        %v3110 = vunpack.c.l.b16 %v2970
        %v3111 = vunpack.c.h.b16 %v2970
        %v3112 = vunpack.c.l.b16 %v2971
        %v3113 = vunpack.c.h.b16 %v2971
        %v3114 = vunpack.c.l.b16 %v2972
        %v3115 = vunpack.c.h.b16 %v2972
        %v3116 = vunpack.c.l.b16 %v2973
        %v3117 = vunpack.c.h.b16 %v2973
        %v3118 = vpack.c.b16 %v3028, %v3022
        %v3119 = vpack.c.b16 %v3029, %v3023
        %v3120 = vpack.c.b16 %v3030, %v3024
        %v3121 = vpack.c.b16 %v3031, %v3025
        %v3122 = vpack.c.b16 %v3032, %v3026
        %v3123 = vpack.c.b16 %v3033, %v3027
        %v3124 = vpack.c.b16 %v3040, %v3034
        %v3125 = vpack.c.b16 %v3041, %v3035
        %v3126 = vpack.c.b16 %v3042, %v3036
        %v3127 = vpack.c.b16 %v3043, %v3037
        %v3128 = vpack.c.b16 %v3044, %v3038
        %v3129 = vpack.c.b16 %v3045, %v3039
        %v3130 = vpack.c.b16 %v3052, %v3046
        %v3131 = vpack.c.b16 %v3053, %v3047
        %v3132 = vpack.c.b16 %v3054, %v3048
        %v3133 = vpack.c.b16 %v3055, %v3049
        %v3134 = vpack.c.b16 %v3056, %v3050
        %v3135 = vpack.c.b16 %v3057, %v3051
        %v3136 = vpack.c.b16 %v3064, %v3058
        %v3137 = vpack.c.b16 %v3065, %v3059
        %v3138 = vpack.c.b16 %v3066, %v3060
        %v3139 = vpack.c.b16 %v3067, %v3061
        %v3140 = vpack.c.b16 %v3068, %v3062
        %v3141 = vpack.c.b16 %v3069, %v3063
        %v3142 = vpack.c.b16 %v3076, %v3070
        %v3143 = vpack.c.b16 %v3077, %v3071
        %v3144 = vpack.c.b16 %v3078, %v3072
        %v3145 = vpack.c.b16 %v3079, %v3073
        %v3146 = vpack.c.b16 %v3080, %v3074
        %v3147 = vpack.c.b16 %v3081, %v3075
        %v3148 = vpack.c.b16 %v3088, %v3082
        %v3149 = vpack.c.b16 %v3089, %v3083
        %v3150 = vpack.c.b16 %v3090, %v3084
        %v3151 = vpack.c.b16 %v3091, %v3085
        %v3152 = vpack.c.b16 %v3092, %v3086
        %v3153 = vpack.c.b16 %v3093, %v3087
        %v3154 = vpack.c.b16 %v3100, %v3094
        %v3155 = vpack.c.b16 %v3101, %v3095
        %v3156 = vpack.c.b16 %v3102, %v3096
        %v3157 = vpack.c.b16 %v3103, %v3097
        %v3158 = vpack.c.b16 %v3104, %v3098
        %v3159 = vpack.c.b16 %v3105, %v3099
        %v3160 = vpack.c.b16 %v3112, %v3106
        %v3161 = vpack.c.b16 %v3113, %v3107
        %v3162 = vpack.c.b16 %v3114, %v3108
        %v3163 = vpack.c.b16 %v3115, %v3109
        %v3164 = vpack.c.b16 %v3116, %v3110
        %v3165 = vpack.c.b16 %v3117, %v3111
        %3214 = vmatprep.subr.bf16.mxu0 %v3119
        %3215 = vmatpush1.bf16.msra.mxu0 %v3118
        %3216 = vmatprep.subr.bf16.mxu0 %v3125
        %3217 = vmatpush1.bf16.msra.mxu0 %v3124
        %3218 = vmatprep.subr.bf16.mxu0 %v3131
        %3219 = vmatpush1.bf16.msra.mxu0 %v3130
        %3220 = vmatprep.subr.bf16.mxu0 %v3137
        %3221 = vmatpush1.bf16.msra.mxu0 %v3136
        %3222 = vmatprep.subr.bf16.mxu0 %v3143
        %3223 = vmatpush1.bf16.msra.mxu0 %v3142
        %3224 = vmatprep.subr.bf16.mxu0 %v3149
        %3225 = vmatpush1.bf16.msra.mxu0 %v3148
        %3226 = vmatprep.subr.bf16.mxu0 %v3155
        %3227 = vmatpush1.bf16.msra.mxu0 %v3154
        %3228 = vmatprep.subr.bf16.mxu0 %v3161
        %3229 = vmatpush1.bf16.msra.mxu0 %v3160
        %3230 = vmatprep.subr.bf16.mxu0 0
        %3231 = vmatpush1.bf16.msra.mxu0 0
        %3232 = vmatprep.subr.bf16.mxu0 0
        %3233 = vmatpush1.bf16.msra.mxu0 0
        %3234 = vmatprep.subr.bf16.mxu0 0
        %3235 = vmatpush1.bf16.msra.mxu0 0
        %3236 = vmatprep.subr.bf16.mxu0 0
        %3237 = vmatpush1.bf16.msra.mxu0 0
        %3238 = vmatprep.subr.bf16.mxu0 0
        %3239 = vmatpush1.bf16.msra.mxu0 0
        %3240 = vmatprep.subr.bf16.mxu0 0
        %3241 = vmatpush1.bf16.msra.mxu0 0
        %3242 = vmatprep.subr.bf16.mxu0 0
        %3243 = vmatpush1.bf16.msra.mxu0 0
        %3244 = vmatprep.subr.bf16.mxu0 0
        %3245 = vmatpush1.bf16.msra.mxu0 0
        %3246 = vmatprep.mubr.bf16.mxu0 0
        %3247 = vmatmul.mubr.bf16.gmra.mrb[0].mxu0 %v2924
        %v3248 = vpop.f32.mrb[0].mxu0
        %v3249 = vadd.f32 0.0, %v3248
        %v3250 = vpop.f32.mrb[0].mxu0
        %v3251 = vadd.f32 0.0, %v3250
        %v3252 = vpop.f32.mrb[0].mxu0
        %v3253 = vadd.f32 0.0, %v3252
        %v3254 = vpop.f32.mrb[0].mxu0
        %v3255 = vadd.f32 0.0, %v3254
        %3256 = vmatprep.mubr.bf16.mxu0 0
        %3257 = vmatmul.mubr.bf16.gmra.mrb[0].mxu0 %v2925
        %v3258 = vpop.f32.mrb[0].mxu0
        %v3259 = vpop.f32.mrb[0].mxu0
        %v3260 = vpop.f32.mrb[0].mxu0
        %v3261 = vpop.f32.mrb[0].mxu0
        %3262 = vdwg.mxu0
        %3263 = vmatprep.subr.bf16.mxu0 %v3121
        %3264 = vmatpush1.bf16.msra.mxu0 %v3120
        %3265 = vmatprep.subr.bf16.mxu0 %v3127
        %3266 = vmatpush1.bf16.msra.mxu0 %v3126
        %3267 = vmatprep.subr.bf16.mxu0 %v3133
        %3268 = vmatpush1.bf16.msra.mxu0 %v3132
        %3269 = vmatprep.subr.bf16.mxu0 %v3139
        %3270 = vmatpush1.bf16.msra.mxu0 %v3138
        %3271 = vmatprep.subr.bf16.mxu0 %v3145
        %3272 = vmatpush1.bf16.msra.mxu0 %v3144
        %3273 = vmatprep.subr.bf16.mxu0 %v3151
        %3274 = vmatpush1.bf16.msra.mxu0 %v3150
        %3275 = vmatprep.subr.bf16.mxu0 %v3157
        %3276 = vmatpush1.bf16.msra.mxu0 %v3156
        %3277 = vmatprep.subr.bf16.mxu0 %v3163
        %3278 = vmatpush1.bf16.msra.mxu0 %v3162
        %3279 = vmatprep.subr.bf16.mxu0 0
        %3280 = vmatpush1.bf16.msra.mxu0 0
        %3281 = vmatprep.subr.bf16.mxu0 0
        %3282 = vmatpush1.bf16.msra.mxu0 0
        %3283 = vmatprep.subr.bf16.mxu0 0
        %3284 = vmatpush1.bf16.msra.mxu0 0
        %3285 = vmatprep.subr.bf16.mxu0 0
        %3286 = vmatpush1.bf16.msra.mxu0 0
        %3287 = vmatprep.subr.bf16.mxu0 0
        %3288 = vmatpush1.bf16.msra.mxu0 0
        %3289 = vmatprep.subr.bf16.mxu0 0
        %3290 = vmatpush1.bf16.msra.mxu0 0
        %3291 = vmatprep.subr.bf16.mxu0 0
        %3292 = vmatpush1.bf16.msra.mxu0 0
        %3293 = vmatprep.subr.bf16.mxu0 0
        %3294 = vmatpush1.bf16.msra.mxu0 0
        %3295 = vmatprep.mubr.bf16.mxu0 0
        %3296 = vmatmul.mubr.bf16.gmra.mrb[0].mxu0 %v2924
        %v3297 = vpop.f32.mrb[0].mxu0
        %v3298 = vadd.f32 0.0, %v3297
        %v3299 = vpop.f32.mrb[0].mxu0
        %v3300 = vpop.f32.mrb[0].mxu0
        %v3301 = vadd.f32 0.0, %v3300
        %v3302 = vpop.f32.mrb[0].mxu0
        %3303 = vmatprep.mubr.bf16.mxu0 0
        %3304 = vmatmul.mubr.bf16.gmra.mrb[0].mxu0 %v2925
        %v3305 = vpop.f32.mrb[0].mxu0
        %v3306 = vpop.f32.mrb[0].mxu0
        %v3307 = vadd.f32 0.0, %v3306
        %v3308 = vpop.f32.mrb[0].mxu0
        %v3309 = vpop.f32.mrb[0].mxu0
        %v3310 = vadd.f32 0.0, %v3309
        %3311 = vdwg.mxu0
        %3312 = vmatprep.subr.bf16.mxu0 %v3123
        %3313 = vmatpush1.bf16.msra.mxu0 %v3122
        %3314 = vmatprep.subr.bf16.mxu0 %v3129
        %3315 = vmatpush1.bf16.msra.mxu0 %v3128
        %3316 = vmatprep.subr.bf16.mxu0 %v3135
        %3317 = vmatpush1.bf16.msra.mxu0 %v3134
        %3318 = vmatprep.subr.bf16.mxu0 %v3141
        %3319 = vmatpush1.bf16.msra.mxu0 %v3140
        %3320 = vmatprep.subr.bf16.mxu0 %v3147
        %3321 = vmatpush1.bf16.msra.mxu0 %v3146
        %3322 = vmatprep.subr.bf16.mxu0 %v3153
        %3323 = vmatpush1.bf16.msra.mxu0 %v3152
        %3324 = vmatprep.subr.bf16.mxu0 %v3159
        %3325 = vmatpush1.bf16.msra.mxu0 %v3158
        %3326 = vmatprep.subr.bf16.mxu0 %v3165
        %3327 = vmatpush1.bf16.msra.mxu0 %v3164
        %3328 = vmatprep.subr.bf16.mxu0 0
        %3329 = vmatpush1.bf16.msra.mxu0 0
        %3330 = vmatprep.subr.bf16.mxu0 0
        %3331 = vmatpush1.bf16.msra.mxu0 0
        %3332 = vmatprep.subr.bf16.mxu0 0
        %3333 = vmatpush1.bf16.msra.mxu0 0
        %3334 = vmatprep.subr.bf16.mxu0 0
        %3335 = vmatpush1.bf16.msra.mxu0 0
        %3336 = vmatprep.subr.bf16.mxu0 0
        %3337 = vmatpush1.bf16.msra.mxu0 0
        %3338 = vmatprep.subr.bf16.mxu0 0
        %3339 = vmatpush1.bf16.msra.mxu0 0
        %3340 = vmatprep.subr.bf16.mxu0 0
        %3341 = vmatpush1.bf16.msra.mxu0 0
        %3342 = vmatprep.subr.bf16.mxu0 0
        %3343 = vmatpush1.bf16.msra.mxu0 0
        %3344 = vmatprep.mubr.bf16.mxu0 0
        %3345 = vmatmul.mubr.bf16.gmra.mrb[0].mxu0 %v2924
        %v3346 = vpop.f32.mrb[0].mxu0
        %v3347 = vpop.f32.mrb[0].mxu0
        %v3348 = vpop.f32.mrb[0].mxu0
        %v3349 = vpop.f32.mrb[0].mxu0
        %3350 = vmatprep.mubr.bf16.mxu0 0
        %3351 = vmatmul.mubr.bf16.gmra.mrb[0].mxu0 %v2925
        %v3352 = vpop.f32.mrb[0].mxu0
        %v3353 = vadd.f32 0.0, %v3352
        %v3354 = vpop.f32.mrb[0].mxu0
        %v3355 = vadd.f32 0.0, %v3354
        %v3356 = vpop.f32.mrb[0].mxu0
        %v3357 = vadd.f32 0.0, %v3356
        %v3358 = vpop.f32.mrb[0].mxu0
        %v3359 = vadd.f32 0.0, %v3358
        %3360 = vdwg.mxu0
        %v3361 = vadd.f32 %v2912, %v3249
        %v3362 = vadd.f32 %v2915, %v3253
        %v3363 = vxor.u32 %v3361, 2147483648
        %v3364 = vxor.u32 %v3362, 2147483648
        %v3365 = vmul.f32 %v3363, 1.442695
        %v3366 = vpow.pop %v3365
        %v3367 = vmul.f32 %v3364, 1.442695
        %v3368 = vpow.pop %v3367
        %v3369 = vadd.f32 %v3366, 1.0
        %v3370 = vadd.f32 %v3368, 1.0
        %v3371 = vrcp.pop %v3369
        %v3372 = vmul.f32 1.0, %v3371
        %v3373 = vrcp.pop %v3370
        %v3374 = vmul.f32 1.0, %v3373
        %v3375 = vadd.f32 %v2913, %v3251
        %v3376 = vadd.f32 %v2916, %v3255
        %v3377 = vxor.u32 %v3375, 2147483648
        %v3378 = vxor.u32 %v3376, 2147483648
        %v3379 = vmul.f32 %v3377, 1.442695
        %v3380 = vpow.pop %v3379
        %v3381 = vmul.f32 %v3378, 1.442695
        %v3382 = vpow.pop %v3381
        %v3383 = vadd.f32 %v3380, 1.0
        %v3384 = vadd.f32 %v3382, 1.0
        %v3385 = vrcp.pop %v3383
        %v3386 = vmul.f32 1.0, %v3385
        %v3387 = vrcp.pop %v3384
        %v3388 = vmul.f32 1.0, %v3387
        %v3389 = vadd.f32 %v3298, %v1265
        %v3390 = vadd.f32 %v3301, %v1265
        %v3391 = vmul.f32 %v3372, %v3389
        %v3392 = vmul.f32 %v3374, %v3390
        %v3393 = vadd.f32 %v2914, %v3391
        %v3394 = vadd.f32 %v2917, %v3392
        %v3395 = vtanh.pop %v3393
        %v3396 = vtanh.pop %v3394
        %v3397 = vsub.f32 1.0, %v3386
        %v3398 = vsub.f32 1.0, %v3388
        %v3399 = vmul.f32 %v3397, %v3395
        %v3400 = vmul.f32 %v3398, %v3396
        %v3401 = vmul.f32 %v3386, %v2859
        %v3402 = vmul.f32 %v3388, %v2860
        %v3403 = vadd.f32 %v3399, %v3401
        %v3404 = vadd.f32 %v3400, %v3402
        %v3405 = vadd.f32 %v2918, %v3307
        %v3406 = vadd.f32 %v2921, %v3310
        %v3407 = vxor.u32 %v3405, 2147483648
        %v3408 = vxor.u32 %v3406, 2147483648
        %v3409 = vmul.f32 %v3407, 1.442695
        %v3410 = vpow.pop %v3409
        %v3411 = vmul.f32 %v3408, 1.442695
        %v3412 = vpow.pop %v3411
        %v3413 = vadd.f32 %v3410, 1.0
        %v3414 = vadd.f32 %v3412, 1.0
        %v3415 = vrcp.pop %v3413
        %v3416 = vmul.f32 1.0, %v3415
        %v3417 = vrcp.pop %v3414
        %v3418 = vmul.f32 1.0, %v3417
        %v3419 = vadd.f32 %v2919, %v3353
        %v3420 = vadd.f32 %v2922, %v3357
        %v3421 = vxor.u32 %v3419, 2147483648
        %v3422 = vxor.u32 %v3420, 2147483648
        %v3423 = vmul.f32 %v3421, 1.442695
        %v3424 = vpow.pop %v3423
        %v3425 = vmul.f32 %v3422, 1.442695
        %v3426 = vpow.pop %v3425
        %v3427 = vadd.f32 %v3424, 1.0
        %v3428 = vadd.f32 %v3426, 1.0
        %v3429 = vrcp.pop %v3427
        %v3430 = vmul.f32 1.0, %v3429
        %v3431 = vrcp.pop %v3428
        %v3432 = vmul.f32 1.0, %v3431
        %v3433 = vadd.f32 %v3355, %v1272
        %v3434 = vadd.f32 %v3359, %v1272
        %v3435 = vmul.f32 %v3416, %v3433
        %v3436 = vmul.f32 %v3418, %v3434
        %v3437 = vadd.f32 %v2920, %v3435
        %v3438 = vadd.f32 %v2923, %v3436
        %v3439 = vtanh.pop %v3437
        %v3440 = vtanh.pop %v3438
        %v3441 = vsub.f32 1.0, %v3430
        %v3442 = vsub.f32 1.0, %v3432
        %v3443 = vmul.f32 %v3441, %v3439
        %v3444 = vmul.f32 %v3442, %v3440
        %v3445 = vmul.f32 %v3430, %v2903
        %v3446 = vmul.f32 %v3432, %v2904
        %v3447 = vadd.f32 %v3443, %v3445
        %v3448 = vadd.f32 %v3444, %v3446
        %s3449 = scalar_lea.vmem %s493, 48 [#allocation15]
        %3450 = vst [vmem:[%s3449] sm:$0xff] %v3403
        %3451 = vst [vmem:[%s3449 + $0x8] sm:$0xff] %v3404
        %3452 = vst [vmem:[%s500] sm:$0xff] %v3447
        %3453 = vst [vmem:[%s500 + $0x8] sm:$0xff] %v3448
        %3454 = vst [vmem:[#allocation4] sm:$0xff] %v3403
        %3455 = vst [vmem:[#allocation4 + $0x8] sm:$0xff] %v3404
        %3456 = vst [vmem:[#allocation5] sm:$0xff] %v3447
        %3457 = vst [vmem:[#allocation5 + $0x8] sm:$0xff] %v3448
        %p3458 = scmp.eq.s32.totalorder %s36, 1
        // Predicated region
        $region81: #{tpu_custom_call.1} parent=55 // pred_check
          %p3459 = pneg %p3458
        $region82: #{tpu_custom_call.1} parent=55 // pred_check_branch
          %3461 = sbr.rel (%p3459) target = $region84
        $region83: #{tpu_custom_call.1} parent=55 // pred_region
          %3462 = vst [vmem:[#allocation18] sm:$0xff] %v3403
          %3463 = vst [vmem:[#allocation18 + $0x8] sm:$0xff] %v3404
          %s3464 = scalar_lea.vmem [#allocation18], 16
          %3465 = vst [vmem:[%s3464] sm:$0xff] %v3447
          %3466 = vst [vmem:[%s3464 + $0x8] sm:$0xff] %v3448
        $region84: #{tpu_custom_call.1} parent=55 // pred_fallthru
          _
        %s3467 = sand.u32 %s245, 1
        %s3468 = scalar_lea.sflag [#allocation8], %s3467
        %s3469 = sand.u32 %s245, 1
        %s3470 = smul.addr %s3469, 64
        %s3471 = scalar_lea.vmem [#allocation15], %s3470
        %s3472 = sand.u32 %s36, 1
        %s3473 = scalar_lea.sflag [#allocation17], %s3472
        %s3474 = sand.u32 %s273, 1
        %s3475 = smul.addr %s3474, 64
        %s3476 = scalar_lea.vmem [#allocation16], %s3475
        // Predicated region
        $region85: #{tpu_custom_call.1} parent=55 // pred_check
          %p3477 = pneg %p255
        $region86: #{tpu_custom_call.1} parent=55 // pred_check_branch
          %3479 = sbr.rel (%p3477) target = $region88
        $region87: #{tpu_custom_call.1} parent=55 // pred_region
          %s3480 = smul.u32 4, %s36
          %s3482 = ssub.s32 1024, 1024
          %3483 = vsyncadd %s3468, %s3482
          %s3484 = smul.addr %s3480, 2
          %s3485 = smul.addr %s3484, 128
          %s3486 = scalar_lea.hbm %s9, %s3485
          %s3487 = sshll.u32 %s3471, 4
          %s3488 = int_to_ptr.vmem [resolvable:$true] %s3487
          %3493 = dma.vmem_to_hbm [thread:$0]  %s3488, 1024, %s3486, %s3468, 128, 128, 8
        $region88: #{tpu_custom_call.1} parent=55 // pred_fallthru
          _
        // Predicated region
        $region89: #{tpu_custom_call.1} parent=55 // pred_check
          %p3494 = pneg %p283
        $region90: #{tpu_custom_call.1} parent=55 // pred_check_branch
          %3496 = sbr.rel (%p3494) target = $region92
        $region91: #{tpu_custom_call.1} parent=55 // pred_region
          %s3497 = ssub.s32 1, %s36
          %s3498 = smul.u32 4, %s3497
          %s3500 = ssub.s32 1024, 1024
          %3501 = vsyncadd %s3473, %s3500
          %s3502 = smul.addr %s3498, 2
          %s3503 = smul.addr %s3502, 128
          %s3504 = scalar_lea.hbm %s10, %s3503
          %s3505 = sshll.u32 %s3476, 4
          %s3506 = int_to_ptr.vmem [resolvable:$true] %s3505
          %3511 = dma.vmem_to_hbm [thread:$0]  %s3506, 1024, %s3504, %s3473, 128, 128, 8
        $region92: #{tpu_custom_call.1} parent=55 // pred_fallthru
          _
        // Predicated region
        $region93: #{tpu_custom_call.1} parent=55 // pred_check
          %p3512 = pneg %p304
        $region94: #{tpu_custom_call.1} parent=55 // pred_check_branch
          %3514 = sbr.rel (%p3512) target = $region96
        $region95: #{tpu_custom_call.1} parent=55 // pred_region
          %s3516 = ssub.s32 512, 512
          %3517 = vsyncadd [#allocation17], %s3516
          %s3518 = sshll.u32 [#allocation18], 4
          %s3519 = int_to_ptr.vmem [resolvable:$true] %s3518
          %3524 = dma.vmem_to_hbm [thread:$0]  %s3519, 512, %s11, [#allocation17], 128, 128, 8
        $region96: #{tpu_custom_call.1} parent=55 // pred_fallthru
          _
        // Predicated region
        $region97: #{tpu_custom_call.1} parent=55 // pred_check
          %p3525 = pneg %p304
        $region98: #{tpu_custom_call.1} parent=55 // pred_check_branch
          %3527 = sbr.rel (%p3525) target = $region100
        $region99: #{tpu_custom_call.1} parent=55 // pred_region
          %3528 = dma.done [#allocation17], 512
        $region100: #{tpu_custom_call.1} parent=55 // pred_fallthru
          _
      $region56: #{tpu_custom_call.1} parent=5 // pred_fallthru
        _
      %p3529 = scmp.le.s32.totalorder 2, %s31
      // Predicated region
      $region101: #{tpu_custom_call.1} parent=5 // pred_check
        %p3530 = pneg %p3529
      $region102: #{tpu_custom_call.1} parent=5 // pred_check_branch
        %3532 = sbr.rel (%p3530) target = $region104
      $region103: #{tpu_custom_call.1} parent=5 // pred_region
        %s3533 = ssub.s32 %s31, 2
        // Predicated region
        $region105: #{tpu_custom_call.1} parent=103 // pred_check
          %p3534 = pneg %p261
        $region106: #{tpu_custom_call.1} parent=103 // pred_check_branch
          %3536 = sbr.rel (%p3534) target = $region108
        $region107: #{tpu_custom_call.1} parent=103 // pred_region
          %s3537 = sand.u32 %s246, 1
          %s3538 = scalar_lea.sflag [#allocation8], %s3537
          %s3539 = sand.u32 %s246, 1
          %s3540 = smul.addr %s3539, 64
          %s3541 = scalar_lea.vmem [#allocation15], %s3540
          %3542 = dma.done %s3538, 1024
        $region108: #{tpu_custom_call.1} parent=103 // pred_fallthru
          _
        // Predicated region
        $region109: #{tpu_custom_call.1} parent=103 // pred_check
          %p3543 = pneg %p289
        $region110: #{tpu_custom_call.1} parent=103 // pred_check_branch
          %3545 = sbr.rel (%p3543) target = $region112
        $region111: #{tpu_custom_call.1} parent=103 // pred_region
          %s3546 = sand.u32 %s37, 1
          %s3547 = scalar_lea.sflag [#allocation17], %s3546
          %s3548 = sand.u32 %s274, 1
          %s3549 = smul.addr %s3548, 64
          %s3550 = scalar_lea.vmem [#allocation16], %s3549
          %3551 = dma.done %s3547, 1024
        $region112: #{tpu_custom_call.1} parent=103 // pred_fallthru
          _
      $region104: #{tpu_custom_call.1} parent=5 // pred_fallthru
        _
    $region6: #{tpu_custom_call.1} parent=1 // loop_footer
      %s35 = sadd.s32 1, %s31
    $region7: #{tpu_custom_call.1} parent=1 // loop_footer_branch
      %30 = sbr.rel target = $region3
    $region8: #{tpu_custom_call.1} parent=1 // loop_exit
      _
    %3552 = vsyncpa [#allocation7], 1
    %s3553 = scalar_lea.sflag [#allocation7], 1
    %3554 = vsyncpa %s3553, 1
    %3555 = vsyncpa [#allocation10], 1
    %s3556 = scalar_lea.sflag [#allocation10], 1
    %3557 = vsyncpa %s3556, 1
    %3558 = vsyncpa [#allocation13], 1
    %3559 = vsyncpa [#allocation8], 1
    %s3560 = scalar_lea.sflag [#allocation8], 1
    %3561 = vsyncpa %s3560, 1
    %3562 = vsyncpa [#allocation17], 1
    %s3563 = scalar_lea.sflag [#allocation17], 1
    %3564 = vsyncpa %s3563, 1

</llo_original>
